<compile_context>
chip_gen: v7x
topology: tpu7x:2x2x1
jax: 0.10.0
libtpu: 0.0.40
codegen_flags: <defaults>
</compile_context>

<pallas_src>
import functools

import jax
import jax.numpy as jnp
from jax.experimental import pallas as pl
from jax.experimental.pallas import tpu as pltpu

# ----------------------------------------------------------------------------
# Synthetic "parsed config" (what parse_model_config would return), kept tiny.
# Exercises: convolutional (bn+leaky / bias+linear), shortcut, route, upsample,
# and two yolo heads at different grid sizes.
# ----------------------------------------------------------------------------
MODULE_DEFS = [
    {"type": "net", "channels": "4", "height": "16"},
    {"type": "convolutional", "batch_normalize": "1", "filters": "8",  "size": "3", "stride": "1", "pad": "1", "activation": "leaky"},
    {"type": "convolutional", "batch_normalize": "1", "filters": "16", "size": "3", "stride": "2", "pad": "1", "activation": "leaky"},
    {"type": "convolutional", "batch_normalize": "1", "filters": "8",  "size": "1", "stride": "1", "pad": "1", "activation": "leaky"},
    {"type": "convolutional", "batch_normalize": "1", "filters": "16", "size": "3", "stride": "1", "pad": "1", "activation": "leaky"},
    {"type": "shortcut", "from": "-3", "activation": "linear"},
    {"type": "convolutional", "batch_normalize": "0", "filters": "27", "size": "1", "stride": "1", "pad": "1", "activation": "linear"},
    {"type": "yolo", "mask": "0,1,2", "anchors": "10,13,16,30,33,23,30,61,62,45,59,119", "classes": "4", "num": "6"},
    {"type": "route", "layers": "-4"},
    {"type": "upsample", "stride": "2"},
    {"type": "route", "layers": "-1,0"},
    {"type": "convolutional", "batch_normalize": "0", "filters": "27", "size": "3", "stride": "1", "pad": "1", "activation": "linear"},
    {"type": "yolo", "mask": "3,4,5", "anchors": "10,13,16,30,33,23,30,61,62,45,59,119", "classes": "4", "num": "6"},
]

# Matmul tile constants (lane-dense; MXU-friendly on v5e/v6e/v7x).
_TK = 128
_TN = 128


def _round_up(v, m):
    return ((v + m - 1) // m) * m


# ----------------------------------------------------------------------------
# Pallas kernels
# ----------------------------------------------------------------------------
def _conv_mm_kernel(x_ref, w_ref, scale_ref, shift_ref, o_ref, acc_ref, *, leaky):
    """Tiled im2col matmul + fused (folded-BN) affine + LeakyReLU epilogue."""
    @pl.when(pl.program_id(2) == 0)
    def _init():
        acc_ref[...] = jnp.zeros_like(acc_ref)

    acc_ref[...] += jnp.dot(x_ref[...], w_ref[...],
                            preferred_element_type=jnp.float32)

    @pl.when(pl.program_id(2) == pl.num_programs(2) - 1)
    def _finalize():
        y = acc_ref[...] * scale_ref[...] + shift_ref[...]
        if leaky:
            y = jnp.where(y > 0, y, 0.1 * y)
        o_ref[...] = y.astype(o_ref.dtype)


def conv_mm_pallas(a2d, wmat, scale2d, shift2d, leaky, tm):
    """a2d: (Mp, Kp) bf16, wmat: (Kp, Np) bf16, scale/shift: (1, Np) f32."""
    mp, kp = a2d.shape
    np_ = wmat.shape[1]
    kern = functools.partial(_conv_mm_kernel, leaky=leaky)
    return pl.pallas_call(
        kern,
        out_shape=jax.ShapeDtypeStruct((mp, np_), jnp.float32),
        grid=(mp // tm, np_ // _TN, kp // _TK),
        in_specs=[
            pl.BlockSpec((tm, _TK), lambda i, j, kk: (i, kk)),
            pl.BlockSpec((_TK, _TN), lambda i, j, kk: (kk, j)),
            pl.BlockSpec((1, _TN), lambda i, j, kk: (0, j)),
            pl.BlockSpec((1, _TN), lambda i, j, kk: (0, j)),
        ],
        out_specs=pl.BlockSpec((tm, _TN), lambda i, j, kk: (i, j)),
        scratch_shapes=[pltpu.VMEM((tm, _TN), jnp.float32)],
        compiler_params=pltpu.CompilerParams(
            dimension_semantics=("parallel", "parallel", "arbitrary")),
    )(a2d, wmat, scale2d, shift2d)


def _add_kernel(a_ref, b_ref, o_ref):
    o_ref[...] = a_ref[...] + b_ref[...]


def add_pallas(a, b):
    """Lane-dense tiled elementwise add (residual shortcut)."""
    shape = a.shape
    total = a.size
    c2 = 512                                   # 4 vregs wide, unmasked stores
    rows = -(-total // c2)
    tr = 256 if rows >= 256 else _round_up(rows, 8)
    rp = _round_up(rows, tr)
    pad_amt = rp * c2 - total
    af = jnp.pad(a.reshape(-1), (0, pad_amt)).reshape(rp, c2)
    bf = jnp.pad(b.reshape(-1), (0, pad_amt)).reshape(rp, c2)
    out = pl.pallas_call(
        _add_kernel,
        out_shape=jax.ShapeDtypeStruct((rp, c2), a.dtype),
        grid=(rp // tr,),
        in_specs=[pl.BlockSpec((tr, c2), lambda i: (i, 0)),
                  pl.BlockSpec((tr, c2), lambda i: (i, 0))],
        out_specs=pl.BlockSpec((tr, c2), lambda i: (i, 0)),
        compiler_params=pltpu.CompilerParams(dimension_semantics=("parallel",)),
    )(af, bf)
    return out.reshape(-1)[:total].reshape(shape)


def _yolo_kernel(p_ref, o_ref, *, stride, scaled_anchors):
    """YOLO decode for one (batch, anchor) slice of shape (g, g, 5+nc).

    Grid offsets are generated in-kernel (broadcasted_iota); anchor scales are
    static constants selected by pl.program_id(1) -> no offset/anchor tensors
    are read from HBM.
    """
    p = p_ref[...]                                   # (g, g, d) f32
    shape = p.shape
    gy = jax.lax.broadcasted_iota(jnp.int32, shape, 0).astype(jnp.float32)
    gx = jax.lax.broadcasted_iota(jnp.int32, shape, 1).astype(jnp.float32)
    col = jax.lax.broadcasted_iota(jnp.int32, shape, 2)

    a_idx = pl.program_id(1)
    aw = jnp.float32(scaled_anchors[0][0])
    ah = jnp.float32(scaled_anchors[0][1])
    for i in range(1, len(scaled_anchors)):
        aw = jnp.where(a_idx == i, jnp.float32(scaled_anchors[i][0]), aw)
        ah = jnp.where(a_idx == i, jnp.float32(scaled_anchors[i][1]), ah)

    is_xy = col < 2
    is_wh = jnp.logical_and(col >= 2, col < 4)
    sig = jax.nn.sigmoid(p)
    # exp only on the w/h columns (zero elsewhere) -> cannot overflow on big logits
    ex = jnp.exp(jnp.where(is_wh, p, 0.0))
    off = jnp.where(col == 0, gx, gy)
    anc = jnp.where(col == 2, aw, ah)
    xy = (sig + off) * stride                        # cols 0,1
    wh = ex * (anc * stride)                         # cols 2,3
    o_ref[...] = jnp.where(is_xy, xy, jnp.where(is_wh, wh, sig))


def yolo_layer(x_nhwc, anchors, num_classes, img_dim):
    n, g, _, _ = x_nhwc.shape
    a = len(anchors)
    d = num_classes + 5
    stride = img_dim / g
    # NHWC channel axis decomposes as (anchor, 5+nc); reorder to (N, A, g, g, d)
    pred = x_nhwc.reshape(n, g, g, a, d).transpose(0, 3, 1, 2, 4)
    scaled = tuple((float(aw) / stride, float(ah) / stride) for aw, ah in anchors)
    kern = functools.partial(_yolo_kernel, stride=float(stride), scaled_anchors=scaled)
    out = pl.pallas_call(
        kern,
        out_shape=jax.ShapeDtypeStruct((n, a, g, g, d), jnp.float32),
        grid=(n, a),
        in_specs=[pl.BlockSpec((None, None, g, g, d),
                               lambda ni, ai: (ni, ai, 0, 0, 0))],
        out_specs=pl.BlockSpec((None, None, g, g, d),
                               lambda ni, ai: (ni, ai, 0, 0, 0)),
        compiler_params=pltpu.CompilerParams(
            dimension_semantics=("parallel", "parallel")),
    )(pred)
    return out.reshape(n, a * g * g, d)


# ----------------------------------------------------------------------------
# Conv layer (NHWC, im2col glue in plain JAX, matmul on the MXU via Pallas)
# ----------------------------------------------------------------------------
def conv_bn_act(x, p, stride, k, leaky):
    n, h, w, cin = x.shape                       # NHWC
    pad = (k - 1) // 2
    ho = (h + 2 * pad - k) // stride + 1
    wo = (w + 2 * pad - k) // stride + 1
    if k == 1 and stride == 1:
        a2d = x.reshape(n * ho * wo, cin)
    else:
        xp = jnp.pad(x, ((0, 0), (pad, pad), (pad, pad), (0, 0)))
        cols = []
        for ki in range(k):
            for kj in range(k):
                cols.append(
                    xp[:, ki:ki + stride * ho:stride, kj:kj + stride * wo:stride, :])
        a2d = jnp.stack(cols, axis=3).reshape(n * ho * wo, k * k * cin)

    m, kd = a2d.shape
    tm = 256 if m >= 256 else _round_up(m, 8)
    mp = _round_up(m, tm)
    kp = p["wmat"].shape[0]
    a_p = jnp.pad(a2d, ((0, mp - m), (0, kp - kd))).astype(jnp.bfloat16)

    out2d = conv_mm_pallas(a_p, p["wmat"], p["scale2d"], p["shift2d"], leaky, tm)
    cout = p["cout"]
    return out2d[:m, :cout].reshape(n, ho, wo, cout)


# ----------------------------------------------------------------------------
# Parameter initialization (deterministic, mirrors create_modules shapes).
# Weights / BN are pre-folded and pre-padded to lane-dense (multiples of 128)
# matmul operands; weights are stored in bf16 for the MXU.
# ----------------------------------------------------------------------------
def init_params(module_defs, key):
    hyper = module_defs[0]
    out_filters = [int(hyper["channels"])]
    params = []
    for mdef in module_defs[1:]:
        t = mdef["type"]
        p = None
        if t == "convolutional":
            bn = int(mdef["batch_normalize"])
            cin = out_filters[-1]
            cout = int(mdef["filters"])
            k = int(mdef["size"])
            key, kw, k1, k2, k3, k4 = jax.random.split(key, 6)
            w = 0.1 * jax.random.normal(kw, (cout, cin, k, k), jnp.float32)
            if bn:
                gamma = 1.0 + 0.1 * jax.random.normal(k1, (cout,), jnp.float32)
                beta = 0.1 * jax.random.normal(k2, (cout,), jnp.float32)
                rmean = 0.1 * jax.random.normal(k3, (cout,), jnp.float32)
                rvar = 0.5 + jax.random.uniform(k4, (cout,), jnp.float32)
                scale = gamma / jnp.sqrt(rvar + 1e-5)      # eval-mode BN folded
                shift = beta - rmean * scale
            else:
                bias = 0.1 * jax.random.normal(k1, (cout,), jnp.float32)
                scale = jnp.ones((cout,), jnp.float32)
                shift = bias
            kd = k * k * cin
            kp = _round_up(kd, _TK)
            np_ = _round_up(cout, _TN)
            wm = w.transpose(2, 3, 1, 0).reshape(kd, cout)        # (ki,kj,cin) x cout
            wmat = jnp.zeros((kp, np_), jnp.float32).at[:kd, :cout].set(wm)
            p = {
                "wmat": wmat.astype(jnp.bfloat16),
                "scale2d": jnp.zeros((1, np_), jnp.float32).at[0, :cout].set(scale),
                "shift2d": jnp.zeros((1, np_), jnp.float32).at[0, :cout].set(shift),
                "cout": cout,
            }
            filters = cout
        elif t == "route":
            idxs = [int(v) for v in mdef["layers"].split(",")]
            filters = sum(out_filters[1:][i] for i in idxs)
        elif t == "shortcut":
            filters = out_filters[1:][int(mdef["from"])]
        elif t == "yolo":
            mask = [int(v) for v in mdef["mask"].split(",")]
            av = [int(v) for v in mdef["anchors"].split(",")]
            anchors = [(av[i], av[i + 1]) for i in range(0, len(av), 2)]
            p = {"anchors": [anchors[i] for i in mask]}
            filters = out_filters[-1]
        else:  # upsample / maxpool
            filters = out_filters[-1]
        params.append(p)
        out_filters.append(filters)
    return params


# ----------------------------------------------------------------------------
# Darknet forward (mirrors PyTorch Darknet.forward, inference path).
# Activations flow NHWC internally; input is NCHW like PyTorch.
# ----------------------------------------------------------------------------
def darknet_forward(x_nchw, module_defs, params):
    img_dim = x_nchw.shape[2]
    x = jnp.transpose(x_nchw, (0, 2, 3, 1))            # single NCHW -> NHWC permute
    layer_outputs, yolo_outputs = [], []
    for i, mdef in enumerate(module_defs[1:]):
        t = mdef["type"]
        if t == "convolutional":
            x = conv_bn_act(x, params[i], int(mdef["stride"]), int(mdef["size"]),
                            mdef["activation"] == "leaky")
        elif t == "upsample":
            # TODO(synk): nearest upsample kept as jnp glue; could be folded into
            # the consuming conv's index_map to avoid an HBM round-trip.
            s = int(mdef["stride"])
            x = jnp.repeat(jnp.repeat(x, s, axis=1), s, axis=2)
        elif t == "maxpool":
            # TODO(synk): maxpool kept in plain JAX (reduce_window), not a Pallas kernel.
            k, s = int(mdef["size"]), int(mdef["stride"])
            pad = (k - 1) // 2
            if k == 2 and s == 1:
                x = jnp.pad(x, ((0, 0), (0, 1), (0, 1), (0, 0)))
            x = jax.lax.reduce_window(
                x, -jnp.inf, jax.lax.max, (1, k, k, 1), (1, s, s, 1),
                padding=((0, 0), (pad, pad), (pad, pad), (0, 0)))
        elif t == "route":
            x = jnp.concatenate(
                [layer_outputs[int(li)] for li in mdef["layers"].split(",")], axis=3)
        elif t == "shortcut":
            x = add_pallas(layer_outputs[-1], layer_outputs[int(mdef["from"])])
        elif t == "yolo":
            x = yolo_layer(x, params[i]["anchors"], int(mdef["classes"]), img_dim)
            yolo_outputs.append(x)
        layer_outputs.append(x)
    return jnp.concatenate(yolo_outputs, axis=1)


if __name__ == "__main__":
    key = jax.random.PRNGKey(0)
    key, kx = jax.random.split(key)
    # batch=2, channels=4, 16x16 image (matches net hyperparams above)
    x = jax.random.normal(kx, (2, 4, 16, 16), jnp.float32)
    params = init_params(MODULE_DEFS, key)

    fwd = jax.jit(lambda xx: darknet_forward(xx, MODULE_DEFS, params))
    out = jax.block_until_ready(fwd(x))

    # expected: (2, 3*8*8 + 3*16*16, 5 + num_classes) = (2, 960, 9)
    assert out.shape == (2, 960, 9), out.shape
    assert bool(jnp.all(jnp.isfinite(out)))
    print("KERNEL_OK")
</pallas_src>

<mosaic_0001>
module attributes {stable_mosaic.version = 11 : i64} {
  func.func @_conv_mm_kernel(%arg0: i32, %arg1: i32, %arg2: i32, %arg3: memref<256x128xbf16, #tpu.memory_space<vmem>>, %arg4: memref<128x128xbf16, #tpu.memory_space<vmem>>, %arg5: memref<1x128xf32, #tpu.memory_space<vmem>>, %arg6: memref<1x128xf32, #tpu.memory_space<vmem>>, %arg7: memref<256x128xf32, #tpu.memory_space<vmem>>, %arg8: memref<256x128xf32, #tpu.memory_space<vmem>>) attributes {dimension_semantics = [#tpu.dimension_semantics<parallel>, #tpu.dimension_semantics<parallel>, #tpu.dimension_semantics<arbitrary>], iteration_bounds = array<i64: 2, 1, 1>, scalar_prefetch = 0 : i64, scratch_operands = 1 : i64, tpu.core_type = #tpu.core_type<tc>, window_params = [{transform_indices = @transform_0, window_bounds = array<i64: 256, 128>}, {transform_indices = @transform_1, window_bounds = array<i64: 128, 128>}, {transform_indices = @transform_2, window_bounds = array<i64: 1, 128>}, {transform_indices = @transform_3, window_bounds = array<i64: 1, 128>}, {transform_indices = @transform_4, window_bounds = array<i64: 256, 128>}]} {
    %c0_i32 = arith.constant 0 : i32
    %0 = arith.cmpi eq, %arg2, %c0_i32 : i32
    %1 = arith.extui %0 : i1 to i32
    %c0_i32_0 = arith.constant 0 : i32
    %2 = arith.cmpi ne, %1, %c0_i32_0 : i32
    scf.if %2 {
      %cst_10 = arith.constant 0.000000e+00 : f32
      %12 = vector.broadcast %cst_10 : f32 to vector<256x128xf32>
      %c0_11 = arith.constant 0 : index
      %c0_12 = arith.constant 0 : index
      %13 = vector.load %arg8[%c0_11, %c0_12] : memref<256x128xf32, #tpu.memory_space<vmem>>, vector<256x128xf32>
      tpu.vector_store %arg8[%c0_11, %c0_12], %12 {strides = array<i32>} : memref<256x128xf32, #tpu.memory_space<vmem>>, vector<256x128xf32>,
    } else {
    }
    %c0 = arith.constant 0 : index
    %c0_1 = arith.constant 0 : index
    %3 = vector.load %arg8[%c0, %c0_1] : memref<256x128xf32, #tpu.memory_space<vmem>>, vector<256x128xf32>
    %c0_2 = arith.constant 0 : index
    %c0_3 = arith.constant 0 : index
    %4 = vector.load %arg3[%c0_2, %c0_3] : memref<256x128xbf16, #tpu.memory_space<vmem>>, vector<256x128xbf16>
    %c0_4 = arith.constant 0 : index
    %c0_5 = arith.constant 0 : index
    %5 = vector.load %arg4[%c0_4, %c0_5] : memref<128x128xbf16, #tpu.memory_space<vmem>>, vector<128x128xbf16>
    %cst = arith.constant dense<0.000000e+00> : vector<256x128xf32>
    %6 = tpu.matmul %4, %5, %cst {dimension_numbers = #tpu.dot_dimension_numbers<[1], [0], [0], [1], [0, 0, 1, 1], [], []>} : vector<256x128xbf16>, vector<128x128xbf16>, vector<256x128xf32> -> vector<256x128xf32>
    %7 = arith.addf %3, %6 : vector<256x128xf32>
    %c0_6 = arith.constant 0 : index
    %c0_7 = arith.constant 0 : index
    %8 = vector.load %arg8[%c0_6, %c0_7] : memref<256x128xf32, #tpu.memory_space<vmem>>, vector<256x128xf32>
    tpu.vector_store %arg8[%c0_6, %c0_7], %7 {strides = array<i32>} : memref<256x128xf32, #tpu.memory_space<vmem>>, vector<256x128xf32>,
    %c0_i32_8 = arith.constant 0 : i32
    %9 = arith.cmpi eq, %arg2, %c0_i32_8 : i32
    %10 = arith.extui %9 : i1 to i32
    %c0_i32_9 = arith.constant 0 : i32
    %11 = arith.cmpi ne, %10, %c0_i32_9 : i32
    scf.if %11 {
      %c0_10 = arith.constant 0 : index
      %c0_11 = arith.constant 0 : index
      %12 = vector.load %arg8[%c0_10, %c0_11] : memref<256x128xf32, #tpu.memory_space<vmem>>, vector<256x128xf32>
      %c0_12 = arith.constant 0 : index
      %c0_13 = arith.constant 0 : index
      %13 = vector.load %arg5[%c0_12, %c0_13] : memref<1x128xf32, #tpu.memory_space<vmem>>, vector<1x128xf32>
      %14 = vector.broadcast %13 : vector<1x128xf32> to vector<256x128xf32>
      %15 = arith.mulf %12, %14 : vector<256x128xf32>
      %c0_14 = arith.constant 0 : index
      %c0_15 = arith.constant 0 : index
      %16 = vector.load %arg6[%c0_14, %c0_15] : memref<1x128xf32, #tpu.memory_space<vmem>>, vector<1x128xf32>
      %17 = vector.broadcast %16 : vector<1x128xf32> to vector<256x128xf32>
      %18 = arith.addf %15, %17 : vector<256x128xf32>
      %cst_16 = arith.constant 0.000000e+00 : f32
      %19 = vector.broadcast %cst_16 : f32 to vector<256x128xf32>
      %20 = arith.cmpf ogt, %18, %19 : vector<256x128xf32>
      %cst_17 = arith.constant 1.000000e-01 : f32
      %21 = vector.broadcast %cst_17 : f32 to vector<256x128xf32>
      %22 = arith.mulf %21, %18 : vector<256x128xf32>
      %23 = arith.select %20, %18, %22 : vector<256x128xi1>, vector<256x128xf32>
      %c0_18 = arith.constant 0 : index
      %c0_19 = arith.constant 0 : index
      %24 = vector.load %arg7[%c0_18, %c0_19] : memref<256x128xf32, #tpu.memory_space<vmem>>, vector<256x128xf32>
      tpu.vector_store %arg7[%c0_18, %c0_19], %23 {strides = array<i32>} : memref<256x128xf32, #tpu.memory_space<vmem>>, vector<256x128xf32>,
    } else {
    }
    return
  }
  func.func @transform_0(%arg0: i32, %arg1: i32, %arg2: i32) -> (i32, i32) {
    %c0_i32 = arith.constant 0 : i32
    return %arg0, %arg2 : i32, i32
  }
  func.func @transform_1(%arg0: i32, %arg1: i32, %arg2: i32) -> (i32, i32) {
    %c0_i32 = arith.constant 0 : i32
    return %arg2, %arg1 : i32, i32
  }
  func.func @transform_2(%arg0: i32, %arg1: i32, %arg2: i32) -> (i32, i32) {
    %c0_i32 = arith.constant 0 : i32
    %c0_i32_0 = arith.constant 0 : i32
    return %c0_i32, %arg1 : i32, i32
  }
  func.func @transform_3(%arg0: i32, %arg1: i32, %arg2: i32) -> (i32, i32) {
    %c0_i32 = arith.constant 0 : i32
    %c0_i32_0 = arith.constant 0 : i32
    return %c0_i32, %arg1 : i32, i32
  }
  func.func @transform_4(%arg0: i32, %arg1: i32, %arg2: i32) -> (i32, i32) {
    %c0_i32 = arith.constant 0 : i32
    return %arg0, %arg1 : i32, i32
  }
}

module attributes {stable_mosaic.version = 11 : i64} {
  func.func @_conv_mm_kernel(%arg0: i32, %arg1: i32, %arg2: i32, %arg3: memref<128x128xbf16, #tpu.memory_space<vmem>>, %arg4: memref<128x128xbf16, #tpu.memory_space<vmem>>, %arg5: memref<1x128xf32, #tpu.memory_space<vmem>>, %arg6: memref<1x128xf32, #tpu.memory_space<vmem>>, %arg7: memref<128x128xf32, #tpu.memory_space<vmem>>, %arg8: memref<128x128xf32, #tpu.memory_space<vmem>>) attributes {dimension_semantics = [#tpu.dimension_semantics<parallel>, #tpu.dimension_semantics<parallel>, #tpu.dimension_semantics<arbitrary>], iteration_bounds = array<i64: 1, 1, 1>, scalar_prefetch = 0 : i64, scratch_operands = 1 : i64, tpu.core_type = #tpu.core_type<tc>, window_params = [{transform_indices = @transform_0, window_bounds = array<i64: 128, 128>}, {transform_indices = @transform_1, window_bounds = array<i64: 128, 128>}, {transform_indices = @transform_2, window_bounds = array<i64: 1, 128>}, {transform_indices = @transform_3, window_bounds = array<i64: 1, 128>}, {transform_indices = @transform_4, window_bounds = array<i64: 128, 128>}]} {
    %c0_i32 = arith.constant 0 : i32
    %0 = arith.cmpi eq, %arg2, %c0_i32 : i32
    %1 = arith.extui %0 : i1 to i32
    %c0_i32_0 = arith.constant 0 : i32
    %2 = arith.cmpi ne, %1, %c0_i32_0 : i32
    scf.if %2 {
      %cst_10 = arith.constant 0.000000e+00 : f32
      %12 = vector.broadcast %cst_10 : f32 to vector<128x128xf32>
      %c0_11 = arith.constant 0 : index
      %c0_12 = arith.constant 0 : index
      %13 = vector.load %arg8[%c0_11, %c0_12] : memref<128x128xf32, #tpu.memory_space<vmem>>, vector<128x128xf32>
      tpu.vector_store %arg8[%c0_11, %c0_12], %12 {strides = array<i32>} : memref<128x128xf32, #tpu.memory_space<vmem>>, vector<128x128xf32>,
    } else {
    }
    %c0 = arith.constant 0 : index
    %c0_1 = arith.constant 0 : index
    %3 = vector.load %arg8[%c0, %c0_1] : memref<128x128xf32, #tpu.memory_space<vmem>>, vector<128x128xf32>
    %c0_2 = arith.constant 0 : index
    %c0_3 = arith.constant 0 : index
    %4 = vector.load %arg3[%c0_2, %c0_3] : memref<128x128xbf16, #tpu.memory_space<vmem>>, vector<128x128xbf16>
    %c0_4 = arith.constant 0 : index
    %c0_5 = arith.constant 0 : index
    %5 = vector.load %arg4[%c0_4, %c0_5] : memref<128x128xbf16, #tpu.memory_space<vmem>>, vector<128x128xbf16>
    %cst = arith.constant dense<0.000000e+00> : vector<128x128xf32>
    %6 = tpu.matmul %4, %5, %cst {dimension_numbers = #tpu.dot_dimension_numbers<[1], [0], [0], [1], [0, 0, 1, 1], [], []>} : vector<128x128xbf16>, vector<128x128xbf16>, vector<128x128xf32> -> vector<128x128xf32>
    %7 = arith.addf %3, %6 : vector<128x128xf32>
    %c0_6 = arith.constant 0 : index
    %c0_7 = arith.constant 0 : index
    %8 = vector.load %arg8[%c0_6, %c0_7] : memref<128x128xf32, #tpu.memory_space<vmem>>, vector<128x128xf32>
    tpu.vector_store %arg8[%c0_6, %c0_7], %7 {strides = array<i32>} : memref<128x128xf32, #tpu.memory_space<vmem>>, vector<128x128xf32>,
    %c0_i32_8 = arith.constant 0 : i32
    %9 = arith.cmpi eq, %arg2, %c0_i32_8 : i32
    %10 = arith.extui %9 : i1 to i32
    %c0_i32_9 = arith.constant 0 : i32
    %11 = arith.cmpi ne, %10, %c0_i32_9 : i32
    scf.if %11 {
      %c0_10 = arith.constant 0 : index
      %c0_11 = arith.constant 0 : index
      %12 = vector.load %arg8[%c0_10, %c0_11] : memref<128x128xf32, #tpu.memory_space<vmem>>, vector<128x128xf32>
      %c0_12 = arith.constant 0 : index
      %c0_13 = arith.constant 0 : index
      %13 = vector.load %arg5[%c0_12, %c0_13] : memref<1x128xf32, #tpu.memory_space<vmem>>, vector<1x128xf32>
      %14 = vector.broadcast %13 : vector<1x128xf32> to vector<128x128xf32>
      %15 = arith.mulf %12, %14 : vector<128x128xf32>
      %c0_14 = arith.constant 0 : index
      %c0_15 = arith.constant 0 : index
      %16 = vector.load %arg6[%c0_14, %c0_15] : memref<1x128xf32, #tpu.memory_space<vmem>>, vector<1x128xf32>
      %17 = vector.broadcast %16 : vector<1x128xf32> to vector<128x128xf32>
      %18 = arith.addf %15, %17 : vector<128x128xf32>
      %cst_16 = arith.constant 0.000000e+00 : f32
      %19 = vector.broadcast %cst_16 : f32 to vector<128x128xf32>
      %20 = arith.cmpf ogt, %18, %19 : vector<128x128xf32>
      %cst_17 = arith.constant 1.000000e-01 : f32
      %21 = vector.broadcast %cst_17 : f32 to vector<128x128xf32>
      %22 = arith.mulf %21, %18 : vector<128x128xf32>
      %23 = arith.select %20, %18, %22 : vector<128x128xi1>, vector<128x128xf32>
      %c0_18 = arith.constant 0 : index
      %c0_19 = arith.constant 0 : index
      %24 = vector.load %arg7[%c0_18, %c0_19] : memref<128x128xf32, #tpu.memory_space<vmem>>, vector<128x128xf32>
      tpu.vector_store %arg7[%c0_18, %c0_19], %23 {strides = array<i32>} : memref<128x128xf32, #tpu.memory_space<vmem>>, vector<128x128xf32>,
    } else {
    }
    return
  }
  func.func @transform_0(%arg0: i32, %arg1: i32, %arg2: i32) -> (i32, i32) {
    %c0_i32 = arith.constant 0 : i32
    return %arg0, %arg2 : i32, i32
  }
  func.func @transform_1(%arg0: i32, %arg1: i32, %arg2: i32) -> (i32, i32) {
    %c0_i32 = arith.constant 0 : i32
    return %arg2, %arg1 : i32, i32
  }
  func.func @transform_2(%arg0: i32, %arg1: i32, %arg2: i32) -> (i32, i32) {
    %c0_i32 = arith.constant 0 : i32
    %c0_i32_0 = arith.constant 0 : i32
    return %c0_i32, %arg1 : i32, i32
  }
  func.func @transform_3(%arg0: i32, %arg1: i32, %arg2: i32) -> (i32, i32) {
    %c0_i32 = arith.constant 0 : i32
    %c0_i32_0 = arith.constant 0 : i32
    return %c0_i32, %arg1 : i32, i32
  }
  func.func @transform_4(%arg0: i32, %arg1: i32, %arg2: i32) -> (i32, i32) {
    %c0_i32 = arith.constant 0 : i32
    return %arg0, %arg1 : i32, i32
  }
}

module attributes {stable_mosaic.version = 11 : i64} {
  func.func @_add_kernel(%arg0: i32, %arg1: memref<8x512xf32, #tpu.memory_space<vmem>>, %arg2: memref<8x512xf32, #tpu.memory_space<vmem>>, %arg3: memref<8x512xf32, #tpu.memory_space<vmem>>) attributes {dimension_semantics = [#tpu.dimension_semantics<parallel>], iteration_bounds = array<i64: 1>, scalar_prefetch = 0 : i64, scratch_operands = 0 : i64, tpu.core_type = #tpu.core_type<tc>, window_params = [{transform_indices = @transform_0, window_bounds = array<i64: 8, 512>}, {transform_indices = @transform_1, window_bounds = array<i64: 8, 512>}, {transform_indices = @transform_2, window_bounds = array<i64: 8, 512>}]} {
    %c0 = arith.constant 0 : index
    %c0_0 = arith.constant 0 : index
    %0 = vector.load %arg1[%c0, %c0_0] : memref<8x512xf32, #tpu.memory_space<vmem>>, vector<8x512xf32>
    %c0_1 = arith.constant 0 : index
    %c0_2 = arith.constant 0 : index
    %1 = vector.load %arg2[%c0_1, %c0_2] : memref<8x512xf32, #tpu.memory_space<vmem>>, vector<8x512xf32>
    %2 = arith.addf %0, %1 : vector<8x512xf32>
    %c0_3 = arith.constant 0 : index
    %c0_4 = arith.constant 0 : index
    %3 = vector.load %arg3[%c0_3, %c0_4] : memref<8x512xf32, #tpu.memory_space<vmem>>, vector<8x512xf32>
    tpu.vector_store %arg3[%c0_3, %c0_4], %2 {strides = array<i32>} : memref<8x512xf32, #tpu.memory_space<vmem>>, vector<8x512xf32>,
    return
  }
  func.func @transform_0(%arg0: i32) -> (i32, i32) {
    %c0_i32 = arith.constant 0 : i32
    %c0_i32_0 = arith.constant 0 : i32
    return %arg0, %c0_i32 : i32, i32
  }
  func.func @transform_1(%arg0: i32) -> (i32, i32) {
    %c0_i32 = arith.constant 0 : i32
    %c0_i32_0 = arith.constant 0 : i32
    return %arg0, %c0_i32 : i32, i32
  }
  func.func @transform_2(%arg0: i32) -> (i32, i32) {
    %c0_i32 = arith.constant 0 : i32
    %c0_i32_0 = arith.constant 0 : i32
    return %arg0, %c0_i32 : i32, i32
  }
}

module attributes {stable_mosaic.version = 11 : i64} {
  func.func @_conv_mm_kernel(%arg0: i32, %arg1: i32, %arg2: i32, %arg3: memref<128x128xbf16, #tpu.memory_space<vmem>>, %arg4: memref<128x128xbf16, #tpu.memory_space<vmem>>, %arg5: memref<1x128xf32, #tpu.memory_space<vmem>>, %arg6: memref<1x128xf32, #tpu.memory_space<vmem>>, %arg7: memref<128x128xf32, #tpu.memory_space<vmem>>, %arg8: memref<128x128xf32, #tpu.memory_space<vmem>>) attributes {dimension_semantics = [#tpu.dimension_semantics<parallel>, #tpu.dimension_semantics<parallel>, #tpu.dimension_semantics<arbitrary>], iteration_bounds = array<i64: 1, 1, 1>, scalar_prefetch = 0 : i64, scratch_operands = 1 : i64, tpu.core_type = #tpu.core_type<tc>, window_params = [{transform_indices = @transform_0, window_bounds = array<i64: 128, 128>}, {transform_indices = @transform_1, window_bounds = array<i64: 128, 128>}, {transform_indices = @transform_2, window_bounds = array<i64: 1, 128>}, {transform_indices = @transform_3, window_bounds = array<i64: 1, 128>}, {transform_indices = @transform_4, window_bounds = array<i64: 128, 128>}]} {
    %c0_i32 = arith.constant 0 : i32
    %0 = arith.cmpi eq, %arg2, %c0_i32 : i32
    %1 = arith.extui %0 : i1 to i32
    %c0_i32_0 = arith.constant 0 : i32
    %2 = arith.cmpi ne, %1, %c0_i32_0 : i32
    scf.if %2 {
      %cst_10 = arith.constant 0.000000e+00 : f32
      %12 = vector.broadcast %cst_10 : f32 to vector<128x128xf32>
      %c0_11 = arith.constant 0 : index
      %c0_12 = arith.constant 0 : index
      %13 = vector.load %arg8[%c0_11, %c0_12] : memref<128x128xf32, #tpu.memory_space<vmem>>, vector<128x128xf32>
      tpu.vector_store %arg8[%c0_11, %c0_12], %12 {strides = array<i32>} : memref<128x128xf32, #tpu.memory_space<vmem>>, vector<128x128xf32>,
    } else {
    }
    %c0 = arith.constant 0 : index
    %c0_1 = arith.constant 0 : index
    %3 = vector.load %arg8[%c0, %c0_1] : memref<128x128xf32, #tpu.memory_space<vmem>>, vector<128x128xf32>
    %c0_2 = arith.constant 0 : index
    %c0_3 = arith.constant 0 : index
    %4 = vector.load %arg3[%c0_2, %c0_3] : memref<128x128xbf16, #tpu.memory_space<vmem>>, vector<128x128xbf16>
    %c0_4 = arith.constant 0 : index
    %c0_5 = arith.constant 0 : index
    %5 = vector.load %arg4[%c0_4, %c0_5] : memref<128x128xbf16, #tpu.memory_space<vmem>>, vector<128x128xbf16>
    %cst = arith.constant dense<0.000000e+00> : vector<128x128xf32>
    %6 = tpu.matmul %4, %5, %cst {dimension_numbers = #tpu.dot_dimension_numbers<[1], [0], [0], [1], [0, 0, 1, 1], [], []>} : vector<128x128xbf16>, vector<128x128xbf16>, vector<128x128xf32> -> vector<128x128xf32>
    %7 = arith.addf %3, %6 : vector<128x128xf32>
    %c0_6 = arith.constant 0 : index
    %c0_7 = arith.constant 0 : index
    %8 = vector.load %arg8[%c0_6, %c0_7] : memref<128x128xf32, #tpu.memory_space<vmem>>, vector<128x128xf32>
    tpu.vector_store %arg8[%c0_6, %c0_7], %7 {strides = array<i32>} : memref<128x128xf32, #tpu.memory_space<vmem>>, vector<128x128xf32>,
    %c0_i32_8 = arith.constant 0 : i32
    %9 = arith.cmpi eq, %arg2, %c0_i32_8 : i32
    %10 = arith.extui %9 : i1 to i32
    %c0_i32_9 = arith.constant 0 : i32
    %11 = arith.cmpi ne, %10, %c0_i32_9 : i32
    scf.if %11 {
      %c0_10 = arith.constant 0 : index
      %c0_11 = arith.constant 0 : index
      %12 = vector.load %arg8[%c0_10, %c0_11] : memref<128x128xf32, #tpu.memory_space<vmem>>, vector<128x128xf32>
      %c0_12 = arith.constant 0 : index
      %c0_13 = arith.constant 0 : index
      %13 = vector.load %arg5[%c0_12, %c0_13] : memref<1x128xf32, #tpu.memory_space<vmem>>, vector<1x128xf32>
      %14 = vector.broadcast %13 : vector<1x128xf32> to vector<128x128xf32>
      %15 = arith.mulf %12, %14 : vector<128x128xf32>
      %c0_14 = arith.constant 0 : index
      %c0_15 = arith.constant 0 : index
      %16 = vector.load %arg6[%c0_14, %c0_15] : memref<1x128xf32, #tpu.memory_space<vmem>>, vector<1x128xf32>
      %17 = vector.broadcast %16 : vector<1x128xf32> to vector<128x128xf32>
      %18 = arith.addf %15, %17 : vector<128x128xf32>
      %c0_16 = arith.constant 0 : index
      %c0_17 = arith.constant 0 : index
      %19 = vector.load %arg7[%c0_16, %c0_17] : memref<128x128xf32, #tpu.memory_space<vmem>>, vector<128x128xf32>
      tpu.vector_store %arg7[%c0_16, %c0_17], %18 {strides = array<i32>} : memref<128x128xf32, #tpu.memory_space<vmem>>, vector<128x128xf32>,
    } else {
    }
    return
  }
  func.func @transform_0(%arg0: i32, %arg1: i32, %arg2: i32) -> (i32, i32) {
    %c0_i32 = arith.constant 0 : i32
    return %arg0, %arg2 : i32, i32
  }
  func.func @transform_1(%arg0: i32, %arg1: i32, %arg2: i32) -> (i32, i32) {
    %c0_i32 = arith.constant 0 : i32
    return %arg2, %arg1 : i32, i32
  }
  func.func @transform_2(%arg0: i32, %arg1: i32, %arg2: i32) -> (i32, i32) {
    %c0_i32 = arith.constant 0 : i32
    %c0_i32_0 = arith.constant 0 : i32
    return %c0_i32, %arg1 : i32, i32
  }
  func.func @transform_3(%arg0: i32, %arg1: i32, %arg2: i32) -> (i32, i32) {
    %c0_i32 = arith.constant 0 : i32
    %c0_i32_0 = arith.constant 0 : i32
    return %c0_i32, %arg1 : i32, i32
  }
  func.func @transform_4(%arg0: i32, %arg1: i32, %arg2: i32) -> (i32, i32) {
    %c0_i32 = arith.constant 0 : i32
    return %arg0, %arg1 : i32, i32
  }
}

module attributes {stable_mosaic.version = 11 : i64} {
  func.func @_yolo_kernel(%arg0: i32, %arg1: i32, %arg2: memref<1x1x8x8x9xf32, #tpu.memory_space<vmem>>, %arg3: memref<1x1x8x8x9xf32, #tpu.memory_space<vmem>>) attributes {dimension_semantics = [#tpu.dimension_semantics<parallel>, #tpu.dimension_semantics<parallel>], iteration_bounds = array<i64: 2, 3>, scalar_prefetch = 0 : i64, scratch_operands = 0 : i64, tpu.core_type = #tpu.core_type<tc>, window_params = [{transform_indices = @transform_0, window_bounds = array<i64: 1, 1, 8, 8, 9>}, {transform_indices = @transform_1, window_bounds = array<i64: 1, 1, 8, 8, 9>}]} {
    %c0 = arith.constant 0 : index
    %c0_0 = arith.constant 0 : index
    %c0_1 = arith.constant 0 : index
    %c0_2 = arith.constant 0 : index
    %c0_3 = arith.constant 0 : index
    %0 = vector.load %arg2[%c0, %c0_0, %c0_1, %c0_2, %c0_3] : memref<1x1x8x8x9xf32, #tpu.memory_space<vmem>>, vector<1x1x8x8x9xf32>
    %1 = vector.shape_cast %0 : vector<1x1x8x8x9xf32> to vector<8x8x9xf32>
    %2 = tpu.iota {dimensions = array<i32: 0>} : vector<8x8x9xi32>
    %3 = arith.sitofp %2 : vector<8x8x9xi32> to vector<8x8x9xf32>
    %4 = tpu.iota {dimensions = array<i32: 1>} : vector<8x8x9xi32>
    %5 = arith.sitofp %4 : vector<8x8x9xi32> to vector<8x8x9xf32>
    %6 = tpu.iota {dimensions = array<i32: 2>} : vector<8x8x9xi32>
    %c1_i32 = arith.constant 1 : i32
    %7 = arith.cmpi eq, %arg1, %c1_i32 : i32
    %cst = arith.constant 8.000000e+00 : f32
    %cst_4 = arith.constant 5.000000e+00 : f32
    %8 = arith.select %7, %cst, %cst_4 : f32
    %c1_i32_5 = arith.constant 1 : i32
    %9 = arith.cmpi eq, %arg1, %c1_i32_5 : i32
    %cst_6 = arith.constant 1.500000e+01 : f32
    %cst_7 = arith.constant 6.500000e+00 : f32
    %10 = arith.select %9, %cst_6, %cst_7 : f32
    %c2_i32 = arith.constant 2 : i32
    %11 = arith.cmpi eq, %arg1, %c2_i32 : i32
    %cst_8 = arith.constant 1.650000e+01 : f32
    %12 = arith.select %11, %cst_8, %8 : f32
    %c2_i32_9 = arith.constant 2 : i32
    %13 = arith.cmpi eq, %arg1, %c2_i32_9 : i32
    %cst_10 = arith.constant 1.150000e+01 : f32
    %14 = arith.select %13, %cst_10, %10 : f32
    %c2_i32_11 = arith.constant 2 : i32
    %15 = vector.broadcast %c2_i32_11 : i32 to vector<8x8x9xi32>
    %16 = arith.cmpi slt, %6, %15 : vector<8x8x9xi32>
    %c2_i32_12 = arith.constant 2 : i32
    %17 = vector.broadcast %c2_i32_12 : i32 to vector<8x8x9xi32>
    %18 = arith.cmpi sge, %6, %17 : vector<8x8x9xi32>
    %c4_i32 = arith.constant 4 : i32
    %19 = vector.broadcast %c4_i32 : i32 to vector<8x8x9xi32>
    %20 = arith.cmpi slt, %6, %19 : vector<8x8x9xi32>
    %21 = arith.andi %18, %20 : vector<8x8x9xi1>
    %22 = arith.negf %1 : vector<8x8x9xf32>
    %23 = math.exp %22 : vector<8x8x9xf32>
    %cst_13 = arith.constant 1.000000e+00 : f32
    %24 = vector.broadcast %cst_13 : f32 to vector<8x8x9xf32>
    %25 = arith.addf %24, %23 : vector<8x8x9xf32>
    %26 = arith.divf %24, %25 : vector<8x8x9xf32>
    %cst_14 = arith.constant 0.000000e+00 : f32
    %27 = vector.broadcast %cst_14 : f32 to vector<8x8x9xf32>
    %28 = arith.select %21, %1, %27 : vector<8x8x9xi1>, vector<8x8x9xf32>
    %29 = math.exp %28 : vector<8x8x9xf32>
    %c0_i32 = arith.constant 0 : i32
    %30 = vector.broadcast %c0_i32 : i32 to vector<8x8x9xi32>
    %31 = arith.cmpi eq, %6, %30 : vector<8x8x9xi32>
    %32 = arith.select %31, %5, %3 : vector<8x8x9xi1>, vector<8x8x9xf32>
    %c2_i32_15 = arith.constant 2 : i32
    %33 = vector.broadcast %c2_i32_15 : i32 to vector<8x8x9xi32>
    %34 = arith.cmpi eq, %6, %33 : vector<8x8x9xi32>
    %35 = vector.broadcast %12 : f32 to vector<8x8x9xf32>
    %36 = vector.broadcast %14 : f32 to vector<8x8x9xf32>
    %37 = arith.select %34, %35, %36 : vector<8x8x9xi1>, vector<8x8x9xf32>
    %38 = arith.addf %26, %32 : vector<8x8x9xf32>
    %cst_16 = arith.constant 2.000000e+00 : f32
    %39 = vector.broadcast %cst_16 : f32 to vector<8x8x9xf32>
    %40 = arith.mulf %38, %39 : vector<8x8x9xf32>
    %cst_17 = arith.constant 2.000000e+00 : f32
    %41 = vector.broadcast %cst_17 : f32 to vector<8x8x9xf32>
    %42 = arith.mulf %37, %41 : vector<8x8x9xf32>
    %43 = arith.mulf %29, %42 : vector<8x8x9xf32>
    %44 = arith.select %21, %43, %26 : vector<8x8x9xi1>, vector<8x8x9xf32>
    %45 = arith.select %16, %40, %44 : vector<8x8x9xi1>, vector<8x8x9xf32>
    %c0_18 = arith.constant 0 : index
    %c0_19 = arith.constant 0 : index
    %c0_20 = arith.constant 0 : index
    %c0_21 = arith.constant 0 : index
    %c0_22 = arith.constant 0 : index
    %46 = vector.load %arg3[%c0_18, %c0_19, %c0_20, %c0_21, %c0_22] : memref<1x1x8x8x9xf32, #tpu.memory_space<vmem>>, vector<1x1x8x8x9xf32>
    %47 = vector.shape_cast %46 : vector<1x1x8x8x9xf32> to vector<8x8x9xf32>
    %48 = vector.shape_cast %45 : vector<8x8x9xf32> to vector<1x1x8x8x9xf32>
    tpu.vector_store %arg3[%c0_18, %c0_19, %c0_20, %c0_21, %c0_22], %48 {strides = array<i32>} : memref<1x1x8x8x9xf32, #tpu.memory_space<vmem>>, vector<1x1x8x8x9xf32>,
    return
  }
  func.func @transform_0(%arg0: i32, %arg1: i32) -> (i32, i32, i32, i32, i32) {
    %c0_i32 = arith.constant 0 : i32
    %c0_i32_0 = arith.constant 0 : i32
    %c0_i32_1 = arith.constant 0 : i32
    %c0_i32_2 = arith.constant 0 : i32
    return %arg0, %arg1, %c0_i32, %c0_i32_0, %c0_i32_1 : i32, i32, i32, i32, i32
  }
  func.func @transform_1(%arg0: i32, %arg1: i32) -> (i32, i32, i32, i32, i32) {
    %c0_i32 = arith.constant 0 : i32
    %c0_i32_0 = arith.constant 0 : i32
    %c0_i32_1 = arith.constant 0 : i32
    %c0_i32_2 = arith.constant 0 : i32
    return %arg0, %arg1, %c0_i32, %c0_i32_0, %c0_i32_1 : i32, i32, i32, i32, i32
  }
}

module attributes {stable_mosaic.version = 11 : i64} {
  func.func @_conv_mm_kernel(%arg0: i32, %arg1: i32, %arg2: i32, %arg3: memref<256x128xbf16, #tpu.memory_space<vmem>>, %arg4: memref<128x128xbf16, #tpu.memory_space<vmem>>, %arg5: memref<1x128xf32, #tpu.memory_space<vmem>>, %arg6: memref<1x128xf32, #tpu.memory_space<vmem>>, %arg7: memref<256x128xf32, #tpu.memory_space<vmem>>, %arg8: memref<256x128xf32, #tpu.memory_space<vmem>>) attributes {dimension_semantics = [#tpu.dimension_semantics<parallel>, #tpu.dimension_semantics<parallel>, #tpu.dimension_semantics<arbitrary>], iteration_bounds = array<i64: 2, 1, 2>, scalar_prefetch = 0 : i64, scratch_operands = 1 : i64, tpu.core_type = #tpu.core_type<tc>, window_params = [{transform_indices = @transform_0, window_bounds = array<i64: 256, 128>}, {transform_indices = @transform_1, window_bounds = array<i64: 128, 128>}, {transform_indices = @transform_2, window_bounds = array<i64: 1, 128>}, {transform_indices = @transform_3, window_bounds = array<i64: 1, 128>}, {transform_indices = @transform_4, window_bounds = array<i64: 256, 128>}]} {
    %c0_i32 = arith.constant 0 : i32
    %0 = arith.cmpi eq, %arg2, %c0_i32 : i32
    %1 = arith.extui %0 : i1 to i32
    %c0_i32_0 = arith.constant 0 : i32
    %2 = arith.cmpi ne, %1, %c0_i32_0 : i32
    scf.if %2 {
      %cst_9 = arith.constant 0.000000e+00 : f32
      %12 = vector.broadcast %cst_9 : f32 to vector<256x128xf32>
      %c0_10 = arith.constant 0 : index
      %c0_11 = arith.constant 0 : index
      %13 = vector.load %arg8[%c0_10, %c0_11] : memref<256x128xf32, #tpu.memory_space<vmem>>, vector<256x128xf32>
      tpu.vector_store %arg8[%c0_10, %c0_11], %12 {strides = array<i32>} : memref<256x128xf32, #tpu.memory_space<vmem>>, vector<256x128xf32>,
    } else {
    }
    %c0 = arith.constant 0 : index
    %c0_1 = arith.constant 0 : index
    %3 = vector.load %arg8[%c0, %c0_1] : memref<256x128xf32, #tpu.memory_space<vmem>>, vector<256x128xf32>
    %c0_2 = arith.constant 0 : index
    %c0_3 = arith.constant 0 : index
    %4 = vector.load %arg3[%c0_2, %c0_3] : memref<256x128xbf16, #tpu.memory_space<vmem>>, vector<256x128xbf16>
    %c0_4 = arith.constant 0 : index
    %c0_5 = arith.constant 0 : index
    %5 = vector.load %arg4[%c0_4, %c0_5] : memref<128x128xbf16, #tpu.memory_space<vmem>>, vector<128x128xbf16>
    %cst = arith.constant dense<0.000000e+00> : vector<256x128xf32>
    %6 = tpu.matmul %4, %5, %cst {dimension_numbers = #tpu.dot_dimension_numbers<[1], [0], [0], [1], [0, 0, 1, 1], [], []>} : vector<256x128xbf16>, vector<128x128xbf16>, vector<256x128xf32> -> vector<256x128xf32>
    %7 = arith.addf %3, %6 : vector<256x128xf32>
    %c0_6 = arith.constant 0 : index
    %c0_7 = arith.constant 0 : index
    %8 = vector.load %arg8[%c0_6, %c0_7] : memref<256x128xf32, #tpu.memory_space<vmem>>, vector<256x128xf32>
    tpu.vector_store %arg8[%c0_6, %c0_7], %7 {strides = array<i32>} : memref<256x128xf32, #tpu.memory_space<vmem>>, vector<256x128xf32>,
    %c1_i32 = arith.constant 1 : i32
    %9 = arith.cmpi eq, %arg2, %c1_i32 : i32
    %10 = arith.extui %9 : i1 to i32
    %c0_i32_8 = arith.constant 0 : i32
    %11 = arith.cmpi ne, %10, %c0_i32_8 : i32
    scf.if %11 {
      %c0_9 = arith.constant 0 : index
      %c0_10 = arith.constant 0 : index
      %12 = vector.load %arg8[%c0_9, %c0_10] : memref<256x128xf32, #tpu.memory_space<vmem>>, vector<256x128xf32>
      %c0_11 = arith.constant 0 : index
      %c0_12 = arith.constant 0 : index
      %13 = vector.load %arg5[%c0_11, %c0_12] : memref<1x128xf32, #tpu.memory_space<vmem>>, vector<1x128xf32>
      %14 = vector.broadcast %13 : vector<1x128xf32> to vector<256x128xf32>
      %15 = arith.mulf %12, %14 : vector<256x128xf32>
      %c0_13 = arith.constant 0 : index
      %c0_14 = arith.constant 0 : index
      %16 = vector.load %arg6[%c0_13, %c0_14] : memref<1x128xf32, #tpu.memory_space<vmem>>, vector<1x128xf32>
      %17 = vector.broadcast %16 : vector<1x128xf32> to vector<256x128xf32>
      %18 = arith.addf %15, %17 : vector<256x128xf32>
      %c0_15 = arith.constant 0 : index
      %c0_16 = arith.constant 0 : index
      %19 = vector.load %arg7[%c0_15, %c0_16] : memref<256x128xf32, #tpu.memory_space<vmem>>, vector<256x128xf32>
      tpu.vector_store %arg7[%c0_15, %c0_16], %18 {strides = array<i32>} : memref<256x128xf32, #tpu.memory_space<vmem>>, vector<256x128xf32>,
    } else {
    }
    return
  }
  func.func @transform_0(%arg0: i32, %arg1: i32, %arg2: i32) -> (i32, i32) {
    %c0_i32 = arith.constant 0 : i32
    return %arg0, %arg2 : i32, i32
  }
  func.func @transform_1(%arg0: i32, %arg1: i32, %arg2: i32) -> (i32, i32) {
    %c0_i32 = arith.constant 0 : i32
    return %arg2, %arg1 : i32, i32
  }
  func.func @transform_2(%arg0: i32, %arg1: i32, %arg2: i32) -> (i32, i32) {
    %c0_i32 = arith.constant 0 : i32
    %c0_i32_0 = arith.constant 0 : i32
    return %c0_i32, %arg1 : i32, i32
  }
  func.func @transform_3(%arg0: i32, %arg1: i32, %arg2: i32) -> (i32, i32) {
    %c0_i32 = arith.constant 0 : i32
    %c0_i32_0 = arith.constant 0 : i32
    return %c0_i32, %arg1 : i32, i32
  }
  func.func @transform_4(%arg0: i32, %arg1: i32, %arg2: i32) -> (i32, i32) {
    %c0_i32 = arith.constant 0 : i32
    return %arg0, %arg1 : i32, i32
  }
}

module attributes {stable_mosaic.version = 11 : i64} {
  func.func @_yolo_kernel(%arg0: i32, %arg1: i32, %arg2: memref<1x1x16x16x9xf32, #tpu.memory_space<vmem>>, %arg3: memref<1x1x16x16x9xf32, #tpu.memory_space<vmem>>) attributes {dimension_semantics = [#tpu.dimension_semantics<parallel>, #tpu.dimension_semantics<parallel>], iteration_bounds = array<i64: 2, 3>, scalar_prefetch = 0 : i64, scratch_operands = 0 : i64, tpu.core_type = #tpu.core_type<tc>, window_params = [{transform_indices = @transform_0, window_bounds = array<i64: 1, 1, 16, 16, 9>}, {transform_indices = @transform_1, window_bounds = array<i64: 1, 1, 16, 16, 9>}]} {
    %c0 = arith.constant 0 : index
    %c0_0 = arith.constant 0 : index
    %c0_1 = arith.constant 0 : index
    %c0_2 = arith.constant 0 : index
    %c0_3 = arith.constant 0 : index
    %0 = vector.load %arg2[%c0, %c0_0, %c0_1, %c0_2, %c0_3] : memref<1x1x16x16x9xf32, #tpu.memory_space<vmem>>, vector<1x1x16x16x9xf32>
    %1 = vector.shape_cast %0 : vector<1x1x16x16x9xf32> to vector<16x16x9xf32>
    %2 = tpu.iota {dimensions = array<i32: 0>} : vector<16x16x9xi32>
    %3 = arith.sitofp %2 : vector<16x16x9xi32> to vector<16x16x9xf32>
    %4 = tpu.iota {dimensions = array<i32: 1>} : vector<16x16x9xi32>
    %5 = arith.sitofp %4 : vector<16x16x9xi32> to vector<16x16x9xf32>
    %6 = tpu.iota {dimensions = array<i32: 2>} : vector<16x16x9xi32>
    %c1_i32 = arith.constant 1 : i32
    %7 = arith.cmpi eq, %arg1, %c1_i32 : i32
    %cst = arith.constant 6.200000e+01 : f32
    %cst_4 = arith.constant 3.000000e+01 : f32
    %8 = arith.select %7, %cst, %cst_4 : f32
    %c1_i32_5 = arith.constant 1 : i32
    %9 = arith.cmpi eq, %arg1, %c1_i32_5 : i32
    %cst_6 = arith.constant 4.500000e+01 : f32
    %cst_7 = arith.constant 6.100000e+01 : f32
    %10 = arith.select %9, %cst_6, %cst_7 : f32
    %c2_i32 = arith.constant 2 : i32
    %11 = arith.cmpi eq, %arg1, %c2_i32 : i32
    %cst_8 = arith.constant 5.900000e+01 : f32
    %12 = arith.select %11, %cst_8, %8 : f32
    %c2_i32_9 = arith.constant 2 : i32
    %13 = arith.cmpi eq, %arg1, %c2_i32_9 : i32
    %cst_10 = arith.constant 1.190000e+02 : f32
    %14 = arith.select %13, %cst_10, %10 : f32
    %c2_i32_11 = arith.constant 2 : i32
    %15 = vector.broadcast %c2_i32_11 : i32 to vector<16x16x9xi32>
    %16 = arith.cmpi slt, %6, %15 : vector<16x16x9xi32>
    %c2_i32_12 = arith.constant 2 : i32
    %17 = vector.broadcast %c2_i32_12 : i32 to vector<16x16x9xi32>
    %18 = arith.cmpi sge, %6, %17 : vector<16x16x9xi32>
    %c4_i32 = arith.constant 4 : i32
    %19 = vector.broadcast %c4_i32 : i32 to vector<16x16x9xi32>
    %20 = arith.cmpi slt, %6, %19 : vector<16x16x9xi32>
    %21 = arith.andi %18, %20 : vector<16x16x9xi1>
    %22 = arith.negf %1 : vector<16x16x9xf32>
    %23 = math.exp %22 : vector<16x16x9xf32>
    %cst_13 = arith.constant 1.000000e+00 : f32
    %24 = vector.broadcast %cst_13 : f32 to vector<16x16x9xf32>
    %25 = arith.addf %24, %23 : vector<16x16x9xf32>
    %26 = arith.divf %24, %25 : vector<16x16x9xf32>
    %cst_14 = arith.constant 0.000000e+00 : f32
    %27 = vector.broadcast %cst_14 : f32 to vector<16x16x9xf32>
    %28 = arith.select %21, %1, %27 : vector<16x16x9xi1>, vector<16x16x9xf32>
    %29 = math.exp %28 : vector<16x16x9xf32>
    %c0_i32 = arith.constant 0 : i32
    %30 = vector.broadcast %c0_i32 : i32 to vector<16x16x9xi32>
    %31 = arith.cmpi eq, %6, %30 : vector<16x16x9xi32>
    %32 = arith.select %31, %5, %3 : vector<16x16x9xi1>, vector<16x16x9xf32>
    %c2_i32_15 = arith.constant 2 : i32
    %33 = vector.broadcast %c2_i32_15 : i32 to vector<16x16x9xi32>
    %34 = arith.cmpi eq, %6, %33 : vector<16x16x9xi32>
    %35 = vector.broadcast %12 : f32 to vector<16x16x9xf32>
    %36 = vector.broadcast %14 : f32 to vector<16x16x9xf32>
    %37 = arith.select %34, %35, %36 : vector<16x16x9xi1>, vector<16x16x9xf32>
    %38 = arith.addf %26, %32 : vector<16x16x9xf32>
    %cst_16 = arith.constant 1.000000e+00 : f32
    %39 = vector.broadcast %cst_16 : f32 to vector<16x16x9xf32>
    %40 = arith.mulf %38, %39 : vector<16x16x9xf32>
    %cst_17 = arith.constant 1.000000e+00 : f32
    %41 = vector.broadcast %cst_17 : f32 to vector<16x16x9xf32>
    %42 = arith.mulf %37, %41 : vector<16x16x9xf32>
    %43 = arith.mulf %29, %42 : vector<16x16x9xf32>
    %44 = arith.select %21, %43, %26 : vector<16x16x9xi1>, vector<16x16x9xf32>
    %45 = arith.select %16, %40, %44 : vector<16x16x9xi1>, vector<16x16x9xf32>
    %c0_18 = arith.constant 0 : index
    %c0_19 = arith.constant 0 : index
    %c0_20 = arith.constant 0 : index
    %c0_21 = arith.constant 0 : index
    %c0_22 = arith.constant 0 : index
    %46 = vector.load %arg3[%c0_18, %c0_19, %c0_20, %c0_21, %c0_22] : memref<1x1x16x16x9xf32, #tpu.memory_space<vmem>>, vector<1x1x16x16x9xf32>
    %47 = vector.shape_cast %46 : vector<1x1x16x16x9xf32> to vector<16x16x9xf32>
    %48 = vector.shape_cast %45 : vector<16x16x9xf32> to vector<1x1x16x16x9xf32>
    tpu.vector_store %arg3[%c0_18, %c0_19, %c0_20, %c0_21, %c0_22], %48 {strides = array<i32>} : memref<1x1x16x16x9xf32, #tpu.memory_space<vmem>>, vector<1x1x16x16x9xf32>,
    return
  }
  func.func @transform_0(%arg0: i32, %arg1: i32) -> (i32, i32, i32, i32, i32) {
    %c0_i32 = arith.constant 0 : i32
    %c0_i32_0 = arith.constant 0 : i32
    %c0_i32_1 = arith.constant 0 : i32
    %c0_i32_2 = arith.constant 0 : i32
    return %arg0, %arg1, %c0_i32, %c0_i32_0, %c0_i32_1 : i32, i32, i32, i32, i32
  }
  func.func @transform_1(%arg0: i32, %arg1: i32) -> (i32, i32, i32, i32, i32) {
    %c0_i32 = arith.constant 0 : i32
    %c0_i32_0 = arith.constant 0 : i32
    %c0_i32_1 = arith.constant 0 : i32
    %c0_i32_2 = arith.constant 0 : i32
    return %arg0, %arg1, %c0_i32, %c0_i32_0, %c0_i32_1 : i32, i32, i32, i32, i32
  }
}

</mosaic_0001>

<llo_original>
// kernel: _lambda_.9
$region0: #{_lambda_.9}
  #allocation0 [shape = 'u32[]', space=smem, size = 0x4, offset = 0x4, fixed_abs, tag = 'smem constant byte address 0x4 - core index']
  #allocation1 [shape = 'u32[144,128]{1,0:T(1,128)}', space=vmem, size = 0x12000, scoped, tag = 'internal scratch']
  #allocation2 [shape = 'f32[256,128]{1,0:T(8,128)}', space=vmem, size = 0x20000, scoped, tag = 'scratch operand']
  %s0 = inlined_call_operand.vmem [shape: bf16[512,128], index: 0, kind: input, shape index: {}]
  %s1 = inlined_call_operand.vmem [shape: bf16[128,128], index: 1, kind: input, shape index: {}]
  %s2 = inlined_call_operand.vmem [shape: f32[1,128], index: 2, kind: input, shape index: {}]
  %s3 = inlined_call_operand.vmem [shape: f32[1,128], index: 3, kind: input, shape index: {}]
  %s4 = inlined_call_operand.vmem [shape: f32[512,128], index: 4, kind: output, shape index: {}]
  %s5 = sld [smem:[#allocation0]]
  $region57: #{_lambda_.9} parent=0
    _
  %s7 = ssub.s32 1, %s5
  %s8 = scalar_select 0, %s7, %s5
  loop: start=0, step=1, limit=4
  $region2: #{_lambda_.9} parent=0 // loop_pre_header
    _
  $region3: #{_lambda_.9} parent=0 // loop_header
    %s10 = sphi 0, %s14
    %p11 = scmp.ge.s32.totalorder %s10, 4
    %s17 = sphi 0, %s36
    %s18 = sphi 0, %s32
    %s19 = sphi 0, %s28
    %s20 = sphi 0, %s17
    %s21 = sphi 0, %s18
    %s22 = sphi 0, %s19
    %s23 = sphi 0, %s20
    %s24 = sphi 0, %s21
    %s25 = sphi 0, %s22
    %s41 = sphi 0, %s43
    %s44 = sphi 0, %s41
    %s45 = sphi 0, %s44
    %s61 = sphi 0, %s45
    %s69 = sphi 0, %s71
    %s72 = sphi 0, %s69
    %s73 = sphi 0, %s72
    %s89 = sphi 0, %s73
    %s95 = sphi 0, %s97
    %s98 = sphi 0, %s95
    %s99 = sphi 0, %s98
    %s115 = sphi 0, %s99
    %s121 = sphi 0, %s123
    %s124 = sphi 0, %s121
    %s125 = sphi 0, %s124
    %s141 = sphi 0, %s125
    %s149 = sphi 0, %s151
    %s152 = sphi 0, %s149
    %s153 = sphi 0, %s152
    %s169 = sphi 0, %s153
  $region4: #{_lambda_.9} parent=0 // loop_header_branch
    %13 = sbr.rel (%p11) target = $region8
  $region5: #{_lambda_.9} parent=0 // loop_body
    %s15 = ssub.s32 %s10, 1
    %s16 = ssub.s32 %s10, 2
    %s26 = sadd.s32 1, %s19
    %p27 = scmp.ge.s32.totalorder %s26, 1
    %s28 = scalar_select %p27, 0, %s26
    %s29 = sadd.s32 1, %s18
    %s30 = scalar_select %p27, %s29, %s18
    %p31 = scmp.ge.s32.totalorder %s30, 1
    %s32 = scalar_select %p31, 0, %s30
    %s33 = sadd.s32 1, %s17
    %s34 = scalar_select %p31, %s33, %s17
    %p35 = scmp.ge.s32.totalorder %s34, 2
    %s36 = scalar_select %p35, 0, %s34
    %s37 = ssub.s32 %s17, %s36
    %s38 = ssub.s32 %s19, %s28
    %s39 = sor.u32 %s37, %s38
    %p40 = scmp.eq.s32.totalorder %s39, 0
    %s42 = sadd.s32 %s41, 1
    %s43 = scalar_select %p40, %s41, %s42
    %p46 = pneg %p40
    %p47 = scmp.eq.s32.totalorder %s10, 1
    %p48 = por %p46, %p47
    %p49 = scmp.ne.s32.totalorder %s41, %s44
    %p50 = scmp.eq.s32.totalorder %s10, 0
    %p51 = por %p49, %p50
    %p52 = scmp.ne.s32.totalorder %s41, %s44
    %p53 = scmp.eq.s32.totalorder %s15, 1
    %p54 = por %p52, %p53
    %p55 = scmp.ne.s32.totalorder %s44, %s45
    %p56 = scmp.eq.s32.totalorder %s15, 0
    %p57 = por %p55, %p56
    %p58 = scmp.ne.s32.totalorder %s44, %s45
    %p59 = scmp.eq.s32.totalorder %s16, 1
    %p60 = por %p58, %p59
    %p62 = scmp.ne.s32.totalorder %s45, %s61
    %p63 = scmp.eq.s32.totalorder %s16, 0
    %p64 = por %p62, %p63
    %s65 = ssub.s32 %s19, %s28
    %s66 = ssub.s32 %s18, %s32
    %s67 = sor.u32 %s65, %s66
    %p68 = scmp.eq.s32.totalorder %s67, 0
    %s70 = sadd.s32 %s69, 1
    %s71 = scalar_select %p68, %s69, %s70
    %p74 = pneg %p68
    %p75 = scmp.eq.s32.totalorder %s10, 1
    %p76 = por %p74, %p75
    %p77 = scmp.ne.s32.totalorder %s69, %s72
    %p78 = scmp.eq.s32.totalorder %s10, 0
    %p79 = por %p77, %p78
    %p80 = scmp.ne.s32.totalorder %s69, %s72
    %p81 = scmp.eq.s32.totalorder %s15, 1
    %p82 = por %p80, %p81
    %p83 = scmp.ne.s32.totalorder %s72, %s73
    %p84 = scmp.eq.s32.totalorder %s15, 0
    %p85 = por %p83, %p84
    %p86 = scmp.ne.s32.totalorder %s72, %s73
    %p87 = scmp.eq.s32.totalorder %s16, 1
    %p88 = por %p86, %p87
    %p90 = scmp.ne.s32.totalorder %s73, %s89
    %p91 = scmp.eq.s32.totalorder %s16, 0
    %p92 = por %p90, %p91
    %s93 = ssub.s32 %s18, %s32
    %p94 = scmp.eq.s32.totalorder %s93, 0
    %s96 = sadd.s32 %s95, 1
    %s97 = scalar_select %p94, %s95, %s96
    %p100 = pneg %p94
    %p101 = scmp.eq.s32.totalorder %s10, 1
    %p102 = por %p100, %p101
    %p103 = scmp.ne.s32.totalorder %s95, %s98
    %p104 = scmp.eq.s32.totalorder %s10, 0
    %p105 = por %p103, %p104
    %p106 = scmp.ne.s32.totalorder %s95, %s98
    %p107 = scmp.eq.s32.totalorder %s15, 1
    %p108 = por %p106, %p107
    %p109 = scmp.ne.s32.totalorder %s98, %s99
    %p110 = scmp.eq.s32.totalorder %s15, 0
    %p111 = por %p109, %p110
    %p112 = scmp.ne.s32.totalorder %s98, %s99
    %p113 = scmp.eq.s32.totalorder %s16, 1
    %p114 = por %p112, %p113
    %p116 = scmp.ne.s32.totalorder %s99, %s115
    %p117 = scmp.eq.s32.totalorder %s16, 0
    %p118 = por %p116, %p117
    %s119 = ssub.s32 %s18, %s32
    %p120 = scmp.eq.s32.totalorder %s119, 0
    %s122 = sadd.s32 %s121, 1
    %s123 = scalar_select %p120, %s121, %s122
    %p126 = pneg %p120
    %p127 = scmp.eq.s32.totalorder %s10, 1
    %p128 = por %p126, %p127
    %p129 = scmp.ne.s32.totalorder %s121, %s124
    %p130 = scmp.eq.s32.totalorder %s10, 0
    %p131 = por %p129, %p130
    %p132 = scmp.ne.s32.totalorder %s121, %s124
    %p133 = scmp.eq.s32.totalorder %s15, 1
    %p134 = por %p132, %p133
    %p135 = scmp.ne.s32.totalorder %s124, %s125
    %p136 = scmp.eq.s32.totalorder %s15, 0
    %p137 = por %p135, %p136
    %p138 = scmp.ne.s32.totalorder %s124, %s125
    %p139 = scmp.eq.s32.totalorder %s16, 1
    %p140 = por %p138, %p139
    %p142 = scmp.ne.s32.totalorder %s125, %s141
    %p143 = scmp.eq.s32.totalorder %s16, 0
    %p144 = por %p142, %p143
    %s145 = ssub.s32 %s17, %s36
    %s146 = ssub.s32 %s18, %s32
    %s147 = sor.u32 %s145, %s146
    %p148 = scmp.eq.s32.totalorder %s147, 0
    %s150 = sadd.s32 %s149, 1
    %s151 = scalar_select %p148, %s149, %s150
    %p154 = pneg %p148
    %p155 = scmp.eq.s32.totalorder %s10, 1
    %p156 = por %p154, %p155
    %p157 = scmp.ne.s32.totalorder %s149, %s152
    %p158 = scmp.eq.s32.totalorder %s10, 0
    %p159 = por %p157, %p158
    %p160 = scmp.ne.s32.totalorder %s149, %s152
    %p161 = scmp.eq.s32.totalorder %s15, 1
    %p162 = por %p160, %p161
    %p163 = scmp.ne.s32.totalorder %s152, %s153
    %p164 = scmp.eq.s32.totalorder %s15, 0
    %p165 = por %p163, %p164
    %p166 = scmp.ne.s32.totalorder %s152, %s153
    %p167 = scmp.eq.s32.totalorder %s16, 1
    %p168 = por %p166, %p167
    %p170 = scmp.ne.s32.totalorder %s153, %s169
    %p171 = scmp.eq.s32.totalorder %s16, 0
    %p172 = por %p170, %p171
    %p173 = scmp.le.s32.totalorder 1, %s10
    %p174 = scmp.lt.s32.totalorder %s10, 3
    %p175 = pnand %p173, %p174
    %p176 = pneg %p175
    // Predicated region
    $region9: #{_lambda_.9} parent=5 // pred_check
      _
    $region10: #{_lambda_.9} parent=5 // pred_check_branch
      %178 = sbr.rel (%p175) target = $region12
    $region11: #{_lambda_.9} parent=5 // pred_region
      %s179 = ssub.s32 %s10, 1
      // Predicated region
      $region13: #{_lambda_.9} parent=11 // pred_check
        %p180 = pneg %p85
      $region14: #{_lambda_.9} parent=11 // pred_check_branch
        %182 = sbr.rel (%p180) target = $region16
      $region15: #{_lambda_.9} parent=11 // pred_region
        %s183 = smul.u32 16, %s22
        %p184 = scmp.lt.s32.totalorder %s183, 15
        %s185 = scalar_select %p184, %s183, 15
        %p186 = scmp.lt.s32.totalorder %s21, 0
        %s187 = scalar_select %p186, %s21, 0
        %s188 = sadd.s32 %s187, %s185
        %s189 = smul.addr %s188, 4
        %s190 = scalar_lea.vmem %s1, %s189
        %s191 = smul.u32 16, %s22
      $region16: #{_lambda_.9} parent=11 // pred_fallthru
        _
      // Predicated region
      $region17: #{_lambda_.9} parent=11 // pred_check
        %p192 = pneg %p111
      $region18: #{_lambda_.9} parent=11 // pred_check_branch
        %194 = sbr.rel (%p192) target = $region20
      $region19: #{_lambda_.9} parent=11 // pred_region
        %p195 = scmp.lt.s32.totalorder %s21, 0
        %s196 = scalar_select %p195, %s21, 0
        %s197 = scalar_lea.vmem %s2, %s196
      $region20: #{_lambda_.9} parent=11 // pred_fallthru
        _
      // Predicated region
      $region21: #{_lambda_.9} parent=11 // pred_check
        %p198 = pneg %p137
      $region22: #{_lambda_.9} parent=11 // pred_check_branch
        %200 = sbr.rel (%p198) target = $region24
      $region23: #{_lambda_.9} parent=11 // pred_region
        %p201 = scmp.lt.s32.totalorder %s21, 0
        %s202 = scalar_select %p201, %s21, 0
        %s203 = scalar_lea.vmem %s3, %s202
      $region24: #{_lambda_.9} parent=11 // pred_fallthru
        _
    $region12: #{_lambda_.9} parent=5 // pred_fallthru
      _
    %p204 = scmp.lt.s32.totalorder %s10, 2
    // Predicated region
    $region25: #{_lambda_.9} parent=5 // pred_check
      %p205 = pneg %p204
    $region26: #{_lambda_.9} parent=5 // pred_check_branch
      %207 = sbr.rel (%p205) target = $region28
    $region27: #{_lambda_.9} parent=5 // pred_region
      // Predicated region
      $region29: #{_lambda_.9} parent=27 // pred_check
        %p208 = pneg %p51
      $region30: #{_lambda_.9} parent=27 // pred_check_branch
        %210 = sbr.rel (%p208) target = $region32
      $region31: #{_lambda_.9} parent=27 // pred_region
        %s211 = smul.u32 32, %s17
        %p212 = scmp.lt.s32.totalorder %s211, 63
        %s213 = scalar_select %p212, %s211, 63
        %p214 = scmp.lt.s32.totalorder %s19, 0
        %s215 = scalar_select %p214, %s19, 0
        %s216 = sadd.s32 %s215, %s213
        %s217 = smul.addr %s216, 4
        %s218 = scalar_lea.vmem %s0, %s217
        %s219 = smul.u32 32, %s17
      $region32: #{_lambda_.9} parent=27 // pred_fallthru
        _
    $region28: #{_lambda_.9} parent=5 // pred_fallthru
      _
    %p220 = scmp.le.s32.totalorder 1, %s10
    %p221 = scmp.lt.s32.totalorder %s10, 3
    %p222 = pnand %p220, %p221
    %p223 = pneg %p222
    // Predicated region
    $region33: #{_lambda_.9} parent=5 // pred_check
      _
    $region34: #{_lambda_.9} parent=5 // pred_check_branch
      %225 = sbr.rel (%p222) target = $region36
    $region35: #{_lambda_.9} parent=5 // pred_region
      %s226 = ssub.s32 %s10, 1
      %s227 = smul.u32 32, %s20
      %p228 = scmp.lt.s32.totalorder %s227, 63
      %s229 = scalar_select %p228, %s227, 63
      %p230 = scmp.lt.s32.totalorder %s22, 0
      %s231 = scalar_select %p230, %s22, 0
      %s232 = sadd.s32 %s231, %s229
      %s233 = smul.addr %s232, 4
      %s234 = scalar_lea.vmem %s0, %s233
      %p235 = pneg %p57
      %p236 = pneg %p54
      %s237 = smul.u32 16, %s22
      %p238 = scmp.lt.s32.totalorder %s237, 15
      %s239 = scalar_select %p238, %s237, 15
      %p240 = scmp.lt.s32.totalorder %s21, 0
      %s241 = scalar_select %p240, %s21, 0
      %s242 = sadd.s32 %s241, %s239
      %s243 = smul.addr %s242, 4
      %s244 = scalar_lea.vmem %s1, %s243
      %p245 = pneg %p85
      %p246 = pneg %p82
      %p247 = scmp.lt.s32.totalorder %s21, 0
      %s248 = scalar_select %p247, %s21, 0
      %s249 = scalar_lea.vmem %s2, %s248
      %p250 = pneg %p111
      %p251 = pneg %p108
      %p252 = scmp.lt.s32.totalorder %s21, 0
      %s253 = scalar_select %p252, %s21, 0
      %s254 = scalar_lea.vmem %s3, %s253
      %p255 = pneg %p137
      %p256 = pneg %p134
      %p257 = pneg %p165
      %p258 = pneg %p162
      %s259 = smul.u32 32, %s20
      %p260 = scmp.lt.s32.totalorder %s259, 63
      %s261 = scalar_select %p260, %s259, 63
      %p262 = scmp.lt.s32.totalorder %s21, 0
      %s263 = scalar_select %p262, %s21, 0
      %s264 = sadd.s32 %s263, %s261
      %s265 = smul.addr %s264, 8
      %s266 = scalar_lea.vmem %s4, %s265
      %s267 = smul.u32 32, %s20
      %p268 = scmp.lt.s32.totalorder %s267, 63
      %s269 = scalar_select %p268, %s267, 63
      %p270 = scmp.lt.s32.totalorder %s22, 0
      %s271 = scalar_select %p270, %s22, 0
      %s272 = sadd.s32 %s271, %s269
      %s273 = smul.addr %s272, 4
      %s274 = scalar_lea.vmem %s0, %s273
      %s275 = smul.u32 32, %s20
      %s276 = smul.u32 16, %s22
      %p277 = scmp.lt.s32.totalorder %s276, 15
      %s278 = scalar_select %p277, %s276, 15
      %p279 = scmp.lt.s32.totalorder %s21, 0
      %s280 = scalar_select %p279, %s21, 0
      %s281 = sadd.s32 %s280, %s278
      %s282 = smul.addr %s281, 4
      %s283 = scalar_lea.vmem %s1, %s282
      %s284 = smul.u32 16, %s22
      %p285 = scmp.lt.s32.totalorder %s21, 0
      %s286 = scalar_select %p285, %s21, 0
      %s287 = scalar_lea.vmem %s2, %s286
      %p288 = scmp.lt.s32.totalorder %s21, 0
      %s289 = scalar_select %p288, %s21, 0
      %s290 = scalar_lea.vmem %s3, %s289
      %s291 = smul.u32 32, %s20
      %p292 = scmp.lt.s32.totalorder %s291, 63
      %s293 = scalar_select %p292, %s291, 63
      %p294 = scmp.lt.s32.totalorder %s21, 0
      %s295 = scalar_select %p294, %s21, 0
      %s296 = sadd.s32 %s295, %s293
      %s297 = smul.addr %s296, 8
      %s298 = scalar_lea.vmem %s4, %s297
      %s299 = smul.u32 32, %s20
      %p301 = scmp.eq.s32.totalorder %s22, 0
      // Predicated region
      $region37: #{_lambda_.9} parent=35 // pred_check
        %p302 = pneg %p301
      $region38: #{_lambda_.9} parent=35 // pred_check_branch
        %304 = sbr.rel (%p302) target = $region40
      $region39: #{_lambda_.9} parent=35 // pred_region
        %305 = vst [vmem:[#allocation2] sm:$0xff] 0.0
        %306 = vst [vmem:[#allocation2 + $0x8] sm:$0xff] 0.0
        %307 = vst [vmem:[#allocation2 + $0x10] sm:$0xff] 0.0
        %308 = vst [vmem:[#allocation2 + $0x18] sm:$0xff] 0.0
        %309 = vst [vmem:[#allocation2 + $0x20] sm:$0xff] 0.0
        %310 = vst [vmem:[#allocation2 + $0x28] sm:$0xff] 0.0
        %311 = vst [vmem:[#allocation2 + $0x30] sm:$0xff] 0.0
        %312 = vst [vmem:[#allocation2 + $0x38] sm:$0xff] 0.0
        %313 = vst [vmem:[#allocation2 + $0x40] sm:$0xff] 0.0
        %314 = vst [vmem:[#allocation2 + $0x48] sm:$0xff] 0.0
        %315 = vst [vmem:[#allocation2 + $0x50] sm:$0xff] 0.0
        %316 = vst [vmem:[#allocation2 + $0x58] sm:$0xff] 0.0
        %317 = vst [vmem:[#allocation2 + $0x60] sm:$0xff] 0.0
        %318 = vst [vmem:[#allocation2 + $0x68] sm:$0xff] 0.0
        %319 = vst [vmem:[#allocation2 + $0x70] sm:$0xff] 0.0
        %320 = vst [vmem:[#allocation2 + $0x78] sm:$0xff] 0.0
        %321 = vst [vmem:[#allocation2 + $0x80] sm:$0xff] 0.0
        %322 = vst [vmem:[#allocation2 + $0x88] sm:$0xff] 0.0
        %323 = vst [vmem:[#allocation2 + $0x90] sm:$0xff] 0.0
        %324 = vst [vmem:[#allocation2 + $0x98] sm:$0xff] 0.0
        %325 = vst [vmem:[#allocation2 + $0xa0] sm:$0xff] 0.0
        %326 = vst [vmem:[#allocation2 + $0xa8] sm:$0xff] 0.0
        %327 = vst [vmem:[#allocation2 + $0xb0] sm:$0xff] 0.0
        %328 = vst [vmem:[#allocation2 + $0xb8] sm:$0xff] 0.0
        %329 = vst [vmem:[#allocation2 + $0xc0] sm:$0xff] 0.0
        %330 = vst [vmem:[#allocation2 + $0xc8] sm:$0xff] 0.0
        %331 = vst [vmem:[#allocation2 + $0xd0] sm:$0xff] 0.0
        %332 = vst [vmem:[#allocation2 + $0xd8] sm:$0xff] 0.0
        %333 = vst [vmem:[#allocation2 + $0xe0] sm:$0xff] 0.0
        %334 = vst [vmem:[#allocation2 + $0xe8] sm:$0xff] 0.0
        %335 = vst [vmem:[#allocation2 + $0xf0] sm:$0xff] 0.0
        %336 = vst [vmem:[#allocation2 + $0xf8] sm:$0xff] 0.0
      $region40: #{_lambda_.9} parent=35 // pred_fallthru
        _
      %v337 = vld [vmem:[#allocation2] sm:$0xff]
      %v338 = vld [vmem:[#allocation2 + $0x8] sm:$0xff]
      %v339 = vld [vmem:[#allocation2 + $0x10] sm:$0xff]
      %v340 = vld [vmem:[#allocation2 + $0x18] sm:$0xff]
      %v341 = vld [vmem:[#allocation2 + $0x20] sm:$0xff]
      %v342 = vld [vmem:[#allocation2 + $0x28] sm:$0xff]
      %v343 = vld [vmem:[#allocation2 + $0x30] sm:$0xff]
      %v344 = vld [vmem:[#allocation2 + $0x38] sm:$0xff]
      %v345 = vld [vmem:[#allocation2 + $0x40] sm:$0xff]
      %v346 = vld [vmem:[#allocation2 + $0x48] sm:$0xff]
      %v347 = vld [vmem:[#allocation2 + $0x50] sm:$0xff]
      %v348 = vld [vmem:[#allocation2 + $0x58] sm:$0xff]
      %v349 = vld [vmem:[#allocation2 + $0x60] sm:$0xff]
      %v350 = vld [vmem:[#allocation2 + $0x68] sm:$0xff]
      %v351 = vld [vmem:[#allocation2 + $0x70] sm:$0xff]
      %v352 = vld [vmem:[#allocation2 + $0x78] sm:$0xff]
      %v353 = vld [vmem:[#allocation2 + $0x80] sm:$0xff]
      %v354 = vld [vmem:[#allocation2 + $0x88] sm:$0xff]
      %v355 = vld [vmem:[#allocation2 + $0x90] sm:$0xff]
      %v356 = vld [vmem:[#allocation2 + $0x98] sm:$0xff]
      %v357 = vld [vmem:[#allocation2 + $0xa0] sm:$0xff]
      %v358 = vld [vmem:[#allocation2 + $0xa8] sm:$0xff]
      %v359 = vld [vmem:[#allocation2 + $0xb0] sm:$0xff]
      %v360 = vld [vmem:[#allocation2 + $0xb8] sm:$0xff]
      %v361 = vld [vmem:[#allocation2 + $0xc0] sm:$0xff]
      %v362 = vld [vmem:[#allocation2 + $0xc8] sm:$0xff]
      %v363 = vld [vmem:[#allocation2 + $0xd0] sm:$0xff]
      %v364 = vld [vmem:[#allocation2 + $0xd8] sm:$0xff]
      %v365 = vld [vmem:[#allocation2 + $0xe0] sm:$0xff]
      %v366 = vld [vmem:[#allocation2 + $0xe8] sm:$0xff]
      %v367 = vld [vmem:[#allocation2 + $0xf0] sm:$0xff]
      %v368 = vld [vmem:[#allocation2 + $0xf8] sm:$0xff]
      %v369 = vld [vmem:[%s274] sm:$0xf]
      %v370 = vld [vmem:[%s274 + $0x4] sm:$0xf]
      %v371 = vld [vmem:[%s274 + $0x8] sm:$0xf]
      %v372 = vld [vmem:[%s274 + $0xc] sm:$0xf]
      %v373 = vld [vmem:[%s274 + $0x10] sm:$0xf]
      %v374 = vld [vmem:[%s274 + $0x14] sm:$0xf]
      %v375 = vld [vmem:[%s274 + $0x18] sm:$0xf]
      %v376 = vld [vmem:[%s274 + $0x1c] sm:$0xf]
      %v377 = vld [vmem:[%s274 + $0x20] sm:$0xf]
      %v378 = vld [vmem:[%s274 + $0x24] sm:$0xf]
      %v379 = vld [vmem:[%s274 + $0x28] sm:$0xf]
      %v380 = vld [vmem:[%s274 + $0x2c] sm:$0xf]
      %v381 = vld [vmem:[%s274 + $0x30] sm:$0xf]
      %v382 = vld [vmem:[%s274 + $0x34] sm:$0xf]
      %v383 = vld [vmem:[%s274 + $0x38] sm:$0xf]
      %v384 = vld [vmem:[%s274 + $0x3c] sm:$0xf]
      %v385 = vld [vmem:[%s274 + $0x40] sm:$0xf]
      %v386 = vld [vmem:[%s274 + $0x44] sm:$0xf]
      %v387 = vld [vmem:[%s274 + $0x48] sm:$0xf]
      %v388 = vld [vmem:[%s274 + $0x4c] sm:$0xf]
      %v389 = vld [vmem:[%s274 + $0x50] sm:$0xf]
      %v390 = vld [vmem:[%s274 + $0x54] sm:$0xf]
      %v391 = vld [vmem:[%s274 + $0x58] sm:$0xf]
      %v392 = vld [vmem:[%s274 + $0x5c] sm:$0xf]
      %v393 = vld [vmem:[%s274 + $0x60] sm:$0xf]
      %v394 = vld [vmem:[%s274 + $0x64] sm:$0xf]
      %v395 = vld [vmem:[%s274 + $0x68] sm:$0xf]
      %v396 = vld [vmem:[%s274 + $0x6c] sm:$0xf]
      %v397 = vld [vmem:[%s274 + $0x70] sm:$0xf]
      %v398 = vld [vmem:[%s274 + $0x74] sm:$0xf]
      %v399 = vld [vmem:[%s274 + $0x78] sm:$0xf]
      %v400 = vld [vmem:[%s274 + $0x7c] sm:$0xf]
      %v401 = vld [vmem:[%s283] sm:$0xf]
      %v402 = vld [vmem:[%s283 + $0x4] sm:$0xf]
      %v403 = vld [vmem:[%s283 + $0x8] sm:$0xf]
      %v404 = vld [vmem:[%s283 + $0xc] sm:$0xf]
      %v405 = vld [vmem:[%s283 + $0x10] sm:$0xf]
      %v406 = vld [vmem:[%s283 + $0x14] sm:$0xf]
      %v407 = vld [vmem:[%s283 + $0x18] sm:$0xf]
      %v408 = vld [vmem:[%s283 + $0x1c] sm:$0xf]
      %v409 = vld [vmem:[%s283 + $0x20] sm:$0xf]
      %v410 = vld [vmem:[%s283 + $0x24] sm:$0xf]
      %v411 = vld [vmem:[%s283 + $0x28] sm:$0xf]
      %v412 = vld [vmem:[%s283 + $0x2c] sm:$0xf]
      %v413 = vld [vmem:[%s283 + $0x30] sm:$0xf]
      %v414 = vld [vmem:[%s283 + $0x34] sm:$0xf]
      %v415 = vld [vmem:[%s283 + $0x38] sm:$0xf]
      %v416 = vld [vmem:[%s283 + $0x3c] sm:$0xf]
      %v449 = vunpack.c.l.b16 %v369
      %v450 = vunpack.c.l.b16 %v370
      %v451 = vunpack.c.l.b16 %v371
      %v452 = vunpack.c.l.b16 %v372
      %v453 = vunpack.c.l.b16 %v373
      %v454 = vunpack.c.l.b16 %v374
      %v455 = vunpack.c.l.b16 %v375
      %v456 = vunpack.c.l.b16 %v376
      %v457 = vunpack.c.l.b16 %v377
      %v458 = vunpack.c.l.b16 %v378
      %v459 = vunpack.c.l.b16 %v379
      %v460 = vunpack.c.l.b16 %v380
      %v461 = vunpack.c.l.b16 %v381
      %v462 = vunpack.c.l.b16 %v382
      %v463 = vunpack.c.l.b16 %v383
      %v464 = vunpack.c.l.b16 %v384
      %v465 = vunpack.c.l.b16 %v385
      %v466 = vunpack.c.l.b16 %v386
      %v467 = vunpack.c.l.b16 %v387
      %v468 = vunpack.c.l.b16 %v388
      %v469 = vunpack.c.l.b16 %v389
      %v470 = vunpack.c.l.b16 %v390
      %v471 = vunpack.c.l.b16 %v391
      %v472 = vunpack.c.l.b16 %v392
      %v473 = vunpack.c.l.b16 %v393
      %v474 = vunpack.c.l.b16 %v394
      %v475 = vunpack.c.l.b16 %v395
      %v476 = vunpack.c.l.b16 %v396
      %v477 = vunpack.c.l.b16 %v397
      %v478 = vunpack.c.l.b16 %v398
      %v479 = vunpack.c.l.b16 %v399
      %v480 = vunpack.c.l.b16 %v400
      %v481 = vpack.c.b16 %v450, %v449
      %v482 = vpack.c.b16 %v452, %v451
      %v483 = vpack.c.b16 %v454, %v453
      %v484 = vpack.c.b16 %v456, %v455
      %v485 = vpack.c.b16 %v458, %v457
      %v486 = vpack.c.b16 %v460, %v459
      %v487 = vpack.c.b16 %v462, %v461
      %v488 = vpack.c.b16 %v464, %v463
      %v489 = vpack.c.b16 %v466, %v465
      %v490 = vpack.c.b16 %v468, %v467
      %v491 = vpack.c.b16 %v470, %v469
      %v492 = vpack.c.b16 %v472, %v471
      %v493 = vpack.c.b16 %v474, %v473
      %v494 = vpack.c.b16 %v476, %v475
      %v495 = vpack.c.b16 %v478, %v477
      %v496 = vpack.c.b16 %v480, %v479
      %v529 = vunpack.c.l.b16 %v401
      %v530 = vunpack.c.l.b16 %v402
      %v531 = vunpack.c.l.b16 %v403
      %v532 = vunpack.c.l.b16 %v404
      %v533 = vunpack.c.l.b16 %v405
      %v534 = vunpack.c.l.b16 %v406
      %v535 = vunpack.c.l.b16 %v407
      %v536 = vunpack.c.l.b16 %v408
      %v537 = vunpack.c.l.b16 %v409
      %v538 = vunpack.c.l.b16 %v410
      %v539 = vunpack.c.l.b16 %v411
      %v540 = vunpack.c.l.b16 %v412
      %v541 = vunpack.c.l.b16 %v413
      %v542 = vunpack.c.l.b16 %v414
      %v543 = vunpack.c.l.b16 %v415
      %v544 = vunpack.c.l.b16 %v416
      %v545 = vpack.c.b16 %v530, %v529
      %v546 = vpack.c.b16 %v532, %v531
      %v547 = vpack.c.b16 %v534, %v533
      %v548 = vpack.c.b16 %v536, %v535
      %v549 = vpack.c.b16 %v538, %v537
      %v550 = vpack.c.b16 %v540, %v539
      %v551 = vpack.c.b16 %v542, %v541
      %v552 = vpack.c.b16 %v544, %v543
      %561 = vmatprep.subr.bf16.mxu0 0
      %562 = vmatpush1.bf16.msra.mxu0 %v545
      %563 = vmatprep.subr.bf16.mxu0 0
      %564 = vmatpush1.bf16.msra.mxu0 %v546
      %565 = vmatprep.subr.bf16.mxu0 0
      %566 = vmatpush1.bf16.msra.mxu0 %v547
      %567 = vmatprep.subr.bf16.mxu0 0
      %568 = vmatpush1.bf16.msra.mxu0 %v548
      %569 = vmatprep.subr.bf16.mxu0 0
      %570 = vmatpush1.bf16.msra.mxu0 %v549
      %571 = vmatprep.subr.bf16.mxu0 0
      %572 = vmatpush1.bf16.msra.mxu0 %v550
      %573 = vmatprep.subr.bf16.mxu0 0
      %574 = vmatpush1.bf16.msra.mxu0 %v551
      %575 = vmatprep.subr.bf16.mxu0 0
      %576 = vmatpush1.bf16.msra.mxu0 %v552
      %577 = vmatprep.subr.bf16.mxu0 0
      %578 = vmatpush1.bf16.msra.mxu0 0
      %579 = vmatprep.subr.bf16.mxu0 0
      %580 = vmatpush1.bf16.msra.mxu0 0
      %581 = vmatprep.subr.bf16.mxu0 0
      %582 = vmatpush1.bf16.msra.mxu0 0
      %583 = vmatprep.subr.bf16.mxu0 0
      %584 = vmatpush1.bf16.msra.mxu0 0
      %585 = vmatprep.subr.bf16.mxu0 0
      %586 = vmatpush1.bf16.msra.mxu0 0
      %587 = vmatprep.subr.bf16.mxu0 0
      %588 = vmatpush1.bf16.msra.mxu0 0
      %589 = vmatprep.subr.bf16.mxu0 0
      %590 = vmatpush1.bf16.msra.mxu0 0
      %591 = vmatprep.subr.bf16.mxu0 0
      %592 = vmatpush1.bf16.msra.mxu0 0
      %593 = vmatprep.mubr.bf16.mxu0 0
      %594 = vmatmul.mubr.bf16.gmra.mrb[0].mxu0 %v481
      %v595 = vpop.f32.mrb[0].mxu0
      %v596 = vadd.f32 0.0, %v595
      %v597 = vpop.f32.mrb[0].mxu0
      %v598 = vpop.f32.mrb[0].mxu0
      %v599 = vadd.f32 0.0, %v598
      %v600 = vpop.f32.mrb[0].mxu0
      %601 = vmatprep.mubr.bf16.mxu0 0
      %602 = vmatmul.mubr.bf16.gmra.mrb[0].mxu0 %v482
      %v603 = vpop.f32.mrb[0].mxu0
      %v604 = vadd.f32 0.0, %v603
      %v605 = vpop.f32.mrb[0].mxu0
      %v606 = vpop.f32.mrb[0].mxu0
      %v607 = vadd.f32 0.0, %v606
      %v608 = vpop.f32.mrb[0].mxu0
      %609 = vmatprep.mubr.bf16.mxu0 0
      %610 = vmatmul.mubr.bf16.gmra.mrb[0].mxu0 %v483
      %v611 = vpop.f32.mrb[0].mxu0
      %v612 = vadd.f32 0.0, %v611
      %v613 = vpop.f32.mrb[0].mxu0
      %v614 = vpop.f32.mrb[0].mxu0
      %v615 = vadd.f32 0.0, %v614
      %v616 = vpop.f32.mrb[0].mxu0
      %617 = vmatprep.mubr.bf16.mxu0 0
      %618 = vmatmul.mubr.bf16.gmra.mrb[0].mxu0 %v484
      %v619 = vpop.f32.mrb[0].mxu0
      %v620 = vadd.f32 0.0, %v619
      %v621 = vpop.f32.mrb[0].mxu0
      %v622 = vpop.f32.mrb[0].mxu0
      %v623 = vadd.f32 0.0, %v622
      %v624 = vpop.f32.mrb[0].mxu0
      %625 = vmatprep.mubr.bf16.mxu0 0
      %626 = vmatmul.mubr.bf16.gmra.mrb[0].mxu0 %v485
      %v627 = vpop.f32.mrb[0].mxu0
      %v628 = vadd.f32 0.0, %v627
      %v629 = vpop.f32.mrb[0].mxu0
      %v630 = vpop.f32.mrb[0].mxu0
      %v631 = vadd.f32 0.0, %v630
      %v632 = vpop.f32.mrb[0].mxu0
      %633 = vmatprep.mubr.bf16.mxu0 0
      %634 = vmatmul.mubr.bf16.gmra.mrb[0].mxu0 %v486
      %v635 = vpop.f32.mrb[0].mxu0
      %v636 = vadd.f32 0.0, %v635
      %v637 = vpop.f32.mrb[0].mxu0
      %v638 = vpop.f32.mrb[0].mxu0
      %v639 = vadd.f32 0.0, %v638
      %v640 = vpop.f32.mrb[0].mxu0
      %641 = vmatprep.mubr.bf16.mxu0 0
      %642 = vmatmul.mubr.bf16.gmra.mrb[0].mxu0 %v487
      %v643 = vpop.f32.mrb[0].mxu0
      %v644 = vadd.f32 0.0, %v643
      %v645 = vpop.f32.mrb[0].mxu0
      %v646 = vpop.f32.mrb[0].mxu0
      %v647 = vadd.f32 0.0, %v646
      %v648 = vpop.f32.mrb[0].mxu0
      %649 = vmatprep.mubr.bf16.mxu0 0
      %650 = vmatmul.mubr.bf16.gmra.mrb[0].mxu0 %v488
      %v651 = vpop.f32.mrb[0].mxu0
      %v652 = vadd.f32 0.0, %v651
      %v653 = vpop.f32.mrb[0].mxu0
      %v654 = vpop.f32.mrb[0].mxu0
      %v655 = vadd.f32 0.0, %v654
      %v656 = vpop.f32.mrb[0].mxu0
      %657 = vmatprep.mubr.bf16.mxu0 0
      %658 = vmatmul.mubr.bf16.gmra.mrb[0].mxu0 %v489
      %v659 = vpop.f32.mrb[0].mxu0
      %v660 = vadd.f32 0.0, %v659
      %v661 = vpop.f32.mrb[0].mxu0
      %v662 = vpop.f32.mrb[0].mxu0
      %v663 = vadd.f32 0.0, %v662
      %v664 = vpop.f32.mrb[0].mxu0
      %665 = vmatprep.mubr.bf16.mxu0 0
      %666 = vmatmul.mubr.bf16.gmra.mrb[0].mxu0 %v490
      %v667 = vpop.f32.mrb[0].mxu0
      %v668 = vadd.f32 0.0, %v667
      %v669 = vpop.f32.mrb[0].mxu0
      %v670 = vpop.f32.mrb[0].mxu0
      %v671 = vadd.f32 0.0, %v670
      %v672 = vpop.f32.mrb[0].mxu0
      %673 = vmatprep.mubr.bf16.mxu0 0
      %674 = vmatmul.mubr.bf16.gmra.mrb[0].mxu0 %v491
      %v675 = vpop.f32.mrb[0].mxu0
      %v676 = vadd.f32 0.0, %v675
      %v677 = vpop.f32.mrb[0].mxu0
      %v678 = vpop.f32.mrb[0].mxu0
      %v679 = vadd.f32 0.0, %v678
      %v680 = vpop.f32.mrb[0].mxu0
      %681 = vmatprep.mubr.bf16.mxu0 0
      %682 = vmatmul.mubr.bf16.gmra.mrb[0].mxu0 %v492
      %v683 = vpop.f32.mrb[0].mxu0
      %v684 = vadd.f32 0.0, %v683
      %v685 = vpop.f32.mrb[0].mxu0
      %v686 = vpop.f32.mrb[0].mxu0
      %v687 = vadd.f32 0.0, %v686
      %v688 = vpop.f32.mrb[0].mxu0
      %689 = vmatprep.mubr.bf16.mxu0 0
      %690 = vmatmul.mubr.bf16.gmra.mrb[0].mxu0 %v493
      %v691 = vpop.f32.mrb[0].mxu0
      %v692 = vadd.f32 0.0, %v691
      %v693 = vpop.f32.mrb[0].mxu0
      %v694 = vpop.f32.mrb[0].mxu0
      %v695 = vadd.f32 0.0, %v694
      %v696 = vpop.f32.mrb[0].mxu0
      %697 = vmatprep.mubr.bf16.mxu0 0
      %698 = vmatmul.mubr.bf16.gmra.mrb[0].mxu0 %v494
      %v699 = vpop.f32.mrb[0].mxu0
      %v700 = vadd.f32 0.0, %v699
      %v701 = vpop.f32.mrb[0].mxu0
      %v702 = vpop.f32.mrb[0].mxu0
      %v703 = vadd.f32 0.0, %v702
      %v704 = vpop.f32.mrb[0].mxu0
      %705 = vmatprep.mubr.bf16.mxu0 0
      %706 = vmatmul.mubr.bf16.gmra.mrb[0].mxu0 %v495
      %v707 = vpop.f32.mrb[0].mxu0
      %v708 = vadd.f32 0.0, %v707
      %v709 = vpop.f32.mrb[0].mxu0
      %v710 = vpop.f32.mrb[0].mxu0
      %v711 = vadd.f32 0.0, %v710
      %v712 = vpop.f32.mrb[0].mxu0
      %713 = vmatprep.mubr.bf16.mxu0 0
      %714 = vmatmul.mubr.bf16.gmra.mrb[0].mxu0 %v496
      %v715 = vpop.f32.mrb[0].mxu0
      %v716 = vadd.f32 0.0, %v715
      %v717 = vpop.f32.mrb[0].mxu0
      %v718 = vpop.f32.mrb[0].mxu0
      %v719 = vadd.f32 0.0, %v718
      %v720 = vpop.f32.mrb[0].mxu0
      %721 = vdwg.mxu0
      %v722 = vadd.f32 %v337, %v596
      %v723 = vadd.f32 %v338, %v599
      %v724 = vadd.f32 %v339, %v604
      %v725 = vadd.f32 %v340, %v607
      %v726 = vadd.f32 %v341, %v612
      %v727 = vadd.f32 %v342, %v615
      %v728 = vadd.f32 %v343, %v620
      %v729 = vadd.f32 %v344, %v623
      %v730 = vadd.f32 %v345, %v628
      %v731 = vadd.f32 %v346, %v631
      %v732 = vadd.f32 %v347, %v636
      %v733 = vadd.f32 %v348, %v639
      %v734 = vadd.f32 %v349, %v644
      %v735 = vadd.f32 %v350, %v647
      %v736 = vadd.f32 %v351, %v652
      %v737 = vadd.f32 %v352, %v655
      %v738 = vadd.f32 %v353, %v660
      %v739 = vadd.f32 %v354, %v663
      %v740 = vadd.f32 %v355, %v668
      %v741 = vadd.f32 %v356, %v671
      %v742 = vadd.f32 %v357, %v676
      %v743 = vadd.f32 %v358, %v679
      %v744 = vadd.f32 %v359, %v684
      %v745 = vadd.f32 %v360, %v687
      %v746 = vadd.f32 %v361, %v692
      %v747 = vadd.f32 %v362, %v695
      %v748 = vadd.f32 %v363, %v700
      %v749 = vadd.f32 %v364, %v703
      %v750 = vadd.f32 %v365, %v708
      %v751 = vadd.f32 %v366, %v711
      %v752 = vadd.f32 %v367, %v716
      %v753 = vadd.f32 %v368, %v719
      %754 = vst [vmem:[#allocation2] sm:$0xff] %v722
      %755 = vst [vmem:[#allocation2 + $0x8] sm:$0xff] %v723
      %756 = vst [vmem:[#allocation2 + $0x10] sm:$0xff] %v724
      %757 = vst [vmem:[#allocation2 + $0x18] sm:$0xff] %v725
      %758 = vst [vmem:[#allocation2 + $0x20] sm:$0xff] %v726
      %759 = vst [vmem:[#allocation2 + $0x28] sm:$0xff] %v727
      %760 = vst [vmem:[#allocation2 + $0x30] sm:$0xff] %v728
      %761 = vst [vmem:[#allocation2 + $0x38] sm:$0xff] %v729
      %762 = vst [vmem:[#allocation2 + $0x40] sm:$0xff] %v730
      %763 = vst [vmem:[#allocation2 + $0x48] sm:$0xff] %v731
      %764 = vst [vmem:[#allocation2 + $0x50] sm:$0xff] %v732
      %765 = vst [vmem:[#allocation2 + $0x58] sm:$0xff] %v733
      %766 = vst [vmem:[#allocation2 + $0x60] sm:$0xff] %v734
      %767 = vst [vmem:[#allocation2 + $0x68] sm:$0xff] %v735
      %768 = vst [vmem:[#allocation2 + $0x70] sm:$0xff] %v736
      %769 = vst [vmem:[#allocation2 + $0x78] sm:$0xff] %v737
      %770 = vst [vmem:[#allocation2 + $0x80] sm:$0xff] %v738
      %771 = vst [vmem:[#allocation2 + $0x88] sm:$0xff] %v739
      %772 = vst [vmem:[#allocation2 + $0x90] sm:$0xff] %v740
      %773 = vst [vmem:[#allocation2 + $0x98] sm:$0xff] %v741
      %774 = vst [vmem:[#allocation2 + $0xa0] sm:$0xff] %v742
      %775 = vst [vmem:[#allocation2 + $0xa8] sm:$0xff] %v743
      %776 = vst [vmem:[#allocation2 + $0xb0] sm:$0xff] %v744
      %777 = vst [vmem:[#allocation2 + $0xb8] sm:$0xff] %v745
      %778 = vst [vmem:[#allocation2 + $0xc0] sm:$0xff] %v746
      %779 = vst [vmem:[#allocation2 + $0xc8] sm:$0xff] %v747
      %780 = vst [vmem:[#allocation2 + $0xd0] sm:$0xff] %v748
      %781 = vst [vmem:[#allocation2 + $0xd8] sm:$0xff] %v749
      %782 = vst [vmem:[#allocation2 + $0xe0] sm:$0xff] %v750
      %783 = vst [vmem:[#allocation2 + $0xe8] sm:$0xff] %v751
      %784 = vst [vmem:[#allocation2 + $0xf0] sm:$0xff] %v752
      %785 = vst [vmem:[#allocation2 + $0xf8] sm:$0xff] %v753
      // Predicated region
      $region41: #{_lambda_.9} parent=35 // pred_check
        %p786 = pneg %p301
      $region42: #{_lambda_.9} parent=35 // pred_check_branch
        %788 = sbr.rel (%p786) target = $region44
      $region43: #{_lambda_.9} parent=35 // pred_region
        %v789 = vld [vmem:[#allocation2] sm:$0xff]
        %v790 = vld [vmem:[#allocation2 + $0x8] sm:$0xff]
        %v791 = vld [vmem:[#allocation2 + $0x10] sm:$0xff]
        %v792 = vld [vmem:[#allocation2 + $0x18] sm:$0xff]
        %v793 = vld [vmem:[#allocation2 + $0x20] sm:$0xff]
        %v794 = vld [vmem:[#allocation2 + $0x28] sm:$0xff]
        %v795 = vld [vmem:[#allocation2 + $0x30] sm:$0xff]
        %v796 = vld [vmem:[#allocation2 + $0x38] sm:$0xff]
        %v797 = vld [vmem:[#allocation2 + $0x40] sm:$0xff]
        %v798 = vld [vmem:[#allocation2 + $0x48] sm:$0xff]
        %v799 = vld [vmem:[#allocation2 + $0x50] sm:$0xff]
        %v800 = vld [vmem:[#allocation2 + $0x58] sm:$0xff]
        %v801 = vld [vmem:[#allocation2 + $0x60] sm:$0xff]
        %v802 = vld [vmem:[#allocation2 + $0x68] sm:$0xff]
        %v803 = vld [vmem:[#allocation2 + $0x70] sm:$0xff]
        %v804 = vld [vmem:[#allocation2 + $0x78] sm:$0xff]
        %v805 = vld [vmem:[#allocation2 + $0x80] sm:$0xff]
        %v806 = vld [vmem:[#allocation2 + $0x88] sm:$0xff]
        %v807 = vld [vmem:[#allocation2 + $0x90] sm:$0xff]
        %v808 = vld [vmem:[#allocation2 + $0x98] sm:$0xff]
        %v809 = vld [vmem:[#allocation2 + $0xa0] sm:$0xff]
        %v810 = vld [vmem:[#allocation2 + $0xa8] sm:$0xff]
        %v811 = vld [vmem:[#allocation2 + $0xb0] sm:$0xff]
        %v812 = vld [vmem:[#allocation2 + $0xb8] sm:$0xff]
        %v813 = vld [vmem:[#allocation2 + $0xc0] sm:$0xff]
        %v814 = vld [vmem:[#allocation2 + $0xc8] sm:$0xff]
        %v815 = vld [vmem:[#allocation2 + $0xd0] sm:$0xff]
        %v816 = vld [vmem:[#allocation2 + $0xd8] sm:$0xff]
        %v817 = vld [vmem:[#allocation2 + $0xe0] sm:$0xff]
        %v818 = vld [vmem:[#allocation2 + $0xe8] sm:$0xff]
        %v819 = vld [vmem:[#allocation2 + $0xf0] sm:$0xff]
        %v820 = vld [vmem:[#allocation2 + $0xf8] sm:$0xff]
        %v821 = vld [vmem:[%s287] sm:$0x1]
        %v823 = vlaneseq
        %v824 = vshrl.u32 %v823, 7
        %v825 = vsub.s32 0, %v824
        %v826 = vrot.slane %v821, %v825
        %v828 = vmul.f32 %v789, %v826
        %v829 = vmul.f32 %v790, %v826
        %v830 = vmul.f32 %v791, %v826
        %v831 = vmul.f32 %v792, %v826
        %v832 = vmul.f32 %v793, %v826
        %v833 = vmul.f32 %v794, %v826
        %v834 = vmul.f32 %v795, %v826
        %v835 = vmul.f32 %v796, %v826
        %v836 = vmul.f32 %v797, %v826
        %v837 = vmul.f32 %v798, %v826
        %v838 = vmul.f32 %v799, %v826
        %v839 = vmul.f32 %v800, %v826
        %v840 = vmul.f32 %v801, %v826
        %v841 = vmul.f32 %v802, %v826
        %v842 = vmul.f32 %v803, %v826
        %v843 = vmul.f32 %v804, %v826
        %v844 = vmul.f32 %v805, %v826
        %v845 = vmul.f32 %v806, %v826
        %v846 = vmul.f32 %v807, %v826
        %v847 = vmul.f32 %v808, %v826
        %v848 = vmul.f32 %v809, %v826
        %v849 = vmul.f32 %v810, %v826
        %v850 = vmul.f32 %v811, %v826
        %v851 = vmul.f32 %v812, %v826
        %v852 = vmul.f32 %v813, %v826
        %v853 = vmul.f32 %v814, %v826
        %v854 = vmul.f32 %v815, %v826
        %v855 = vmul.f32 %v816, %v826
        %v856 = vmul.f32 %v817, %v826
        %v857 = vmul.f32 %v818, %v826
        %v858 = vmul.f32 %v819, %v826
        %v859 = vmul.f32 %v820, %v826
        %v860 = vld [vmem:[%s290] sm:$0x1]
        %v862 = vlaneseq
        %v863 = vshrl.u32 %v862, 7
        %v864 = vsub.s32 0, %v863
        %v865 = vrot.slane %v860, %v864
        %v867 = vadd.f32 %v828, %v865
        %v868 = vadd.f32 %v829, %v865
        %v869 = vadd.f32 %v830, %v865
        %v870 = vadd.f32 %v831, %v865
        %v871 = vadd.f32 %v832, %v865
        %v872 = vadd.f32 %v833, %v865
        %v873 = vadd.f32 %v834, %v865
        %v874 = vadd.f32 %v835, %v865
        %v875 = vadd.f32 %v836, %v865
        %v876 = vadd.f32 %v837, %v865
        %v877 = vadd.f32 %v838, %v865
        %v878 = vadd.f32 %v839, %v865
        %v879 = vadd.f32 %v840, %v865
        %v880 = vadd.f32 %v841, %v865
        %v881 = vadd.f32 %v842, %v865
        %v882 = vadd.f32 %v843, %v865
        %v883 = vadd.f32 %v844, %v865
        %v884 = vadd.f32 %v845, %v865
        %v885 = vadd.f32 %v846, %v865
        %v886 = vadd.f32 %v847, %v865
        %v887 = vadd.f32 %v848, %v865
        %v888 = vadd.f32 %v849, %v865
        %v889 = vadd.f32 %v850, %v865
        %v890 = vadd.f32 %v851, %v865
        %v891 = vadd.f32 %v852, %v865
        %v892 = vadd.f32 %v853, %v865
        %v893 = vadd.f32 %v854, %v865
        %v894 = vadd.f32 %v855, %v865
        %v895 = vadd.f32 %v856, %v865
        %v896 = vadd.f32 %v857, %v865
        %v897 = vadd.f32 %v858, %v865
        %v898 = vadd.f32 %v859, %v865
        %vm899 = vcmp.gt.f32.partialorder %v867, 0.0
        %vm900 = vcmp.gt.f32.partialorder %v868, 0.0
        %vm901 = vcmp.gt.f32.partialorder %v869, 0.0
        %vm902 = vcmp.gt.f32.partialorder %v870, 0.0
        %vm903 = vcmp.gt.f32.partialorder %v871, 0.0
        %vm904 = vcmp.gt.f32.partialorder %v872, 0.0
        %vm905 = vcmp.gt.f32.partialorder %v873, 0.0
        %vm906 = vcmp.gt.f32.partialorder %v874, 0.0
        %vm907 = vcmp.gt.f32.partialorder %v875, 0.0
        %vm908 = vcmp.gt.f32.partialorder %v876, 0.0
        %vm909 = vcmp.gt.f32.partialorder %v877, 0.0
        %vm910 = vcmp.gt.f32.partialorder %v878, 0.0
        %vm911 = vcmp.gt.f32.partialorder %v879, 0.0
        %vm912 = vcmp.gt.f32.partialorder %v880, 0.0
        %vm913 = vcmp.gt.f32.partialorder %v881, 0.0
        %vm914 = vcmp.gt.f32.partialorder %v882, 0.0
        %vm915 = vcmp.gt.f32.partialorder %v883, 0.0
        %vm916 = vcmp.gt.f32.partialorder %v884, 0.0
        %vm917 = vcmp.gt.f32.partialorder %v885, 0.0
        %vm918 = vcmp.gt.f32.partialorder %v886, 0.0
        %vm919 = vcmp.gt.f32.partialorder %v887, 0.0
        %vm920 = vcmp.gt.f32.partialorder %v888, 0.0
        %vm921 = vcmp.gt.f32.partialorder %v889, 0.0
        %vm922 = vcmp.gt.f32.partialorder %v890, 0.0
        %vm923 = vcmp.gt.f32.partialorder %v891, 0.0
        %vm924 = vcmp.gt.f32.partialorder %v892, 0.0
        %vm925 = vcmp.gt.f32.partialorder %v893, 0.0
        %vm926 = vcmp.gt.f32.partialorder %v894, 0.0
        %vm927 = vcmp.gt.f32.partialorder %v895, 0.0
        %vm928 = vcmp.gt.f32.partialorder %v896, 0.0
        %vm929 = vcmp.gt.f32.partialorder %v897, 0.0
        %vm930 = vcmp.gt.f32.partialorder %v898, 0.0
        %v931 = vmul.f32 %v867, 0.1
        %v932 = vmul.f32 %v868, 0.1
        %v933 = vmul.f32 %v869, 0.1
        %v934 = vmul.f32 %v870, 0.1
        %v935 = vmul.f32 %v871, 0.1
        %v936 = vmul.f32 %v872, 0.1
        %v937 = vmul.f32 %v873, 0.1
        %v938 = vmul.f32 %v874, 0.1
        %v939 = vmul.f32 %v875, 0.1
        %v940 = vmul.f32 %v876, 0.1
        %v941 = vmul.f32 %v877, 0.1
        %v942 = vmul.f32 %v878, 0.1
        %v943 = vmul.f32 %v879, 0.1
        %v944 = vmul.f32 %v880, 0.1
        %v945 = vmul.f32 %v881, 0.1
        %v946 = vmul.f32 %v882, 0.1
        %v947 = vmul.f32 %v883, 0.1
        %v948 = vmul.f32 %v884, 0.1
        %v949 = vmul.f32 %v885, 0.1
        %v950 = vmul.f32 %v886, 0.1
        %v951 = vmul.f32 %v887, 0.1
        %v952 = vmul.f32 %v888, 0.1
        %v953 = vmul.f32 %v889, 0.1
        %v954 = vmul.f32 %v890, 0.1
        %v955 = vmul.f32 %v891, 0.1
        %v956 = vmul.f32 %v892, 0.1
        %v957 = vmul.f32 %v893, 0.1
        %v958 = vmul.f32 %v894, 0.1
        %v959 = vmul.f32 %v895, 0.1
        %v960 = vmul.f32 %v896, 0.1
        %v961 = vmul.f32 %v897, 0.1
        %v962 = vmul.f32 %v898, 0.1
        %v963 = vsel %vm899, %v867, %v931
        %v964 = vsel %vm900, %v868, %v932
        %v965 = vsel %vm901, %v869, %v933
        %v966 = vsel %vm902, %v870, %v934
        %v967 = vsel %vm903, %v871, %v935
        %v968 = vsel %vm904, %v872, %v936
        %v969 = vsel %vm905, %v873, %v937
        %v970 = vsel %vm906, %v874, %v938
        %v971 = vsel %vm907, %v875, %v939
        %v972 = vsel %vm908, %v876, %v940
        %v973 = vsel %vm909, %v877, %v941
        %v974 = vsel %vm910, %v878, %v942
        %v975 = vsel %vm911, %v879, %v943
        %v976 = vsel %vm912, %v880, %v944
        %v977 = vsel %vm913, %v881, %v945
        %v978 = vsel %vm914, %v882, %v946
        %v979 = vsel %vm915, %v883, %v947
        %v980 = vsel %vm916, %v884, %v948
        %v981 = vsel %vm917, %v885, %v949
        %v982 = vsel %vm918, %v886, %v950
        %v983 = vsel %vm919, %v887, %v951
        %v984 = vsel %vm920, %v888, %v952
        %v985 = vsel %vm921, %v889, %v953
        %v986 = vsel %vm922, %v890, %v954
        %v987 = vsel %vm923, %v891, %v955
        %v988 = vsel %vm924, %v892, %v956
        %v989 = vsel %vm925, %v893, %v957
        %v990 = vsel %vm926, %v894, %v958
        %v991 = vsel %vm927, %v895, %v959
        %v992 = vsel %vm928, %v896, %v960
        %v993 = vsel %vm929, %v897, %v961
        %v994 = vsel %vm930, %v898, %v962
        %995 = vst [vmem:[%s298] sm:$0xff] %v963
        %996 = vst [vmem:[%s298 + $0x8] sm:$0xff] %v964
        %997 = vst [vmem:[%s298 + $0x10] sm:$0xff] %v965
        %998 = vst [vmem:[%s298 + $0x18] sm:$0xff] %v966
        %999 = vst [vmem:[%s298 + $0x20] sm:$0xff] %v967
        %1000 = vst [vmem:[%s298 + $0x28] sm:$0xff] %v968
        %1001 = vst [vmem:[%s298 + $0x30] sm:$0xff] %v969
        %1002 = vst [vmem:[%s298 + $0x38] sm:$0xff] %v970
        %1003 = vst [vmem:[%s298 + $0x40] sm:$0xff] %v971
        %1004 = vst [vmem:[%s298 + $0x48] sm:$0xff] %v972
        %1005 = vst [vmem:[%s298 + $0x50] sm:$0xff] %v973
        %1006 = vst [vmem:[%s298 + $0x58] sm:$0xff] %v974
        %1007 = vst [vmem:[%s298 + $0x60] sm:$0xff] %v975
        %1008 = vst [vmem:[%s298 + $0x68] sm:$0xff] %v976
        %1009 = vst [vmem:[%s298 + $0x70] sm:$0xff] %v977
        %1010 = vst [vmem:[%s298 + $0x78] sm:$0xff] %v978
        %1011 = vst [vmem:[%s298 + $0x80] sm:$0xff] %v979
        %1012 = vst [vmem:[%s298 + $0x88] sm:$0xff] %v980
        %1013 = vst [vmem:[%s298 + $0x90] sm:$0xff] %v981
        %1014 = vst [vmem:[%s298 + $0x98] sm:$0xff] %v982
        %1015 = vst [vmem:[%s298 + $0xa0] sm:$0xff] %v983
        %1016 = vst [vmem:[%s298 + $0xa8] sm:$0xff] %v984
        %1017 = vst [vmem:[%s298 + $0xb0] sm:$0xff] %v985
        %1018 = vst [vmem:[%s298 + $0xb8] sm:$0xff] %v986
        %1019 = vst [vmem:[%s298 + $0xc0] sm:$0xff] %v987
        %1020 = vst [vmem:[%s298 + $0xc8] sm:$0xff] %v988
        %1021 = vst [vmem:[%s298 + $0xd0] sm:$0xff] %v989
        %1022 = vst [vmem:[%s298 + $0xd8] sm:$0xff] %v990
        %1023 = vst [vmem:[%s298 + $0xe0] sm:$0xff] %v991
        %1024 = vst [vmem:[%s298 + $0xe8] sm:$0xff] %v992
        %1025 = vst [vmem:[%s298 + $0xf0] sm:$0xff] %v993
        %1026 = vst [vmem:[%s298 + $0xf8] sm:$0xff] %v994
      $region44: #{_lambda_.9} parent=35 // pred_fallthru
        _
      %s1027 = smul.u32 32, %s20
      %p1028 = scmp.lt.s32.totalorder %s1027, 63
      %s1029 = scalar_select %p1028, %s1027, 63
      %p1030 = scmp.lt.s32.totalorder %s21, 0
      %s1031 = scalar_select %p1030, %s21, 0
      %s1032 = sadd.s32 %s1031, %s1029
      %s1033 = smul.addr %s1032, 8
      %s1034 = scalar_lea.vmem %s4, %s1033
      // Predicated region
      $region45: #{_lambda_.9} parent=35 // pred_check
        %p1035 = pneg %p162
      $region46: #{_lambda_.9} parent=35 // pred_check_branch
        %1037 = sbr.rel (%p1035) target = $region48
      $region47: #{_lambda_.9} parent=35 // pred_region
        %s1038 = smul.u32 32, %s20
      $region48: #{_lambda_.9} parent=35 // pred_fallthru
        _
    $region36: #{_lambda_.9} parent=5 // pred_fallthru
      _
    %p1039 = scmp.le.s32.totalorder 2, %s10
    // Predicated region
    $region49: #{_lambda_.9} parent=5 // pred_check
      %p1040 = pneg %p1039
    $region50: #{_lambda_.9} parent=5 // pred_check_branch
      %1042 = sbr.rel (%p1040) target = $region52
    $region51: #{_lambda_.9} parent=5 // pred_region
      %s1043 = ssub.s32 %s10, 2
      // Predicated region
      $region53: #{_lambda_.9} parent=51 // pred_check
        %p1044 = pneg %p168
      $region54: #{_lambda_.9} parent=51 // pred_check_branch
        %1046 = sbr.rel (%p1044) target = $region56
      $region55: #{_lambda_.9} parent=51 // pred_region
        %s1047 = smul.u32 32, %s23
        %p1048 = scmp.lt.s32.totalorder %s1047, 63
        %s1049 = scalar_select %p1048, %s1047, 63
        %p1050 = scmp.lt.s32.totalorder %s24, 0
        %s1051 = scalar_select %p1050, %s24, 0
        %s1052 = sadd.s32 %s1051, %s1049
        %s1053 = smul.addr %s1052, 8
        %s1054 = scalar_lea.vmem %s4, %s1053
      $region56: #{_lambda_.9} parent=51 // pred_fallthru
        _
    $region52: #{_lambda_.9} parent=5 // pred_fallthru
      _
  $region6: #{_lambda_.9} parent=0 // loop_footer
    %s14 = sadd.s32 1, %s10
  $region7: #{_lambda_.9} parent=0 // loop_footer_branch
    %9 = sbr.rel target = $region3
  $region8: #{_lambda_.9} parent=0 // loop_exit
    _

// kernel: _lambda_.10
$region0: #{_lambda_.10}
  #allocation0 [shape = 'u32[]', space=smem, size = 0x4, offset = 0x4, fixed_abs, tag = 'smem constant byte address 0x4 - core index']
  #allocation1 [shape = 'u32[144,128]{1,0:T(1,128)}', space=vmem, size = 0x12000, scoped, tag = 'internal scratch']
  #allocation2 [shape = 'f32[128,128]{1,0:T(8,128)}', space=vmem, size = 0x10000, scoped, tag = 'scratch operand']
  %s0 = inlined_call_operand.vmem [shape: bf16[128,128], index: 0, kind: input, shape index: {}]
  %s1 = inlined_call_operand.vmem [shape: bf16[128,128], index: 1, kind: input, shape index: {}]
  %s2 = inlined_call_operand.vmem [shape: f32[1,128], index: 2, kind: input, shape index: {}]
  %s3 = inlined_call_operand.vmem [shape: f32[1,128], index: 3, kind: input, shape index: {}]
  %s4 = inlined_call_operand.vmem [shape: f32[128,128], index: 4, kind: output, shape index: {}]
  %s5 = sld [smem:[#allocation0]]
  $region34: #{_lambda_.10} parent=0
    _
  %s7 = ssub.s32 1, %s5
  %s8 = scalar_select 0, %s7, %s5
  // Predicated region
  $region2: #{_lambda_.10} parent=0 // pred_check
    _
  $region3: #{_lambda_.10} parent=0 // pred_check_branch
    %10 = sbr.rel (0) target = $region5
  $region4: #{_lambda_.10} parent=0 // pred_region
    _
  $region5: #{_lambda_.10} parent=0 // pred_fallthru
    _
  // Predicated region
  $region6: #{_lambda_.10} parent=0 // pred_check
    _
  $region7: #{_lambda_.10} parent=0 // pred_check_branch
    %12 = sbr.rel (0) target = $region9
  $region8: #{_lambda_.10} parent=0 // pred_region
    _
  $region9: #{_lambda_.10} parent=0 // pred_fallthru
    _
  // Predicated region
  $region10: #{_lambda_.10} parent=0 // pred_check
    _
  $region11: #{_lambda_.10} parent=0 // pred_check_branch
    %14 = sbr.rel (0) target = $region13
  $region12: #{_lambda_.10} parent=0 // pred_region
    _
  $region13: #{_lambda_.10} parent=0 // pred_fallthru
    _
  // Predicated region
  $region14: #{_lambda_.10} parent=0 // pred_check
    _
  $region15: #{_lambda_.10} parent=0 // pred_check_branch
    %16 = sbr.rel (0) target = $region17
  $region16: #{_lambda_.10} parent=0 // pred_region
    _
  $region17: #{_lambda_.10} parent=0 // pred_fallthru
    _
  %p18 = scmp.eq.s32.totalorder 0, 0
  // Predicated region
  $region18: #{_lambda_.10} parent=0 // pred_check
    %p19 = pneg %p18
  $region19: #{_lambda_.10} parent=0 // pred_check_branch
    %21 = sbr.rel (%p19) target = $region21
  $region20: #{_lambda_.10} parent=0 // pred_region
    %22 = vst [vmem:[#allocation2] sm:$0xff] 0.0
    %23 = vst [vmem:[#allocation2 + $0x8] sm:$0xff] 0.0
    %24 = vst [vmem:[#allocation2 + $0x10] sm:$0xff] 0.0
    %25 = vst [vmem:[#allocation2 + $0x18] sm:$0xff] 0.0
    %26 = vst [vmem:[#allocation2 + $0x20] sm:$0xff] 0.0
    %27 = vst [vmem:[#allocation2 + $0x28] sm:$0xff] 0.0
    %28 = vst [vmem:[#allocation2 + $0x30] sm:$0xff] 0.0
    %29 = vst [vmem:[#allocation2 + $0x38] sm:$0xff] 0.0
    %30 = vst [vmem:[#allocation2 + $0x40] sm:$0xff] 0.0
    %31 = vst [vmem:[#allocation2 + $0x48] sm:$0xff] 0.0
    %32 = vst [vmem:[#allocation2 + $0x50] sm:$0xff] 0.0
    %33 = vst [vmem:[#allocation2 + $0x58] sm:$0xff] 0.0
    %34 = vst [vmem:[#allocation2 + $0x60] sm:$0xff] 0.0
    %35 = vst [vmem:[#allocation2 + $0x68] sm:$0xff] 0.0
    %36 = vst [vmem:[#allocation2 + $0x70] sm:$0xff] 0.0
    %37 = vst [vmem:[#allocation2 + $0x78] sm:$0xff] 0.0
  $region21: #{_lambda_.10} parent=0 // pred_fallthru
    _
  %v38 = vld [vmem:[#allocation2] sm:$0xff]
  %v39 = vld [vmem:[#allocation2 + $0x8] sm:$0xff]
  %v40 = vld [vmem:[#allocation2 + $0x10] sm:$0xff]
  %v41 = vld [vmem:[#allocation2 + $0x18] sm:$0xff]
  %v42 = vld [vmem:[#allocation2 + $0x20] sm:$0xff]
  %v43 = vld [vmem:[#allocation2 + $0x28] sm:$0xff]
  %v44 = vld [vmem:[#allocation2 + $0x30] sm:$0xff]
  %v45 = vld [vmem:[#allocation2 + $0x38] sm:$0xff]
  %v46 = vld [vmem:[#allocation2 + $0x40] sm:$0xff]
  %v47 = vld [vmem:[#allocation2 + $0x48] sm:$0xff]
  %v48 = vld [vmem:[#allocation2 + $0x50] sm:$0xff]
  %v49 = vld [vmem:[#allocation2 + $0x58] sm:$0xff]
  %v50 = vld [vmem:[#allocation2 + $0x60] sm:$0xff]
  %v51 = vld [vmem:[#allocation2 + $0x68] sm:$0xff]
  %v52 = vld [vmem:[#allocation2 + $0x70] sm:$0xff]
  %v53 = vld [vmem:[#allocation2 + $0x78] sm:$0xff]
  %v54 = vld [vmem:[%s0] sm:$0xf]
  %v55 = vld [vmem:[%s0 + $0x4] sm:$0xf]
  %v56 = vld [vmem:[%s0 + $0x8] sm:$0xf]
  %v57 = vld [vmem:[%s0 + $0xc] sm:$0xf]
  %v58 = vld [vmem:[%s0 + $0x10] sm:$0xf]
  %v59 = vld [vmem:[%s0 + $0x14] sm:$0xf]
  %v60 = vld [vmem:[%s0 + $0x18] sm:$0xf]
  %v61 = vld [vmem:[%s0 + $0x1c] sm:$0xf]
  %v62 = vld [vmem:[%s0 + $0x20] sm:$0xf]
  %v63 = vld [vmem:[%s0 + $0x24] sm:$0xf]
  %v64 = vld [vmem:[%s0 + $0x28] sm:$0xf]
  %v65 = vld [vmem:[%s0 + $0x2c] sm:$0xf]
  %v66 = vld [vmem:[%s0 + $0x30] sm:$0xf]
  %v67 = vld [vmem:[%s0 + $0x34] sm:$0xf]
  %v68 = vld [vmem:[%s0 + $0x38] sm:$0xf]
  %v69 = vld [vmem:[%s0 + $0x3c] sm:$0xf]
  %v70 = vld [vmem:[%s1] sm:$0xf]
  %v71 = vld [vmem:[%s1 + $0x4] sm:$0xf]
  %v72 = vld [vmem:[%s1 + $0x8] sm:$0xf]
  %v73 = vld [vmem:[%s1 + $0xc] sm:$0xf]
  %v74 = vld [vmem:[%s1 + $0x10] sm:$0xf]
  %v75 = vld [vmem:[%s1 + $0x14] sm:$0xf]
  %v76 = vld [vmem:[%s1 + $0x18] sm:$0xf]
  %v77 = vld [vmem:[%s1 + $0x1c] sm:$0xf]
  %v78 = vld [vmem:[%s1 + $0x20] sm:$0xf]
  %v79 = vld [vmem:[%s1 + $0x24] sm:$0xf]
  %v80 = vld [vmem:[%s1 + $0x28] sm:$0xf]
  %v81 = vld [vmem:[%s1 + $0x2c] sm:$0xf]
  %v82 = vld [vmem:[%s1 + $0x30] sm:$0xf]
  %v83 = vld [vmem:[%s1 + $0x34] sm:$0xf]
  %v84 = vld [vmem:[%s1 + $0x38] sm:$0xf]
  %v85 = vld [vmem:[%s1 + $0x3c] sm:$0xf]
  %v102 = vunpack.c.l.b16 %v54
  %v103 = vunpack.c.l.b16 %v55
  %v104 = vunpack.c.l.b16 %v56
  %v105 = vunpack.c.l.b16 %v57
  %v106 = vunpack.c.l.b16 %v58
  %v107 = vunpack.c.l.b16 %v59
  %v108 = vunpack.c.l.b16 %v60
  %v109 = vunpack.c.l.b16 %v61
  %v110 = vunpack.c.l.b16 %v62
  %v111 = vunpack.c.l.b16 %v63
  %v112 = vunpack.c.l.b16 %v64
  %v113 = vunpack.c.l.b16 %v65
  %v114 = vunpack.c.l.b16 %v66
  %v115 = vunpack.c.l.b16 %v67
  %v116 = vunpack.c.l.b16 %v68
  %v117 = vunpack.c.l.b16 %v69
  %v118 = vpack.c.b16 %v103, %v102
  %v119 = vpack.c.b16 %v105, %v104
  %v120 = vpack.c.b16 %v107, %v106
  %v121 = vpack.c.b16 %v109, %v108
  %v122 = vpack.c.b16 %v111, %v110
  %v123 = vpack.c.b16 %v113, %v112
  %v124 = vpack.c.b16 %v115, %v114
  %v125 = vpack.c.b16 %v117, %v116
  %v150 = vunpack.c.l.b16 %v70
  %v151 = vunpack.c.l.b16 %v71
  %v152 = vunpack.c.l.b16 %v72
  %v153 = vunpack.c.l.b16 %v73
  %v154 = vunpack.c.l.b16 %v74
  %v155 = vunpack.c.l.b16 %v75
  %v156 = vunpack.c.l.b16 %v76
  %v157 = vunpack.c.l.b16 %v77
  %v158 = vunpack.c.l.b16 %v78
  %v159 = vunpack.c.l.b16 %v79
  %v160 = vunpack.c.l.b16 %v80
  %v161 = vunpack.c.l.b16 %v81
  %v162 = vunpack.c.l.b16 %v82
  %v163 = vunpack.c.l.b16 %v83
  %v164 = vunpack.c.l.b16 %v84
  %v165 = vunpack.c.l.b16 %v85
  %v166 = vpack.c.b16 %v151, %v150
  %v167 = vpack.c.b16 %v153, %v152
  %v168 = vpack.c.b16 %v155, %v154
  %v169 = vpack.c.b16 %v157, %v156
  %v170 = vpack.c.b16 %v159, %v158
  %v171 = vpack.c.b16 %v161, %v160
  %v172 = vpack.c.b16 %v163, %v162
  %v173 = vpack.c.b16 %v165, %v164
  %182 = vmatprep.subr.bf16.mxu0 0
  %183 = vmatpush1.bf16.msra.mxu0 %v166
  %184 = vmatprep.subr.bf16.mxu0 0
  %185 = vmatpush1.bf16.msra.mxu0 %v167
  %186 = vmatprep.subr.bf16.mxu0 0
  %187 = vmatpush1.bf16.msra.mxu0 %v168
  %188 = vmatprep.subr.bf16.mxu0 0
  %189 = vmatpush1.bf16.msra.mxu0 %v169
  %190 = vmatprep.subr.bf16.mxu0 0
  %191 = vmatpush1.bf16.msra.mxu0 %v170
  %192 = vmatprep.subr.bf16.mxu0 0
  %193 = vmatpush1.bf16.msra.mxu0 %v171
  %194 = vmatprep.subr.bf16.mxu0 0
  %195 = vmatpush1.bf16.msra.mxu0 %v172
  %196 = vmatprep.subr.bf16.mxu0 0
  %197 = vmatpush1.bf16.msra.mxu0 %v173
  %198 = vmatprep.subr.bf16.mxu0 0
  %199 = vmatpush1.bf16.msra.mxu0 0
  %200 = vmatprep.subr.bf16.mxu0 0
  %201 = vmatpush1.bf16.msra.mxu0 0
  %202 = vmatprep.subr.bf16.mxu0 0
  %203 = vmatpush1.bf16.msra.mxu0 0
  %204 = vmatprep.subr.bf16.mxu0 0
  %205 = vmatpush1.bf16.msra.mxu0 0
  %206 = vmatprep.subr.bf16.mxu0 0
  %207 = vmatpush1.bf16.msra.mxu0 0
  %208 = vmatprep.subr.bf16.mxu0 0
  %209 = vmatpush1.bf16.msra.mxu0 0
  %210 = vmatprep.subr.bf16.mxu0 0
  %211 = vmatpush1.bf16.msra.mxu0 0
  %212 = vmatprep.subr.bf16.mxu0 0
  %213 = vmatpush1.bf16.msra.mxu0 0
  %214 = vmatprep.mubr.bf16.mxu0 0
  %215 = vmatmul.mubr.bf16.gmra.mrb[0].mxu0 %v118
  %v216 = vpop.f32.mrb[0].mxu0
  %v217 = vadd.f32 0.0, %v216
  %v218 = vpop.f32.mrb[0].mxu0
  %v219 = vpop.f32.mrb[0].mxu0
  %v220 = vadd.f32 0.0, %v219
  %v221 = vpop.f32.mrb[0].mxu0
  %222 = vmatprep.mubr.bf16.mxu0 0
  %223 = vmatmul.mubr.bf16.gmra.mrb[0].mxu0 %v119
  %v224 = vpop.f32.mrb[0].mxu0
  %v225 = vadd.f32 0.0, %v224
  %v226 = vpop.f32.mrb[0].mxu0
  %v227 = vpop.f32.mrb[0].mxu0
  %v228 = vadd.f32 0.0, %v227
  %v229 = vpop.f32.mrb[0].mxu0
  %230 = vmatprep.mubr.bf16.mxu0 0
  %231 = vmatmul.mubr.bf16.gmra.mrb[0].mxu0 %v120
  %v232 = vpop.f32.mrb[0].mxu0
  %v233 = vadd.f32 0.0, %v232
  %v234 = vpop.f32.mrb[0].mxu0
  %v235 = vpop.f32.mrb[0].mxu0
  %v236 = vadd.f32 0.0, %v235
  %v237 = vpop.f32.mrb[0].mxu0
  %238 = vmatprep.mubr.bf16.mxu0 0
  %239 = vmatmul.mubr.bf16.gmra.mrb[0].mxu0 %v121
  %v240 = vpop.f32.mrb[0].mxu0
  %v241 = vadd.f32 0.0, %v240
  %v242 = vpop.f32.mrb[0].mxu0
  %v243 = vpop.f32.mrb[0].mxu0
  %v244 = vadd.f32 0.0, %v243
  %v245 = vpop.f32.mrb[0].mxu0
  %246 = vmatprep.mubr.bf16.mxu0 0
  %247 = vmatmul.mubr.bf16.gmra.mrb[0].mxu0 %v122
  %v248 = vpop.f32.mrb[0].mxu0
  %v249 = vadd.f32 0.0, %v248
  %v250 = vpop.f32.mrb[0].mxu0
  %v251 = vpop.f32.mrb[0].mxu0
  %v252 = vadd.f32 0.0, %v251
  %v253 = vpop.f32.mrb[0].mxu0
  %254 = vmatprep.mubr.bf16.mxu0 0
  %255 = vmatmul.mubr.bf16.gmra.mrb[0].mxu0 %v123
  %v256 = vpop.f32.mrb[0].mxu0
  %v257 = vadd.f32 0.0, %v256
  %v258 = vpop.f32.mrb[0].mxu0
  %v259 = vpop.f32.mrb[0].mxu0
  %v260 = vadd.f32 0.0, %v259
  %v261 = vpop.f32.mrb[0].mxu0
  %262 = vmatprep.mubr.bf16.mxu0 0
  %263 = vmatmul.mubr.bf16.gmra.mrb[0].mxu0 %v124
  %v264 = vpop.f32.mrb[0].mxu0
  %v265 = vadd.f32 0.0, %v264
  %v266 = vpop.f32.mrb[0].mxu0
  %v267 = vpop.f32.mrb[0].mxu0
  %v268 = vadd.f32 0.0, %v267
  %v269 = vpop.f32.mrb[0].mxu0
  %270 = vmatprep.mubr.bf16.mxu0 0
  %271 = vmatmul.mubr.bf16.gmra.mrb[0].mxu0 %v125
  %v272 = vpop.f32.mrb[0].mxu0
  %v273 = vadd.f32 0.0, %v272
  %v274 = vpop.f32.mrb[0].mxu0
  %v275 = vpop.f32.mrb[0].mxu0
  %v276 = vadd.f32 0.0, %v275
  %v277 = vpop.f32.mrb[0].mxu0
  %278 = vdwg.mxu0
  %v279 = vadd.f32 %v38, %v217
  %v280 = vadd.f32 %v39, %v220
  %v281 = vadd.f32 %v40, %v225
  %v282 = vadd.f32 %v41, %v228
  %v283 = vadd.f32 %v42, %v233
  %v284 = vadd.f32 %v43, %v236
  %v285 = vadd.f32 %v44, %v241
  %v286 = vadd.f32 %v45, %v244
  %v287 = vadd.f32 %v46, %v249
  %v288 = vadd.f32 %v47, %v252
  %v289 = vadd.f32 %v48, %v257
  %v290 = vadd.f32 %v49, %v260
  %v291 = vadd.f32 %v50, %v265
  %v292 = vadd.f32 %v51, %v268
  %v293 = vadd.f32 %v52, %v273
  %v294 = vadd.f32 %v53, %v276
  %295 = vst [vmem:[#allocation2] sm:$0xff] %v279
  %296 = vst [vmem:[#allocation2 + $0x8] sm:$0xff] %v280
  %297 = vst [vmem:[#allocation2 + $0x10] sm:$0xff] %v281
  %298 = vst [vmem:[#allocation2 + $0x18] sm:$0xff] %v282
  %299 = vst [vmem:[#allocation2 + $0x20] sm:$0xff] %v283
  %300 = vst [vmem:[#allocation2 + $0x28] sm:$0xff] %v284
  %301 = vst [vmem:[#allocation2 + $0x30] sm:$0xff] %v285
  %302 = vst [vmem:[#allocation2 + $0x38] sm:$0xff] %v286
  %303 = vst [vmem:[#allocation2 + $0x40] sm:$0xff] %v287
  %304 = vst [vmem:[#allocation2 + $0x48] sm:$0xff] %v288
  %305 = vst [vmem:[#allocation2 + $0x50] sm:$0xff] %v289
  %306 = vst [vmem:[#allocation2 + $0x58] sm:$0xff] %v290
  %307 = vst [vmem:[#allocation2 + $0x60] sm:$0xff] %v291
  %308 = vst [vmem:[#allocation2 + $0x68] sm:$0xff] %v292
  %309 = vst [vmem:[#allocation2 + $0x70] sm:$0xff] %v293
  %310 = vst [vmem:[#allocation2 + $0x78] sm:$0xff] %v294
  // Predicated region
  $region22: #{_lambda_.10} parent=0 // pred_check
    %p311 = pneg %p18
  $region23: #{_lambda_.10} parent=0 // pred_check_branch
    %313 = sbr.rel (%p311) target = $region25
  $region24: #{_lambda_.10} parent=0 // pred_region
    %v314 = vld [vmem:[#allocation2] sm:$0xff]
    %v315 = vld [vmem:[#allocation2 + $0x8] sm:$0xff]
    %v316 = vld [vmem:[#allocation2 + $0x10] sm:$0xff]
    %v317 = vld [vmem:[#allocation2 + $0x18] sm:$0xff]
    %v318 = vld [vmem:[#allocation2 + $0x20] sm:$0xff]
    %v319 = vld [vmem:[#allocation2 + $0x28] sm:$0xff]
    %v320 = vld [vmem:[#allocation2 + $0x30] sm:$0xff]
    %v321 = vld [vmem:[#allocation2 + $0x38] sm:$0xff]
    %v322 = vld [vmem:[#allocation2 + $0x40] sm:$0xff]
    %v323 = vld [vmem:[#allocation2 + $0x48] sm:$0xff]
    %v324 = vld [vmem:[#allocation2 + $0x50] sm:$0xff]
    %v325 = vld [vmem:[#allocation2 + $0x58] sm:$0xff]
    %v326 = vld [vmem:[#allocation2 + $0x60] sm:$0xff]
    %v327 = vld [vmem:[#allocation2 + $0x68] sm:$0xff]
    %v328 = vld [vmem:[#allocation2 + $0x70] sm:$0xff]
    %v329 = vld [vmem:[#allocation2 + $0x78] sm:$0xff]
    %v330 = vld [vmem:[%s2] sm:$0x1]
    %v332 = vlaneseq
    %v333 = vshrl.u32 %v332, 7
    %v334 = vsub.s32 0, %v333
    %v335 = vrot.slane %v330, %v334
    %v337 = vmul.f32 %v314, %v335
    %v338 = vmul.f32 %v315, %v335
    %v339 = vmul.f32 %v316, %v335
    %v340 = vmul.f32 %v317, %v335
    %v341 = vmul.f32 %v318, %v335
    %v342 = vmul.f32 %v319, %v335
    %v343 = vmul.f32 %v320, %v335
    %v344 = vmul.f32 %v321, %v335
    %v345 = vmul.f32 %v322, %v335
    %v346 = vmul.f32 %v323, %v335
    %v347 = vmul.f32 %v324, %v335
    %v348 = vmul.f32 %v325, %v335
    %v349 = vmul.f32 %v326, %v335
    %v350 = vmul.f32 %v327, %v335
    %v351 = vmul.f32 %v328, %v335
    %v352 = vmul.f32 %v329, %v335
    %v353 = vld [vmem:[%s3] sm:$0x1]
    %v355 = vlaneseq
    %v356 = vshrl.u32 %v355, 7
    %v357 = vsub.s32 0, %v356
    %v358 = vrot.slane %v353, %v357
    %v360 = vadd.f32 %v337, %v358
    %v361 = vadd.f32 %v338, %v358
    %v362 = vadd.f32 %v339, %v358
    %v363 = vadd.f32 %v340, %v358
    %v364 = vadd.f32 %v341, %v358
    %v365 = vadd.f32 %v342, %v358
    %v366 = vadd.f32 %v343, %v358
    %v367 = vadd.f32 %v344, %v358
    %v368 = vadd.f32 %v345, %v358
    %v369 = vadd.f32 %v346, %v358
    %v370 = vadd.f32 %v347, %v358
    %v371 = vadd.f32 %v348, %v358
    %v372 = vadd.f32 %v349, %v358
    %v373 = vadd.f32 %v350, %v358
    %v374 = vadd.f32 %v351, %v358
    %v375 = vadd.f32 %v352, %v358
    %vm376 = vcmp.gt.f32.partialorder %v360, 0.0
    %vm377 = vcmp.gt.f32.partialorder %v361, 0.0
    %vm378 = vcmp.gt.f32.partialorder %v362, 0.0
    %vm379 = vcmp.gt.f32.partialorder %v363, 0.0
    %vm380 = vcmp.gt.f32.partialorder %v364, 0.0
    %vm381 = vcmp.gt.f32.partialorder %v365, 0.0
    %vm382 = vcmp.gt.f32.partialorder %v366, 0.0
    %vm383 = vcmp.gt.f32.partialorder %v367, 0.0
    %vm384 = vcmp.gt.f32.partialorder %v368, 0.0
    %vm385 = vcmp.gt.f32.partialorder %v369, 0.0
    %vm386 = vcmp.gt.f32.partialorder %v370, 0.0
    %vm387 = vcmp.gt.f32.partialorder %v371, 0.0
    %vm388 = vcmp.gt.f32.partialorder %v372, 0.0
    %vm389 = vcmp.gt.f32.partialorder %v373, 0.0
    %vm390 = vcmp.gt.f32.partialorder %v374, 0.0
    %vm391 = vcmp.gt.f32.partialorder %v375, 0.0
    %v392 = vmul.f32 %v360, 0.1
    %v393 = vmul.f32 %v361, 0.1
    %v394 = vmul.f32 %v362, 0.1
    %v395 = vmul.f32 %v363, 0.1
    %v396 = vmul.f32 %v364, 0.1
    %v397 = vmul.f32 %v365, 0.1
    %v398 = vmul.f32 %v366, 0.1
    %v399 = vmul.f32 %v367, 0.1
    %v400 = vmul.f32 %v368, 0.1
    %v401 = vmul.f32 %v369, 0.1
    %v402 = vmul.f32 %v370, 0.1
    %v403 = vmul.f32 %v371, 0.1
    %v404 = vmul.f32 %v372, 0.1
    %v405 = vmul.f32 %v373, 0.1
    %v406 = vmul.f32 %v374, 0.1
    %v407 = vmul.f32 %v375, 0.1
    %v408 = vsel %vm376, %v360, %v392
    %v409 = vsel %vm377, %v361, %v393
    %v410 = vsel %vm378, %v362, %v394
    %v411 = vsel %vm379, %v363, %v395
    %v412 = vsel %vm380, %v364, %v396
    %v413 = vsel %vm381, %v365, %v397
    %v414 = vsel %vm382, %v366, %v398
    %v415 = vsel %vm383, %v367, %v399
    %v416 = vsel %vm384, %v368, %v400
    %v417 = vsel %vm385, %v369, %v401
    %v418 = vsel %vm386, %v370, %v402
    %v419 = vsel %vm387, %v371, %v403
    %v420 = vsel %vm388, %v372, %v404
    %v421 = vsel %vm389, %v373, %v405
    %v422 = vsel %vm390, %v374, %v406
    %v423 = vsel %vm391, %v375, %v407
    %424 = vst [vmem:[%s4] sm:$0xff] %v408
    %425 = vst [vmem:[%s4 + $0x8] sm:$0xff] %v409
    %426 = vst [vmem:[%s4 + $0x10] sm:$0xff] %v410
    %427 = vst [vmem:[%s4 + $0x18] sm:$0xff] %v411
    %428 = vst [vmem:[%s4 + $0x20] sm:$0xff] %v412
    %429 = vst [vmem:[%s4 + $0x28] sm:$0xff] %v413
    %430 = vst [vmem:[%s4 + $0x30] sm:$0xff] %v414
    %431 = vst [vmem:[%s4 + $0x38] sm:$0xff] %v415
    %432 = vst [vmem:[%s4 + $0x40] sm:$0xff] %v416
    %433 = vst [vmem:[%s4 + $0x48] sm:$0xff] %v417
    %434 = vst [vmem:[%s4 + $0x50] sm:$0xff] %v418
    %435 = vst [vmem:[%s4 + $0x58] sm:$0xff] %v419
    %436 = vst [vmem:[%s4 + $0x60] sm:$0xff] %v420
    %437 = vst [vmem:[%s4 + $0x68] sm:$0xff] %v421
    %438 = vst [vmem:[%s4 + $0x70] sm:$0xff] %v422
    %439 = vst [vmem:[%s4 + $0x78] sm:$0xff] %v423
  $region25: #{_lambda_.10} parent=0 // pred_fallthru
    _
  // Predicated region
  $region26: #{_lambda_.10} parent=0 // pred_check
    _
  $region27: #{_lambda_.10} parent=0 // pred_check_branch
    %441 = sbr.rel (0) target = $region29
  $region28: #{_lambda_.10} parent=0 // pred_region
    _
  $region29: #{_lambda_.10} parent=0 // pred_fallthru
    _
  // Predicated region
  $region30: #{_lambda_.10} parent=0 // pred_check
    _
  $region31: #{_lambda_.10} parent=0 // pred_check_branch
    %443 = sbr.rel (0) target = $region33
  $region32: #{_lambda_.10} parent=0 // pred_region
    _
  $region33: #{_lambda_.10} parent=0 // pred_fallthru
    _

// kernel: _lambda_.13
$region0: #{_lambda_.13}
  #allocation0 [shape = 'u32[]', space=smem, size = 0x4, offset = 0x4, fixed_abs, tag = 'smem constant byte address 0x4 - core index']
  #allocation1 [shape = 'u32[144,128]{1,0:T(1,128)}', space=vmem, size = 0x12000, scoped, tag = 'internal scratch']
  %s0 = inlined_call_operand.vmem [shape: f32[8,512], index: 0, kind: input, shape index: {}]
  %s1 = inlined_call_operand.vmem [shape: f32[8,512], index: 1, kind: input, shape index: {}]
  %s2 = inlined_call_operand.vmem [shape: f32[8,512], index: 2, kind: output, shape index: {}]
  %s3 = sld [smem:[#allocation0]]
  $region18: #{_lambda_.13} parent=0
    _
  %s5 = ssub.s32 1, %s3
  %s6 = scalar_select 0, %s5, %s3
  // Predicated region
  $region2: #{_lambda_.13} parent=0 // pred_check
    _
  $region3: #{_lambda_.13} parent=0 // pred_check_branch
    %8 = sbr.rel (0) target = $region5
  $region4: #{_lambda_.13} parent=0 // pred_region
    _
  $region5: #{_lambda_.13} parent=0 // pred_fallthru
    _
  // Predicated region
  $region6: #{_lambda_.13} parent=0 // pred_check
    _
  $region7: #{_lambda_.13} parent=0 // pred_check_branch
    %10 = sbr.rel (0) target = $region9
  $region8: #{_lambda_.13} parent=0 // pred_region
    _
  $region9: #{_lambda_.13} parent=0 // pred_fallthru
    _
  %v11 = vld [vmem:[%s0] sm:$0xff]
  %v12 = vld [vmem:[%s0 + $0x8] sm:$0xff]
  %v13 = vld [vmem:[%s0 + $0x10] sm:$0xff]
  %v14 = vld [vmem:[%s0 + $0x18] sm:$0xff]
  %v15 = vld [vmem:[%s1] sm:$0xff]
  %v16 = vld [vmem:[%s1 + $0x8] sm:$0xff]
  %v17 = vld [vmem:[%s1 + $0x10] sm:$0xff]
  %v18 = vld [vmem:[%s1 + $0x18] sm:$0xff]
  %v19 = vadd.f32 %v11, %v15
  %v20 = vadd.f32 %v12, %v16
  %v21 = vadd.f32 %v13, %v17
  %v22 = vadd.f32 %v14, %v18
  %23 = vst [vmem:[%s2] sm:$0xff] %v19
  %24 = vst [vmem:[%s2 + $0x8] sm:$0xff] %v20
  %25 = vst [vmem:[%s2 + $0x10] sm:$0xff] %v21
  %26 = vst [vmem:[%s2 + $0x18] sm:$0xff] %v22
  // Predicated region
  $region10: #{_lambda_.13} parent=0 // pred_check
    _
  $region11: #{_lambda_.13} parent=0 // pred_check_branch
    %28 = sbr.rel (0) target = $region13
  $region12: #{_lambda_.13} parent=0 // pred_region
    _
  $region13: #{_lambda_.13} parent=0 // pred_fallthru
    _
  // Predicated region
  $region14: #{_lambda_.13} parent=0 // pred_check
    _
  $region15: #{_lambda_.13} parent=0 // pred_check_branch
    %30 = sbr.rel (0) target = $region17
  $region16: #{_lambda_.13} parent=0 // pred_region
    _
  $region17: #{_lambda_.13} parent=0 // pred_fallthru
    _

// kernel: _lambda_.14
$region0: #{_lambda_.14}
  #allocation0 [shape = 'u32[]', space=smem, size = 0x4, offset = 0x4, fixed_abs, tag = 'smem constant byte address 0x4 - core index']
  #allocation1 [shape = 'u32[144,128]{1,0:T(1,128)}', space=vmem, size = 0x12000, scoped, tag = 'internal scratch']
  #allocation2 [shape = 'f32[128,128]{1,0:T(8,128)}', space=vmem, size = 0x10000, scoped, tag = 'scratch operand']
  %s0 = inlined_call_operand.vmem [shape: bf16[128,128], index: 0, kind: input, shape index: {}]
  %s1 = inlined_call_operand.vmem [shape: bf16[128,128], index: 1, kind: input, shape index: {}]
  %s2 = inlined_call_operand.vmem [shape: f32[1,128], index: 2, kind: input, shape index: {}]
  %s3 = inlined_call_operand.vmem [shape: f32[1,128], index: 3, kind: input, shape index: {}]
  %s4 = inlined_call_operand.vmem [shape: f32[128,128], index: 4, kind: output, shape index: {}]
  %s5 = sld [smem:[#allocation0]]
  $region34: #{_lambda_.14} parent=0
    _
  %s7 = ssub.s32 1, %s5
  %s8 = scalar_select 0, %s7, %s5
  // Predicated region
  $region2: #{_lambda_.14} parent=0 // pred_check
    _
  $region3: #{_lambda_.14} parent=0 // pred_check_branch
    %10 = sbr.rel (0) target = $region5
  $region4: #{_lambda_.14} parent=0 // pred_region
    _
  $region5: #{_lambda_.14} parent=0 // pred_fallthru
    _
  // Predicated region
  $region6: #{_lambda_.14} parent=0 // pred_check
    _
  $region7: #{_lambda_.14} parent=0 // pred_check_branch
    %12 = sbr.rel (0) target = $region9
  $region8: #{_lambda_.14} parent=0 // pred_region
    _
  $region9: #{_lambda_.14} parent=0 // pred_fallthru
    _
  // Predicated region
  $region10: #{_lambda_.14} parent=0 // pred_check
    _
  $region11: #{_lambda_.14} parent=0 // pred_check_branch
    %14 = sbr.rel (0) target = $region13
  $region12: #{_lambda_.14} parent=0 // pred_region
    _
  $region13: #{_lambda_.14} parent=0 // pred_fallthru
    _
  // Predicated region
  $region14: #{_lambda_.14} parent=0 // pred_check
    _
  $region15: #{_lambda_.14} parent=0 // pred_check_branch
    %16 = sbr.rel (0) target = $region17
  $region16: #{_lambda_.14} parent=0 // pred_region
    _
  $region17: #{_lambda_.14} parent=0 // pred_fallthru
    _
  %p18 = scmp.eq.s32.totalorder 0, 0
  // Predicated region
  $region18: #{_lambda_.14} parent=0 // pred_check
    %p19 = pneg %p18
  $region19: #{_lambda_.14} parent=0 // pred_check_branch
    %21 = sbr.rel (%p19) target = $region21
  $region20: #{_lambda_.14} parent=0 // pred_region
    %22 = vst [vmem:[#allocation2] sm:$0xff] 0.0
    %23 = vst [vmem:[#allocation2 + $0x8] sm:$0xff] 0.0
    %24 = vst [vmem:[#allocation2 + $0x10] sm:$0xff] 0.0
    %25 = vst [vmem:[#allocation2 + $0x18] sm:$0xff] 0.0
    %26 = vst [vmem:[#allocation2 + $0x20] sm:$0xff] 0.0
    %27 = vst [vmem:[#allocation2 + $0x28] sm:$0xff] 0.0
    %28 = vst [vmem:[#allocation2 + $0x30] sm:$0xff] 0.0
    %29 = vst [vmem:[#allocation2 + $0x38] sm:$0xff] 0.0
    %30 = vst [vmem:[#allocation2 + $0x40] sm:$0xff] 0.0
    %31 = vst [vmem:[#allocation2 + $0x48] sm:$0xff] 0.0
    %32 = vst [vmem:[#allocation2 + $0x50] sm:$0xff] 0.0
    %33 = vst [vmem:[#allocation2 + $0x58] sm:$0xff] 0.0
    %34 = vst [vmem:[#allocation2 + $0x60] sm:$0xff] 0.0
    %35 = vst [vmem:[#allocation2 + $0x68] sm:$0xff] 0.0
    %36 = vst [vmem:[#allocation2 + $0x70] sm:$0xff] 0.0
    %37 = vst [vmem:[#allocation2 + $0x78] sm:$0xff] 0.0
  $region21: #{_lambda_.14} parent=0 // pred_fallthru
    _
  %v38 = vld [vmem:[#allocation2] sm:$0xff]
  %v39 = vld [vmem:[#allocation2 + $0x8] sm:$0xff]
  %v40 = vld [vmem:[#allocation2 + $0x10] sm:$0xff]
  %v41 = vld [vmem:[#allocation2 + $0x18] sm:$0xff]
  %v42 = vld [vmem:[#allocation2 + $0x20] sm:$0xff]
  %v43 = vld [vmem:[#allocation2 + $0x28] sm:$0xff]
  %v44 = vld [vmem:[#allocation2 + $0x30] sm:$0xff]
  %v45 = vld [vmem:[#allocation2 + $0x38] sm:$0xff]
  %v46 = vld [vmem:[#allocation2 + $0x40] sm:$0xff]
  %v47 = vld [vmem:[#allocation2 + $0x48] sm:$0xff]
  %v48 = vld [vmem:[#allocation2 + $0x50] sm:$0xff]
  %v49 = vld [vmem:[#allocation2 + $0x58] sm:$0xff]
  %v50 = vld [vmem:[#allocation2 + $0x60] sm:$0xff]
  %v51 = vld [vmem:[#allocation2 + $0x68] sm:$0xff]
  %v52 = vld [vmem:[#allocation2 + $0x70] sm:$0xff]
  %v53 = vld [vmem:[#allocation2 + $0x78] sm:$0xff]
  %v54 = vld [vmem:[%s0] sm:$0xf]
  %v55 = vld [vmem:[%s0 + $0x4] sm:$0xf]
  %v56 = vld [vmem:[%s0 + $0x8] sm:$0xf]
  %v57 = vld [vmem:[%s0 + $0xc] sm:$0xf]
  %v58 = vld [vmem:[%s0 + $0x10] sm:$0xf]
  %v59 = vld [vmem:[%s0 + $0x14] sm:$0xf]
  %v60 = vld [vmem:[%s0 + $0x18] sm:$0xf]
  %v61 = vld [vmem:[%s0 + $0x1c] sm:$0xf]
  %v62 = vld [vmem:[%s0 + $0x20] sm:$0xf]
  %v63 = vld [vmem:[%s0 + $0x24] sm:$0xf]
  %v64 = vld [vmem:[%s0 + $0x28] sm:$0xf]
  %v65 = vld [vmem:[%s0 + $0x2c] sm:$0xf]
  %v66 = vld [vmem:[%s0 + $0x30] sm:$0xf]
  %v67 = vld [vmem:[%s0 + $0x34] sm:$0xf]
  %v68 = vld [vmem:[%s0 + $0x38] sm:$0xf]
  %v69 = vld [vmem:[%s0 + $0x3c] sm:$0xf]
  %v70 = vld [vmem:[%s1] sm:$0xf]
  %v71 = vld [vmem:[%s1 + $0x4] sm:$0xf]
  %v72 = vld [vmem:[%s1 + $0x8] sm:$0xf]
  %v73 = vld [vmem:[%s1 + $0xc] sm:$0xf]
  %v74 = vld [vmem:[%s1 + $0x10] sm:$0xf]
  %v75 = vld [vmem:[%s1 + $0x14] sm:$0xf]
  %v76 = vld [vmem:[%s1 + $0x18] sm:$0xf]
  %v77 = vld [vmem:[%s1 + $0x1c] sm:$0xf]
  %v78 = vld [vmem:[%s1 + $0x20] sm:$0xf]
  %v79 = vld [vmem:[%s1 + $0x24] sm:$0xf]
  %v80 = vld [vmem:[%s1 + $0x28] sm:$0xf]
  %v81 = vld [vmem:[%s1 + $0x2c] sm:$0xf]
  %v82 = vld [vmem:[%s1 + $0x30] sm:$0xf]
  %v83 = vld [vmem:[%s1 + $0x34] sm:$0xf]
  %v84 = vld [vmem:[%s1 + $0x38] sm:$0xf]
  %v85 = vld [vmem:[%s1 + $0x3c] sm:$0xf]
  %v102 = vunpack.c.l.b16 %v54
  %v103 = vunpack.c.l.b16 %v55
  %v104 = vunpack.c.l.b16 %v56
  %v105 = vunpack.c.l.b16 %v57
  %v106 = vunpack.c.l.b16 %v58
  %v107 = vunpack.c.l.b16 %v59
  %v108 = vunpack.c.l.b16 %v60
  %v109 = vunpack.c.l.b16 %v61
  %v110 = vunpack.c.l.b16 %v62
  %v111 = vunpack.c.l.b16 %v63
  %v112 = vunpack.c.l.b16 %v64
  %v113 = vunpack.c.l.b16 %v65
  %v114 = vunpack.c.l.b16 %v66
  %v115 = vunpack.c.l.b16 %v67
  %v116 = vunpack.c.l.b16 %v68
  %v117 = vunpack.c.l.b16 %v69
  %v118 = vpack.c.b16 %v103, %v102
  %v119 = vpack.c.b16 %v105, %v104
  %v120 = vpack.c.b16 %v107, %v106
  %v121 = vpack.c.b16 %v109, %v108
  %v122 = vpack.c.b16 %v111, %v110
  %v123 = vpack.c.b16 %v113, %v112
  %v124 = vpack.c.b16 %v115, %v114
  %v125 = vpack.c.b16 %v117, %v116
  %v150 = vunpack.c.l.b16 %v70
  %v151 = vunpack.c.l.b16 %v71
  %v152 = vunpack.c.l.b16 %v72
  %v153 = vunpack.c.l.b16 %v73
  %v154 = vunpack.c.l.b16 %v74
  %v155 = vunpack.c.l.b16 %v75
  %v156 = vunpack.c.l.b16 %v76
  %v157 = vunpack.c.l.b16 %v77
  %v158 = vunpack.c.l.b16 %v78
  %v159 = vunpack.c.l.b16 %v79
  %v160 = vunpack.c.l.b16 %v80
  %v161 = vunpack.c.l.b16 %v81
  %v162 = vunpack.c.l.b16 %v82
  %v163 = vunpack.c.l.b16 %v83
  %v164 = vunpack.c.l.b16 %v84
  %v165 = vunpack.c.l.b16 %v85
  %v166 = vpack.c.b16 %v151, %v150
  %v167 = vpack.c.b16 %v153, %v152
  %v168 = vpack.c.b16 %v155, %v154
  %v169 = vpack.c.b16 %v157, %v156
  %v170 = vpack.c.b16 %v159, %v158
  %v171 = vpack.c.b16 %v161, %v160
  %v172 = vpack.c.b16 %v163, %v162
  %v173 = vpack.c.b16 %v165, %v164
  %182 = vmatprep.subr.bf16.mxu0 0
  %183 = vmatpush1.bf16.msra.mxu0 %v166
  %184 = vmatprep.subr.bf16.mxu0 0
  %185 = vmatpush1.bf16.msra.mxu0 %v167
  %186 = vmatprep.subr.bf16.mxu0 0
  %187 = vmatpush1.bf16.msra.mxu0 %v168
  %188 = vmatprep.subr.bf16.mxu0 0
  %189 = vmatpush1.bf16.msra.mxu0 %v169
  %190 = vmatprep.subr.bf16.mxu0 0
  %191 = vmatpush1.bf16.msra.mxu0 %v170
  %192 = vmatprep.subr.bf16.mxu0 0
  %193 = vmatpush1.bf16.msra.mxu0 %v171
  %194 = vmatprep.subr.bf16.mxu0 0
  %195 = vmatpush1.bf16.msra.mxu0 %v172
  %196 = vmatprep.subr.bf16.mxu0 0
  %197 = vmatpush1.bf16.msra.mxu0 %v173
  %198 = vmatprep.subr.bf16.mxu0 0
  %199 = vmatpush1.bf16.msra.mxu0 0
  %200 = vmatprep.subr.bf16.mxu0 0
  %201 = vmatpush1.bf16.msra.mxu0 0
  %202 = vmatprep.subr.bf16.mxu0 0
  %203 = vmatpush1.bf16.msra.mxu0 0
  %204 = vmatprep.subr.bf16.mxu0 0
  %205 = vmatpush1.bf16.msra.mxu0 0
  %206 = vmatprep.subr.bf16.mxu0 0
  %207 = vmatpush1.bf16.msra.mxu0 0
  %208 = vmatprep.subr.bf16.mxu0 0
  %209 = vmatpush1.bf16.msra.mxu0 0
  %210 = vmatprep.subr.bf16.mxu0 0
  %211 = vmatpush1.bf16.msra.mxu0 0
  %212 = vmatprep.subr.bf16.mxu0 0
  %213 = vmatpush1.bf16.msra.mxu0 0
  %214 = vmatprep.mubr.bf16.mxu0 0
  %215 = vmatmul.mubr.bf16.gmra.mrb[0].mxu0 %v118
  %v216 = vpop.f32.mrb[0].mxu0
  %v217 = vadd.f32 0.0, %v216
  %v218 = vpop.f32.mrb[0].mxu0
  %v219 = vpop.f32.mrb[0].mxu0
  %v220 = vadd.f32 0.0, %v219
  %v221 = vpop.f32.mrb[0].mxu0
  %222 = vmatprep.mubr.bf16.mxu0 0
  %223 = vmatmul.mubr.bf16.gmra.mrb[0].mxu0 %v119
  %v224 = vpop.f32.mrb[0].mxu0
  %v225 = vadd.f32 0.0, %v224
  %v226 = vpop.f32.mrb[0].mxu0
  %v227 = vpop.f32.mrb[0].mxu0
  %v228 = vadd.f32 0.0, %v227
  %v229 = vpop.f32.mrb[0].mxu0
  %230 = vmatprep.mubr.bf16.mxu0 0
  %231 = vmatmul.mubr.bf16.gmra.mrb[0].mxu0 %v120
  %v232 = vpop.f32.mrb[0].mxu0
  %v233 = vadd.f32 0.0, %v232
  %v234 = vpop.f32.mrb[0].mxu0
  %v235 = vpop.f32.mrb[0].mxu0
  %v236 = vadd.f32 0.0, %v235
  %v237 = vpop.f32.mrb[0].mxu0
  %238 = vmatprep.mubr.bf16.mxu0 0
  %239 = vmatmul.mubr.bf16.gmra.mrb[0].mxu0 %v121
  %v240 = vpop.f32.mrb[0].mxu0
  %v241 = vadd.f32 0.0, %v240
  %v242 = vpop.f32.mrb[0].mxu0
  %v243 = vpop.f32.mrb[0].mxu0
  %v244 = vadd.f32 0.0, %v243
  %v245 = vpop.f32.mrb[0].mxu0
  %246 = vmatprep.mubr.bf16.mxu0 0
  %247 = vmatmul.mubr.bf16.gmra.mrb[0].mxu0 %v122
  %v248 = vpop.f32.mrb[0].mxu0
  %v249 = vadd.f32 0.0, %v248
  %v250 = vpop.f32.mrb[0].mxu0
  %v251 = vpop.f32.mrb[0].mxu0
  %v252 = vadd.f32 0.0, %v251
  %v253 = vpop.f32.mrb[0].mxu0
  %254 = vmatprep.mubr.bf16.mxu0 0
  %255 = vmatmul.mubr.bf16.gmra.mrb[0].mxu0 %v123
  %v256 = vpop.f32.mrb[0].mxu0
  %v257 = vadd.f32 0.0, %v256
  %v258 = vpop.f32.mrb[0].mxu0
  %v259 = vpop.f32.mrb[0].mxu0
  %v260 = vadd.f32 0.0, %v259
  %v261 = vpop.f32.mrb[0].mxu0
  %262 = vmatprep.mubr.bf16.mxu0 0
  %263 = vmatmul.mubr.bf16.gmra.mrb[0].mxu0 %v124
  %v264 = vpop.f32.mrb[0].mxu0
  %v265 = vadd.f32 0.0, %v264
  %v266 = vpop.f32.mrb[0].mxu0
  %v267 = vpop.f32.mrb[0].mxu0
  %v268 = vadd.f32 0.0, %v267
  %v269 = vpop.f32.mrb[0].mxu0
  %270 = vmatprep.mubr.bf16.mxu0 0
  %271 = vmatmul.mubr.bf16.gmra.mrb[0].mxu0 %v125
  %v272 = vpop.f32.mrb[0].mxu0
  %v273 = vadd.f32 0.0, %v272
  %v274 = vpop.f32.mrb[0].mxu0
  %v275 = vpop.f32.mrb[0].mxu0
  %v276 = vadd.f32 0.0, %v275
  %v277 = vpop.f32.mrb[0].mxu0
  %278 = vdwg.mxu0
  %v279 = vadd.f32 %v38, %v217
  %v280 = vadd.f32 %v39, %v220
  %v281 = vadd.f32 %v40, %v225
  %v282 = vadd.f32 %v41, %v228
  %v283 = vadd.f32 %v42, %v233
  %v284 = vadd.f32 %v43, %v236
  %v285 = vadd.f32 %v44, %v241
  %v286 = vadd.f32 %v45, %v244
  %v287 = vadd.f32 %v46, %v249
  %v288 = vadd.f32 %v47, %v252
  %v289 = vadd.f32 %v48, %v257
  %v290 = vadd.f32 %v49, %v260
  %v291 = vadd.f32 %v50, %v265
  %v292 = vadd.f32 %v51, %v268
  %v293 = vadd.f32 %v52, %v273
  %v294 = vadd.f32 %v53, %v276
  %295 = vst [vmem:[#allocation2] sm:$0xff] %v279
  %296 = vst [vmem:[#allocation2 + $0x8] sm:$0xff] %v280
  %297 = vst [vmem:[#allocation2 + $0x10] sm:$0xff] %v281
  %298 = vst [vmem:[#allocation2 + $0x18] sm:$0xff] %v282
  %299 = vst [vmem:[#allocation2 + $0x20] sm:$0xff] %v283
  %300 = vst [vmem:[#allocation2 + $0x28] sm:$0xff] %v284
  %301 = vst [vmem:[#allocation2 + $0x30] sm:$0xff] %v285
  %302 = vst [vmem:[#allocation2 + $0x38] sm:$0xff] %v286
  %303 = vst [vmem:[#allocation2 + $0x40] sm:$0xff] %v287
  %304 = vst [vmem:[#allocation2 + $0x48] sm:$0xff] %v288
  %305 = vst [vmem:[#allocation2 + $0x50] sm:$0xff] %v289
  %306 = vst [vmem:[#allocation2 + $0x58] sm:$0xff] %v290
  %307 = vst [vmem:[#allocation2 + $0x60] sm:$0xff] %v291
  %308 = vst [vmem:[#allocation2 + $0x68] sm:$0xff] %v292
  %309 = vst [vmem:[#allocation2 + $0x70] sm:$0xff] %v293
  %310 = vst [vmem:[#allocation2 + $0x78] sm:$0xff] %v294
  // Predicated region
  $region22: #{_lambda_.14} parent=0 // pred_check
    %p311 = pneg %p18
  $region23: #{_lambda_.14} parent=0 // pred_check_branch
    %313 = sbr.rel (%p311) target = $region25
  $region24: #{_lambda_.14} parent=0 // pred_region
    %v314 = vld [vmem:[#allocation2] sm:$0xff]
    %v315 = vld [vmem:[#allocation2 + $0x8] sm:$0xff]
    %v316 = vld [vmem:[#allocation2 + $0x10] sm:$0xff]
    %v317 = vld [vmem:[#allocation2 + $0x18] sm:$0xff]
    %v318 = vld [vmem:[#allocation2 + $0x20] sm:$0xff]
    %v319 = vld [vmem:[#allocation2 + $0x28] sm:$0xff]
    %v320 = vld [vmem:[#allocation2 + $0x30] sm:$0xff]
    %v321 = vld [vmem:[#allocation2 + $0x38] sm:$0xff]
    %v322 = vld [vmem:[#allocation2 + $0x40] sm:$0xff]
    %v323 = vld [vmem:[#allocation2 + $0x48] sm:$0xff]
    %v324 = vld [vmem:[#allocation2 + $0x50] sm:$0xff]
    %v325 = vld [vmem:[#allocation2 + $0x58] sm:$0xff]
    %v326 = vld [vmem:[#allocation2 + $0x60] sm:$0xff]
    %v327 = vld [vmem:[#allocation2 + $0x68] sm:$0xff]
    %v328 = vld [vmem:[#allocation2 + $0x70] sm:$0xff]
    %v329 = vld [vmem:[#allocation2 + $0x78] sm:$0xff]
    %v330 = vld [vmem:[%s2] sm:$0x1]
    %v332 = vlaneseq
    %v333 = vshrl.u32 %v332, 7
    %v334 = vsub.s32 0, %v333
    %v335 = vrot.slane %v330, %v334
    %v337 = vmul.f32 %v314, %v335
    %v338 = vmul.f32 %v315, %v335
    %v339 = vmul.f32 %v316, %v335
    %v340 = vmul.f32 %v317, %v335
    %v341 = vmul.f32 %v318, %v335
    %v342 = vmul.f32 %v319, %v335
    %v343 = vmul.f32 %v320, %v335
    %v344 = vmul.f32 %v321, %v335
    %v345 = vmul.f32 %v322, %v335
    %v346 = vmul.f32 %v323, %v335
    %v347 = vmul.f32 %v324, %v335
    %v348 = vmul.f32 %v325, %v335
    %v349 = vmul.f32 %v326, %v335
    %v350 = vmul.f32 %v327, %v335
    %v351 = vmul.f32 %v328, %v335
    %v352 = vmul.f32 %v329, %v335
    %v353 = vld [vmem:[%s3] sm:$0x1]
    %v355 = vlaneseq
    %v356 = vshrl.u32 %v355, 7
    %v357 = vsub.s32 0, %v356
    %v358 = vrot.slane %v353, %v357
    %v360 = vadd.f32 %v337, %v358
    %v361 = vadd.f32 %v338, %v358
    %v362 = vadd.f32 %v339, %v358
    %v363 = vadd.f32 %v340, %v358
    %v364 = vadd.f32 %v341, %v358
    %v365 = vadd.f32 %v342, %v358
    %v366 = vadd.f32 %v343, %v358
    %v367 = vadd.f32 %v344, %v358
    %v368 = vadd.f32 %v345, %v358
    %v369 = vadd.f32 %v346, %v358
    %v370 = vadd.f32 %v347, %v358
    %v371 = vadd.f32 %v348, %v358
    %v372 = vadd.f32 %v349, %v358
    %v373 = vadd.f32 %v350, %v358
    %v374 = vadd.f32 %v351, %v358
    %v375 = vadd.f32 %v352, %v358
    %376 = vst [vmem:[%s4] sm:$0xff] %v360
    %377 = vst [vmem:[%s4 + $0x8] sm:$0xff] %v361
    %378 = vst [vmem:[%s4 + $0x10] sm:$0xff] %v362
    %379 = vst [vmem:[%s4 + $0x18] sm:$0xff] %v363
    %380 = vst [vmem:[%s4 + $0x20] sm:$0xff] %v364
    %381 = vst [vmem:[%s4 + $0x28] sm:$0xff] %v365
    %382 = vst [vmem:[%s4 + $0x30] sm:$0xff] %v366
    %383 = vst [vmem:[%s4 + $0x38] sm:$0xff] %v367
    %384 = vst [vmem:[%s4 + $0x40] sm:$0xff] %v368
    %385 = vst [vmem:[%s4 + $0x48] sm:$0xff] %v369
    %386 = vst [vmem:[%s4 + $0x50] sm:$0xff] %v370
    %387 = vst [vmem:[%s4 + $0x58] sm:$0xff] %v371
    %388 = vst [vmem:[%s4 + $0x60] sm:$0xff] %v372
    %389 = vst [vmem:[%s4 + $0x68] sm:$0xff] %v373
    %390 = vst [vmem:[%s4 + $0x70] sm:$0xff] %v374
    %391 = vst [vmem:[%s4 + $0x78] sm:$0xff] %v375
  $region25: #{_lambda_.14} parent=0 // pred_fallthru
    _
  // Predicated region
  $region26: #{_lambda_.14} parent=0 // pred_check
    _
  $region27: #{_lambda_.14} parent=0 // pred_check_branch
    %393 = sbr.rel (0) target = $region29
  $region28: #{_lambda_.14} parent=0 // pred_region
    _
  $region29: #{_lambda_.14} parent=0 // pred_fallthru
    _
  // Predicated region
  $region30: #{_lambda_.14} parent=0 // pred_check
    _
  $region31: #{_lambda_.14} parent=0 // pred_check_branch
    %395 = sbr.rel (0) target = $region33
  $region32: #{_lambda_.14} parent=0 // pred_region
    _
  $region33: #{_lambda_.14} parent=0 // pred_fallthru
    _

// kernel: _lambda_.15
$region0: #{_lambda_.15}
  #allocation0 [shape = 'u32[]', space=smem, size = 0x4, offset = 0x4, fixed_abs, tag = 'smem constant byte address 0x4 - core index']
  #allocation1 [shape = 'u32[144,128]{1,0:T(1,128)}', space=vmem, size = 0x12000, scoped, tag = 'internal scratch']
  %s0 = inlined_call_operand.vmem [shape: f32[2,3,8,8,9], index: 0, kind: input, shape index: {}]
  %s1 = inlined_call_operand.vmem [shape: f32[2,3,8,8,9], index: 1, kind: output, shape index: {}]
  %s2 = sld [smem:[#allocation0]]
  $region37: #{_lambda_.15} parent=0
    _
  %s4 = ssub.s32 1, %s2
  %s5 = scalar_select 0, %s4, %s2
  loop: start=0, step=1, limit=8
  $region2: #{_lambda_.15} parent=0 // loop_pre_header
    _
  $region3: #{_lambda_.15} parent=0 // loop_header
    %s7 = sphi 0, %s11
    %p8 = scmp.ge.s32.totalorder %s7, 8
    %s14 = sphi 0, %s26
    %s15 = sphi 0, %s22
    %s16 = sphi 0, %s14
    %s17 = sphi 0, %s15
    %s18 = sphi 0, %s16
    %s19 = sphi 0, %s17
    %s31 = sphi 0, %s33
    %s34 = sphi 0, %s31
    %s35 = sphi 0, %s34
    %s51 = sphi 0, %s35
    %s59 = sphi 0, %s61
    %s62 = sphi 0, %s59
    %s63 = sphi 0, %s62
    %s79 = sphi 0, %s63
  $region4: #{_lambda_.15} parent=0 // loop_header_branch
    %10 = sbr.rel (%p8) target = $region8
  $region5: #{_lambda_.15} parent=0 // loop_body
    %s12 = ssub.s32 %s7, 1
    %s13 = ssub.s32 %s7, 2
    %s20 = sadd.s32 1, %s15
    %p21 = scmp.ge.s32.totalorder %s20, 3
    %s22 = scalar_select %p21, 0, %s20
    %s23 = sadd.s32 1, %s14
    %s24 = scalar_select %p21, %s23, %s14
    %p25 = scmp.ge.s32.totalorder %s24, 2
    %s26 = scalar_select %p25, 0, %s24
    %s27 = ssub.s32 %s14, %s26
    %s28 = ssub.s32 %s15, %s22
    %s29 = sor.u32 %s27, %s28
    %p30 = scmp.eq.s32.totalorder %s29, 0
    %s32 = sadd.s32 %s31, 1
    %s33 = scalar_select %p30, %s31, %s32
    %p36 = pneg %p30
    %p37 = scmp.eq.s32.totalorder %s7, 5
    %p38 = por %p36, %p37
    %p39 = scmp.ne.s32.totalorder %s31, %s34
    %p40 = scmp.eq.s32.totalorder %s7, 0
    %p41 = por %p39, %p40
    %p42 = scmp.ne.s32.totalorder %s31, %s34
    %p43 = scmp.eq.s32.totalorder %s12, 5
    %p44 = por %p42, %p43
    %p45 = scmp.ne.s32.totalorder %s34, %s35
    %p46 = scmp.eq.s32.totalorder %s12, 0
    %p47 = por %p45, %p46
    %p48 = scmp.ne.s32.totalorder %s34, %s35
    %p49 = scmp.eq.s32.totalorder %s13, 5
    %p50 = por %p48, %p49
    %p52 = scmp.ne.s32.totalorder %s35, %s51
    %p53 = scmp.eq.s32.totalorder %s13, 0
    %p54 = por %p52, %p53
    %s55 = ssub.s32 %s14, %s26
    %s56 = ssub.s32 %s15, %s22
    %s57 = sor.u32 %s55, %s56
    %p58 = scmp.eq.s32.totalorder %s57, 0
    %s60 = sadd.s32 %s59, 1
    %s61 = scalar_select %p58, %s59, %s60
    %p64 = pneg %p58
    %p65 = scmp.eq.s32.totalorder %s7, 5
    %p66 = por %p64, %p65
    %p67 = scmp.ne.s32.totalorder %s59, %s62
    %p68 = scmp.eq.s32.totalorder %s7, 0
    %p69 = por %p67, %p68
    %p70 = scmp.ne.s32.totalorder %s59, %s62
    %p71 = scmp.eq.s32.totalorder %s12, 5
    %p72 = por %p70, %p71
    %p73 = scmp.ne.s32.totalorder %s62, %s63
    %p74 = scmp.eq.s32.totalorder %s12, 0
    %p75 = por %p73, %p74
    %p76 = scmp.ne.s32.totalorder %s62, %s63
    %p77 = scmp.eq.s32.totalorder %s13, 5
    %p78 = por %p76, %p77
    %p80 = scmp.ne.s32.totalorder %s63, %s79
    %p81 = scmp.eq.s32.totalorder %s13, 0
    %p82 = por %p80, %p81
    %p83 = scmp.le.s32.totalorder 1, %s7
    %p84 = scmp.lt.s32.totalorder %s7, 7
    %p85 = pnand %p83, %p84
    %p86 = pneg %p85
    // Predicated region
    $region9: #{_lambda_.15} parent=5 // pred_check
      _
    $region10: #{_lambda_.15} parent=5 // pred_check_branch
      %88 = sbr.rel (%p85) target = $region12
    $region11: #{_lambda_.15} parent=5 // pred_region
      %s89 = ssub.s32 %s7, 1
    $region12: #{_lambda_.15} parent=5 // pred_fallthru
      _
    %p90 = scmp.lt.s32.totalorder %s7, 6
    // Predicated region
    $region13: #{_lambda_.15} parent=5 // pred_check
      %p91 = pneg %p90
    $region14: #{_lambda_.15} parent=5 // pred_check_branch
      %93 = sbr.rel (%p91) target = $region16
    $region15: #{_lambda_.15} parent=5 // pred_region
      // Predicated region
      $region17: #{_lambda_.15} parent=15 // pred_check
        %p94 = pneg %p41
      $region18: #{_lambda_.15} parent=15 // pred_check_branch
        %96 = sbr.rel (%p94) target = $region20
      $region19: #{_lambda_.15} parent=15 // pred_region
        %p97 = scmp.lt.s32.totalorder %s14, 1
        %s98 = scalar_select %p97, %s14, 1
        %p99 = scmp.lt.s32.totalorder %s15, 2
        %s100 = scalar_select %p99, %s15, 2
        %s101 = smul.addr %s100, 8
        %s102 = smul.addr %s98, 24
        %s103 = sadd.s32 %s101, %s102
        %s104 = smul.addr %s103, 8
        %s105 = scalar_lea.vmem %s0, %s104
      $region20: #{_lambda_.15} parent=15 // pred_fallthru
        _
    $region16: #{_lambda_.15} parent=5 // pred_fallthru
      _
    %p106 = scmp.le.s32.totalorder 1, %s7
    %p107 = scmp.lt.s32.totalorder %s7, 7
    %p108 = pnand %p106, %p107
    %p109 = pneg %p108
    // Predicated region
    $region21: #{_lambda_.15} parent=5 // pred_check
      _
    $region22: #{_lambda_.15} parent=5 // pred_check_branch
      %111 = sbr.rel (%p108) target = $region24
    $region23: #{_lambda_.15} parent=5 // pred_region
      %s112 = ssub.s32 %s7, 1
      %p113 = scmp.lt.s32.totalorder %s16, 1
      %s114 = scalar_select %p113, %s16, 1
      %p115 = scmp.lt.s32.totalorder %s17, 2
      %s116 = scalar_select %p115, %s17, 2
      %s117 = smul.addr %s116, 8
      %s118 = smul.addr %s114, 24
      %s119 = sadd.s32 %s117, %s118
      %s120 = smul.addr %s119, 8
      %s121 = scalar_lea.vmem %s0, %s120
      %p122 = pneg %p47
      %p123 = pneg %p44
      %p124 = pneg %p75
      %p125 = pneg %p72
      %p126 = scmp.lt.s32.totalorder %s16, 1
      %s127 = scalar_select %p126, %s16, 1
      %p128 = scmp.lt.s32.totalorder %s17, 2
      %s129 = scalar_select %p128, %s17, 2
      %s130 = smul.addr %s129, 8
      %s131 = smul.addr %s127, 24
      %s132 = sadd.s32 %s130, %s131
      %s133 = smul.addr %s132, 8
      %s134 = scalar_lea.vmem %s1, %s133
      %p135 = scmp.lt.s32.totalorder %s16, 1
      %s136 = scalar_select %p135, %s16, 1
      %p137 = scmp.lt.s32.totalorder %s17, 2
      %s138 = scalar_select %p137, %s17, 2
      %s139 = smul.addr %s138, 8
      %s140 = smul.addr %s136, 24
      %s141 = sadd.s32 %s139, %s140
      %s142 = smul.addr %s141, 8
      %s143 = scalar_lea.vmem %s0, %s142
      %p144 = scmp.lt.s32.totalorder %s16, 1
      %s145 = scalar_select %p144, %s16, 1
      %p146 = scmp.lt.s32.totalorder %s17, 2
      %s147 = scalar_select %p146, %s17, 2
      %s148 = smul.addr %s147, 8
      %s149 = smul.addr %s145, 24
      %s150 = sadd.s32 %s148, %s149
      %s151 = smul.addr %s150, 8
      %s152 = scalar_lea.vmem %s1, %s151
      %v153 = vld [vmem:[%s143] sm:$0xff]
      %v154 = vld [vmem:[%s143 + $0x8] sm:$0xff]
      %v155 = vld [vmem:[%s143 + $0x10] sm:$0xff]
      %v156 = vld [vmem:[%s143 + $0x18] sm:$0xff]
      %v157 = vld [vmem:[%s143 + $0x20] sm:$0xff]
      %v158 = vld [vmem:[%s143 + $0x28] sm:$0xff]
      %v159 = vld [vmem:[%s143 + $0x30] sm:$0xff]
      %v160 = vld [vmem:[%s143 + $0x38] sm:$0xff]
      %v161 = vcvt.s32.f32 0
      %v162 = vcvt.s32.f32 1
      %v163 = vcvt.s32.f32 2
      %v164 = vcvt.s32.f32 3
      %v165 = vcvt.s32.f32 4
      %v166 = vcvt.s32.f32 5
      %v167 = vcvt.s32.f32 6
      %v168 = vcvt.s32.f32 7
      %v169 = vlaneseq
      %v170 = vshrl.u32 %v169, 7
      %v171 = vcvt.s32.f32 %v170
      %v172 = vlaneseq
      %v173 = vand.u32 %v172, 127
      %p174 = scmp.eq.s32.totalorder %s17, 1
      %s175 = scalar_select %p174, 8.0, 5.0
      %s176 = scalar_select %p174, 15.0, 6.5
      %p177 = scmp.eq.s32.totalorder %s17, 2
      %s178 = scalar_select %p177, 16.5, %s175
      %s179 = scalar_select %p177, 11.5, %s176
      %vm180 = vcmp.lt.s32.totalorder %v173, 2
      %vm181 = vcmp.ge.s32.totalorder %v173, 2
      %vm182 = vcmp.lt.s32.totalorder %v173, 4
      %vm183 = vmand %vm181, %vm182
      %v184 = vxor.u32 %v153, 2147483648
      %v185 = vxor.u32 %v154, 2147483648
      %v186 = vxor.u32 %v155, 2147483648
      %v187 = vxor.u32 %v156, 2147483648
      %v188 = vxor.u32 %v157, 2147483648
      %v189 = vxor.u32 %v158, 2147483648
      %v190 = vxor.u32 %v159, 2147483648
      %v191 = vxor.u32 %v160, 2147483648
      %v192 = vmul.f32 %v184, 1.442695
      %v193 = vpow.pop %v192
      %v194 = vmul.f32 %v185, 1.442695
      %v195 = vpow.pop %v194
      %v196 = vmul.f32 %v186, 1.442695
      %v197 = vpow.pop %v196
      %v198 = vmul.f32 %v187, 1.442695
      %v199 = vpow.pop %v198
      %v200 = vmul.f32 %v188, 1.442695
      %v201 = vpow.pop %v200
      %v202 = vmul.f32 %v189, 1.442695
      %v203 = vpow.pop %v202
      %v204 = vmul.f32 %v190, 1.442695
      %v205 = vpow.pop %v204
      %v206 = vmul.f32 %v191, 1.442695
      %v207 = vpow.pop %v206
      %v208 = vadd.f32 %v193, 1.0
      %v209 = vadd.f32 %v195, 1.0
      %v210 = vadd.f32 %v197, 1.0
      %v211 = vadd.f32 %v199, 1.0
      %v212 = vadd.f32 %v201, 1.0
      %v213 = vadd.f32 %v203, 1.0
      %v214 = vadd.f32 %v205, 1.0
      %v215 = vadd.f32 %v207, 1.0
      %v216 = vrcp.pop %v208
      %v217 = vmul.f32 1.0, %v216
      %v218 = vrcp.pop %v209
      %v219 = vmul.f32 1.0, %v218
      %v220 = vrcp.pop %v210
      %v221 = vmul.f32 1.0, %v220
      %v222 = vrcp.pop %v211
      %v223 = vmul.f32 1.0, %v222
      %v224 = vrcp.pop %v212
      %v225 = vmul.f32 1.0, %v224
      %v226 = vrcp.pop %v213
      %v227 = vmul.f32 1.0, %v226
      %v228 = vrcp.pop %v214
      %v229 = vmul.f32 1.0, %v228
      %v230 = vrcp.pop %v215
      %v231 = vmul.f32 1.0, %v230
      %v232 = vsel %vm183, %v153, 0.0
      %v233 = vsel %vm183, %v154, 0.0
      %v234 = vsel %vm183, %v155, 0.0
      %v235 = vsel %vm183, %v156, 0.0
      %v236 = vsel %vm183, %v157, 0.0
      %v237 = vsel %vm183, %v158, 0.0
      %v238 = vsel %vm183, %v159, 0.0
      %v239 = vsel %vm183, %v160, 0.0
      %v240 = vmul.f32 %v232, 1.442695
      %v241 = vpow.pop %v240
      %v242 = vmul.f32 %v233, 1.442695
      %v243 = vpow.pop %v242
      %v244 = vmul.f32 %v234, 1.442695
      %v245 = vpow.pop %v244
      %v246 = vmul.f32 %v235, 1.442695
      %v247 = vpow.pop %v246
      %v248 = vmul.f32 %v236, 1.442695
      %v249 = vpow.pop %v248
      %v250 = vmul.f32 %v237, 1.442695
      %v251 = vpow.pop %v250
      %v252 = vmul.f32 %v238, 1.442695
      %v253 = vpow.pop %v252
      %v254 = vmul.f32 %v239, 1.442695
      %v255 = vpow.pop %v254
      %vm256 = vcmp.eq.s32.totalorder %v173, 0
      %v257 = vsel %vm256, %v171, %v161
      %v258 = vsel %vm256, %v171, %v162
      %v259 = vsel %vm256, %v171, %v163
      %v260 = vsel %vm256, %v171, %v164
      %v261 = vsel %vm256, %v171, %v165
      %v262 = vsel %vm256, %v171, %v166
      %v263 = vsel %vm256, %v171, %v167
      %v264 = vsel %vm256, %v171, %v168
      %vm265 = vcmp.eq.s32.totalorder %v173, 2
      %v266 = vstv %s178
      %v267 = vstv %s179
      %v268 = vsel %vm265, %v266, %v267
      %v269 = vadd.f32 %v217, %v257
      %v270 = vadd.f32 %v219, %v258
      %v271 = vadd.f32 %v221, %v259
      %v272 = vadd.f32 %v223, %v260
      %v273 = vadd.f32 %v225, %v261
      %v274 = vadd.f32 %v227, %v262
      %v275 = vadd.f32 %v229, %v263
      %v276 = vadd.f32 %v231, %v264
      %v277 = vmul.f32 %v269, 2.0
      %v278 = vmul.f32 %v270, 2.0
      %v279 = vmul.f32 %v271, 2.0
      %v280 = vmul.f32 %v272, 2.0
      %v281 = vmul.f32 %v273, 2.0
      %v282 = vmul.f32 %v274, 2.0
      %v283 = vmul.f32 %v275, 2.0
      %v284 = vmul.f32 %v276, 2.0
      %v285 = vmul.f32 %v268, 2.0
      %v286 = vmul.f32 %v241, %v285
      %v287 = vmul.f32 %v243, %v285
      %v288 = vmul.f32 %v245, %v285
      %v289 = vmul.f32 %v247, %v285
      %v290 = vmul.f32 %v249, %v285
      %v291 = vmul.f32 %v251, %v285
      %v292 = vmul.f32 %v253, %v285
      %v293 = vmul.f32 %v255, %v285
      %v294 = vsel %vm183, %v286, %v217
      %v295 = vsel %vm183, %v287, %v219
      %v296 = vsel %vm183, %v288, %v221
      %v297 = vsel %vm183, %v289, %v223
      %v298 = vsel %vm183, %v290, %v225
      %v299 = vsel %vm183, %v291, %v227
      %v300 = vsel %vm183, %v292, %v229
      %v301 = vsel %vm183, %v293, %v231
      %v302 = vsel %vm180, %v277, %v294
      %v303 = vsel %vm180, %v278, %v295
      %v304 = vsel %vm180, %v279, %v296
      %v305 = vsel %vm180, %v280, %v297
      %v306 = vsel %vm180, %v281, %v298
      %v307 = vsel %vm180, %v282, %v299
      %v308 = vsel %vm180, %v283, %v300
      %v309 = vsel %vm180, %v284, %v301
      %vm310 = vcmask 72704
      %311 = vst.msk [vmem:[%s152] sm:$0xff] %vm310, %v302
      %312 = vst.msk [vmem:[%s152 + $0x8] sm:$0xff] %vm310, %v303
      %313 = vst.msk [vmem:[%s152 + $0x10] sm:$0xff] %vm310, %v304
      %314 = vst.msk [vmem:[%s152 + $0x18] sm:$0xff] %vm310, %v305
      %315 = vst.msk [vmem:[%s152 + $0x20] sm:$0xff] %vm310, %v306
      %316 = vst.msk [vmem:[%s152 + $0x28] sm:$0xff] %vm310, %v307
      %317 = vst.msk [vmem:[%s152 + $0x30] sm:$0xff] %vm310, %v308
      %318 = vst.msk [vmem:[%s152 + $0x38] sm:$0xff] %vm310, %v309
      %p319 = scmp.lt.s32.totalorder %s16, 1
      %s320 = scalar_select %p319, %s16, 1
      %p321 = scmp.lt.s32.totalorder %s17, 2
      %s322 = scalar_select %p321, %s17, 2
      %s323 = smul.addr %s322, 8
      %s324 = smul.addr %s320, 24
      %s325 = sadd.s32 %s323, %s324
      %s326 = smul.addr %s325, 8
      %s327 = scalar_lea.vmem %s1, %s326
      // Predicated region
      $region25: #{_lambda_.15} parent=23 // pred_check
        %p328 = pneg %p72
      $region26: #{_lambda_.15} parent=23 // pred_check_branch
        %330 = sbr.rel (%p328) target = $region28
      $region27: #{_lambda_.15} parent=23 // pred_region
        _
      $region28: #{_lambda_.15} parent=23 // pred_fallthru
        _
    $region24: #{_lambda_.15} parent=5 // pred_fallthru
      _
    %p331 = scmp.le.s32.totalorder 2, %s7
    // Predicated region
    $region29: #{_lambda_.15} parent=5 // pred_check
      %p332 = pneg %p331
    $region30: #{_lambda_.15} parent=5 // pred_check_branch
      %334 = sbr.rel (%p332) target = $region32
    $region31: #{_lambda_.15} parent=5 // pred_region
      %s335 = ssub.s32 %s7, 2
      // Predicated region
      $region33: #{_lambda_.15} parent=31 // pred_check
        %p336 = pneg %p78
      $region34: #{_lambda_.15} parent=31 // pred_check_branch
        %338 = sbr.rel (%p336) target = $region36
      $region35: #{_lambda_.15} parent=31 // pred_region
        %p339 = scmp.lt.s32.totalorder %s18, 1
        %s340 = scalar_select %p339, %s18, 1
        %p341 = scmp.lt.s32.totalorder %s19, 2
        %s342 = scalar_select %p341, %s19, 2
        %s343 = smul.addr %s342, 8
        %s344 = smul.addr %s340, 24
        %s345 = sadd.s32 %s343, %s344
        %s346 = smul.addr %s345, 8
        %s347 = scalar_lea.vmem %s1, %s346
      $region36: #{_lambda_.15} parent=31 // pred_fallthru
        _
    $region32: #{_lambda_.15} parent=5 // pred_fallthru
      _
  $region6: #{_lambda_.15} parent=0 // loop_footer
    %s11 = sadd.s32 1, %s7
  $region7: #{_lambda_.15} parent=0 // loop_footer_branch
    %6 = sbr.rel target = $region3
  $region8: #{_lambda_.15} parent=0 // loop_exit
    _

// kernel: _lambda_.16
$region0: #{_lambda_.16}
  #allocation0 [shape = 'u32[]', space=smem, size = 0x4, offset = 0x4, fixed_abs, tag = 'smem constant byte address 0x4 - core index']
  #allocation1 [shape = 'u32[144,128]{1,0:T(1,128)}', space=vmem, size = 0x12000, scoped, tag = 'internal scratch']
  #allocation2 [shape = 'f32[256,128]{1,0:T(8,128)}', space=vmem, size = 0x20000, scoped, tag = 'scratch operand']
  %s0 = inlined_call_operand.vmem [shape: bf16[512,256], index: 0, kind: input, shape index: {}]
  %s1 = inlined_call_operand.vmem [shape: bf16[256,128], index: 1, kind: input, shape index: {}]
  %s2 = inlined_call_operand.vmem [shape: f32[1,128], index: 2, kind: input, shape index: {}]
  %s3 = inlined_call_operand.vmem [shape: f32[1,128], index: 3, kind: input, shape index: {}]
  %s4 = inlined_call_operand.vmem [shape: f32[512,128], index: 4, kind: output, shape index: {}]
  %s5 = sld [smem:[#allocation0]]
  $region98: #{_lambda_.16} parent=0
    _
  %s7 = ssub.s32 1, %s5
  %s8 = scalar_select 0, %s7, %s5
  $region1: #{_lambda_.16} parent=0
    #allocation3 [shape = 'u8[131072]{0}', space=vmem, size = 0x20000, scoped, tag = 'input window, operand 0']
    loop: start=0, step=1, limit=6
    $region2: #{_lambda_.16} parent=1 // loop_pre_header
      _
    $region3: #{_lambda_.16} parent=1 // loop_header
      %s10 = sphi 0, %s14
      %p11 = scmp.ge.s32.totalorder %s10, 6
      %s17 = sphi 0, %s36
      %s18 = sphi 0, %s32
      %s19 = sphi 0, %s28
      %s20 = sphi 0, %s17
      %s21 = sphi 0, %s18
      %s22 = sphi 0, %s19
      %s23 = sphi 0, %s20
      %s24 = sphi 0, %s21
      %s25 = sphi 0, %s22
      %s41 = sphi 0, %s43
      %s44 = sphi 0, %s41
      %s45 = sphi 0, %s44
      %s61 = sphi 0, %s45
      %s69 = sphi 0, %s71
      %s72 = sphi 0, %s69
      %s73 = sphi 0, %s72
      %s89 = sphi 0, %s73
      %s95 = sphi 0, %s97
      %s98 = sphi 0, %s95
      %s99 = sphi 0, %s98
      %s115 = sphi 0, %s99
      %s121 = sphi 0, %s123
      %s124 = sphi 0, %s121
      %s125 = sphi 0, %s124
      %s141 = sphi 0, %s125
      %s149 = sphi 0, %s151
      %s152 = sphi 0, %s149
      %s153 = sphi 0, %s152
      %s169 = sphi 0, %s153
    $region4: #{_lambda_.16} parent=1 // loop_header_branch
      %13 = sbr.rel (%p11) target = $region8
    $region5: #{_lambda_.16} parent=1 // loop_body
      %s15 = ssub.s32 %s10, 1
      %s16 = ssub.s32 %s10, 2
      %s26 = sadd.s32 1, %s19
      %p27 = scmp.ge.s32.totalorder %s26, 2
      %s28 = scalar_select %p27, 0, %s26
      %s29 = sadd.s32 1, %s18
      %s30 = scalar_select %p27, %s29, %s18
      %p31 = scmp.ge.s32.totalorder %s30, 1
      %s32 = scalar_select %p31, 0, %s30
      %s33 = sadd.s32 1, %s17
      %s34 = scalar_select %p31, %s33, %s17
      %p35 = scmp.ge.s32.totalorder %s34, 2
      %s36 = scalar_select %p35, 0, %s34
      %s37 = ssub.s32 %s17, %s36
      %s38 = ssub.s32 %s19, %s28
      %s39 = sor.u32 %s37, %s38
      %p40 = scmp.eq.s32.totalorder %s39, 0
      %s42 = sadd.s32 %s41, 1
      %s43 = scalar_select %p40, %s41, %s42
      %p46 = pneg %p40
      %p47 = scmp.eq.s32.totalorder %s10, 3
      %p48 = por %p46, %p47
      %p49 = scmp.ne.s32.totalorder %s41, %s44
      %p50 = scmp.eq.s32.totalorder %s10, 0
      %p51 = por %p49, %p50
      %p52 = scmp.ne.s32.totalorder %s41, %s44
      %p53 = scmp.eq.s32.totalorder %s15, 3
      %p54 = por %p52, %p53
      %p55 = scmp.ne.s32.totalorder %s44, %s45
      %p56 = scmp.eq.s32.totalorder %s15, 0
      %p57 = por %p55, %p56
      %p58 = scmp.ne.s32.totalorder %s44, %s45
      %p59 = scmp.eq.s32.totalorder %s16, 3
      %p60 = por %p58, %p59
      %p62 = scmp.ne.s32.totalorder %s45, %s61
      %p63 = scmp.eq.s32.totalorder %s16, 0
      %p64 = por %p62, %p63
      %s65 = ssub.s32 %s19, %s28
      %s66 = ssub.s32 %s18, %s32
      %s67 = sor.u32 %s65, %s66
      %p68 = scmp.eq.s32.totalorder %s67, 0
      %s70 = sadd.s32 %s69, 1
      %s71 = scalar_select %p68, %s69, %s70
      %p74 = pneg %p68
      %p75 = scmp.eq.s32.totalorder %s10, 3
      %p76 = por %p74, %p75
      %p77 = scmp.ne.s32.totalorder %s69, %s72
      %p78 = scmp.eq.s32.totalorder %s10, 0
      %p79 = por %p77, %p78
      %p80 = scmp.ne.s32.totalorder %s69, %s72
      %p81 = scmp.eq.s32.totalorder %s15, 3
      %p82 = por %p80, %p81
      %p83 = scmp.ne.s32.totalorder %s72, %s73
      %p84 = scmp.eq.s32.totalorder %s15, 0
      %p85 = por %p83, %p84
      %p86 = scmp.ne.s32.totalorder %s72, %s73
      %p87 = scmp.eq.s32.totalorder %s16, 3
      %p88 = por %p86, %p87
      %p90 = scmp.ne.s32.totalorder %s73, %s89
      %p91 = scmp.eq.s32.totalorder %s16, 0
      %p92 = por %p90, %p91
      %s93 = ssub.s32 %s18, %s32
      %p94 = scmp.eq.s32.totalorder %s93, 0
      %s96 = sadd.s32 %s95, 1
      %s97 = scalar_select %p94, %s95, %s96
      %p100 = pneg %p94
      %p101 = scmp.eq.s32.totalorder %s10, 3
      %p102 = por %p100, %p101
      %p103 = scmp.ne.s32.totalorder %s95, %s98
      %p104 = scmp.eq.s32.totalorder %s10, 0
      %p105 = por %p103, %p104
      %p106 = scmp.ne.s32.totalorder %s95, %s98
      %p107 = scmp.eq.s32.totalorder %s15, 3
      %p108 = por %p106, %p107
      %p109 = scmp.ne.s32.totalorder %s98, %s99
      %p110 = scmp.eq.s32.totalorder %s15, 0
      %p111 = por %p109, %p110
      %p112 = scmp.ne.s32.totalorder %s98, %s99
      %p113 = scmp.eq.s32.totalorder %s16, 3
      %p114 = por %p112, %p113
      %p116 = scmp.ne.s32.totalorder %s99, %s115
      %p117 = scmp.eq.s32.totalorder %s16, 0
      %p118 = por %p116, %p117
      %s119 = ssub.s32 %s18, %s32
      %p120 = scmp.eq.s32.totalorder %s119, 0
      %s122 = sadd.s32 %s121, 1
      %s123 = scalar_select %p120, %s121, %s122
      %p126 = pneg %p120
      %p127 = scmp.eq.s32.totalorder %s10, 3
      %p128 = por %p126, %p127
      %p129 = scmp.ne.s32.totalorder %s121, %s124
      %p130 = scmp.eq.s32.totalorder %s10, 0
      %p131 = por %p129, %p130
      %p132 = scmp.ne.s32.totalorder %s121, %s124
      %p133 = scmp.eq.s32.totalorder %s15, 3
      %p134 = por %p132, %p133
      %p135 = scmp.ne.s32.totalorder %s124, %s125
      %p136 = scmp.eq.s32.totalorder %s15, 0
      %p137 = por %p135, %p136
      %p138 = scmp.ne.s32.totalorder %s124, %s125
      %p139 = scmp.eq.s32.totalorder %s16, 3
      %p140 = por %p138, %p139
      %p142 = scmp.ne.s32.totalorder %s125, %s141
      %p143 = scmp.eq.s32.totalorder %s16, 0
      %p144 = por %p142, %p143
      %s145 = ssub.s32 %s17, %s36
      %s146 = ssub.s32 %s18, %s32
      %s147 = sor.u32 %s145, %s146
      %p148 = scmp.eq.s32.totalorder %s147, 0
      %s150 = sadd.s32 %s149, 1
      %s151 = scalar_select %p148, %s149, %s150
      %p154 = pneg %p148
      %p155 = scmp.eq.s32.totalorder %s10, 3
      %p156 = por %p154, %p155
      %p157 = scmp.ne.s32.totalorder %s149, %s152
      %p158 = scmp.eq.s32.totalorder %s10, 0
      %p159 = por %p157, %p158
      %p160 = scmp.ne.s32.totalorder %s149, %s152
      %p161 = scmp.eq.s32.totalorder %s15, 3
      %p162 = por %p160, %p161
      %p163 = scmp.ne.s32.totalorder %s152, %s153
      %p164 = scmp.eq.s32.totalorder %s15, 0
      %p165 = por %p163, %p164
      %p166 = scmp.ne.s32.totalorder %s152, %s153
      %p167 = scmp.eq.s32.totalorder %s16, 3
      %p168 = por %p166, %p167
      %p170 = scmp.ne.s32.totalorder %s153, %s169
      %p171 = scmp.eq.s32.totalorder %s16, 0
      %p172 = por %p170, %p171
      %p173 = scmp.le.s32.totalorder 1, %s10
      %p174 = scmp.lt.s32.totalorder %s10, 5
      %p175 = pnand %p173, %p174
      %p176 = pneg %p175
      // Predicated region
      $region9: #{_lambda_.16} parent=5 // pred_check
        _
      $region10: #{_lambda_.16} parent=5 // pred_check_branch
        %178 = sbr.rel (%p175) target = $region12
      $region11: #{_lambda_.16} parent=5 // pred_region
        %s179 = ssub.s32 %s10, 1
        // Predicated region
        $region13: #{_lambda_.16} parent=11 // pred_check
          %p180 = pneg %p111
        $region14: #{_lambda_.16} parent=11 // pred_check_branch
          %182 = sbr.rel (%p180) target = $region16
        $region15: #{_lambda_.16} parent=11 // pred_region
          %p183 = scmp.lt.s32.totalorder %s21, 0
          %s184 = scalar_select %p183, %s21, 0
          %s185 = scalar_lea.vmem %s2, %s184
        $region16: #{_lambda_.16} parent=11 // pred_fallthru
          _
        // Predicated region
        $region17: #{_lambda_.16} parent=11 // pred_check
          %p186 = pneg %p137
        $region18: #{_lambda_.16} parent=11 // pred_check_branch
          %188 = sbr.rel (%p186) target = $region20
        $region19: #{_lambda_.16} parent=11 // pred_region
          %p189 = scmp.lt.s32.totalorder %s21, 0
          %s190 = scalar_select %p189, %s21, 0
          %s191 = scalar_lea.vmem %s3, %s190
        $region20: #{_lambda_.16} parent=11 // pred_fallthru
          _
      $region12: #{_lambda_.16} parent=5 // pred_fallthru
        _
      %p192 = scmp.lt.s32.totalorder %s10, 4
      // Predicated region
      $region21: #{_lambda_.16} parent=5 // pred_check
        %p193 = pneg %p192
      $region22: #{_lambda_.16} parent=5 // pred_check_branch
        %195 = sbr.rel (%p193) target = $region24
      $region23: #{_lambda_.16} parent=5 // pred_region
        // Predicated region
        $region25: #{_lambda_.16} parent=23 // pred_check
          %p196 = pneg %p51
        $region26: #{_lambda_.16} parent=23 // pred_check_branch
          %198 = sbr.rel (%p196) target = $region28
        $region27: #{_lambda_.16} parent=23 // pred_region
          %s199 = sand.u32 %s41, 1
          %s200 = sand.u32 %s41, 1
          %s201 = smul.addr %s200, 128
          %s202 = scalar_lea.vmem [#allocation3], %s201
          %s203 = smul.u32 32, %s17
          %s204 = smul.addr %s203, 2
          %s205 = sadd.s32 %s19, %s204
          %s206 = smul.addr %s205, 4
          %s207 = scalar_lea.vmem %s0, %s206
          // Predicated region
          $region29: #{_lambda_.16} parent=27 // pred_check
            _
          $region30: #{_lambda_.16} parent=27 // pred_check_branch
            %209 = sbr.rel (0) target = $region32
          $region31: #{_lambda_.16} parent=27 // pred_region
            // Predicated region
            $region33: #{_lambda_.16} parent=31 // pred_check
              _
            $region34: #{_lambda_.16} parent=31 // pred_check_branch
              %211 = sbr.rel target = $region36
            $region35: #{_lambda_.16} parent=31 // pred_region
              // Predicated region
              $region48: #{_lambda_.16} parent=35 // pred_check
                _
              $region49: #{_lambda_.16} parent=35 // pred_check_branch
                %288 = sbr.rel (0) target = $region51
              $region50: #{_lambda_.16} parent=35 // pred_region
                loop: start=0, step=1, limit=1
                $region52: #{_lambda_.16} parent=50 // loop_pre_header
                  _
                $region53: #{_lambda_.16} parent=50 // loop_header
                  %s290 = sphi 0, %s294
                  %p291 = scmp.ge.s32.totalorder %s290, 1
                  %s295 = sphi %s207, %s207
                  %s296 = sphi %s202, %s202
                $region54: #{_lambda_.16} parent=50 // loop_header_branch
                  %293 = sbr.rel (%p291) target = $region58
                $region55: #{_lambda_.16} parent=50 // loop_body
                  _
                $region56: #{_lambda_.16} parent=50 // loop_footer
                  %s294 = sadd.s32 1, %s290
                $region57: #{_lambda_.16} parent=50 // loop_footer_branch
                  %289 = sbr.rel target = $region53
                $region58: #{_lambda_.16} parent=50 // loop_exit
                  _
                loop: start=0, step=1, limit=1
                $region59: #{_lambda_.16} parent=50 // loop_pre_header
                  _
                $region60: #{_lambda_.16} parent=50 // loop_header
                  %s299 = sphi 0, %s303
                  %p300 = scmp.ge.s32.totalorder %s299, 1
                  %s304 = sphi %s207, %s207
                  %s305 = sphi %s202, %s202
                $region61: #{_lambda_.16} parent=50 // loop_header_branch
                  %302 = sbr.rel (%p300) target = $region65
                $region62: #{_lambda_.16} parent=50 // loop_body
                  %v306 = vld [vmem:[%s304] sm:$0xf]
                  %307 = vst [vmem:[%s305] sm:$0xf] %v306
                  %v308 = vld [vmem:[%s304 + $0x8] sm:$0xf]
                  %309 = vst [vmem:[%s305 + $0x4] sm:$0xf] %v308
                  %v310 = vld [vmem:[%s304 + $0x10] sm:$0xf]
                  %311 = vst [vmem:[%s305 + $0x8] sm:$0xf] %v310
                  %v312 = vld [vmem:[%s304 + $0x18] sm:$0xf]
                  %313 = vst [vmem:[%s305 + $0xc] sm:$0xf] %v312
                  %v314 = vld [vmem:[%s304 + $0x20] sm:$0xf]
                  %315 = vst [vmem:[%s305 + $0x10] sm:$0xf] %v314
                  %v316 = vld [vmem:[%s304 + $0x28] sm:$0xf]
                  %317 = vst [vmem:[%s305 + $0x14] sm:$0xf] %v316
                  %v318 = vld [vmem:[%s304 + $0x30] sm:$0xf]
                  %319 = vst [vmem:[%s305 + $0x18] sm:$0xf] %v318
                  %v320 = vld [vmem:[%s304 + $0x38] sm:$0xf]
                  %321 = vst [vmem:[%s305 + $0x1c] sm:$0xf] %v320
                  %v322 = vld [vmem:[%s304 + $0x40] sm:$0xf]
                  %323 = vst [vmem:[%s305 + $0x20] sm:$0xf] %v322
                  %v324 = vld [vmem:[%s304 + $0x48] sm:$0xf]
                  %325 = vst [vmem:[%s305 + $0x24] sm:$0xf] %v324
                  %v326 = vld [vmem:[%s304 + $0x50] sm:$0xf]
                  %327 = vst [vmem:[%s305 + $0x28] sm:$0xf] %v326
                  %v328 = vld [vmem:[%s304 + $0x58] sm:$0xf]
                  %329 = vst [vmem:[%s305 + $0x2c] sm:$0xf] %v328
                  %v330 = vld [vmem:[%s304 + $0x60] sm:$0xf]
                  %331 = vst [vmem:[%s305 + $0x30] sm:$0xf] %v330
                  %v332 = vld [vmem:[%s304 + $0x68] sm:$0xf]
                  %333 = vst [vmem:[%s305 + $0x34] sm:$0xf] %v332
                  %v334 = vld [vmem:[%s304 + $0x70] sm:$0xf]
                  %335 = vst [vmem:[%s305 + $0x38] sm:$0xf] %v334
                  %v336 = vld [vmem:[%s304 + $0x78] sm:$0xf]
                  %337 = vst [vmem:[%s305 + $0x3c] sm:$0xf] %v336
                  %v338 = vld [vmem:[%s304 + $0x80] sm:$0xf]
                  %339 = vst [vmem:[%s305 + $0x40] sm:$0xf] %v338
                  %v340 = vld [vmem:[%s304 + $0x88] sm:$0xf]
                  %341 = vst [vmem:[%s305 + $0x44] sm:$0xf] %v340
                  %v342 = vld [vmem:[%s304 + $0x90] sm:$0xf]
                  %343 = vst [vmem:[%s305 + $0x48] sm:$0xf] %v342
                  %v344 = vld [vmem:[%s304 + $0x98] sm:$0xf]
                  %345 = vst [vmem:[%s305 + $0x4c] sm:$0xf] %v344
                  %v346 = vld [vmem:[%s304 + $0xa0] sm:$0xf]
                  %347 = vst [vmem:[%s305 + $0x50] sm:$0xf] %v346
                  %v348 = vld [vmem:[%s304 + $0xa8] sm:$0xf]
                  %349 = vst [vmem:[%s305 + $0x54] sm:$0xf] %v348
                  %v350 = vld [vmem:[%s304 + $0xb0] sm:$0xf]
                  %351 = vst [vmem:[%s305 + $0x58] sm:$0xf] %v350
                  %v352 = vld [vmem:[%s304 + $0xb8] sm:$0xf]
                  %353 = vst [vmem:[%s305 + $0x5c] sm:$0xf] %v352
                  %v354 = vld [vmem:[%s304 + $0xc0] sm:$0xf]
                  %355 = vst [vmem:[%s305 + $0x60] sm:$0xf] %v354
                  %v356 = vld [vmem:[%s304 + $0xc8] sm:$0xf]
                  %357 = vst [vmem:[%s305 + $0x64] sm:$0xf] %v356
                  %v358 = vld [vmem:[%s304 + $0xd0] sm:$0xf]
                  %359 = vst [vmem:[%s305 + $0x68] sm:$0xf] %v358
                  %v360 = vld [vmem:[%s304 + $0xd8] sm:$0xf]
                  %361 = vst [vmem:[%s305 + $0x6c] sm:$0xf] %v360
                  %v362 = vld [vmem:[%s304 + $0xe0] sm:$0xf]
                  %363 = vst [vmem:[%s305 + $0x70] sm:$0xf] %v362
                  %v364 = vld [vmem:[%s304 + $0xe8] sm:$0xf]
                  %365 = vst [vmem:[%s305 + $0x74] sm:$0xf] %v364
                  %v366 = vld [vmem:[%s304 + $0xf0] sm:$0xf]
                  %367 = vst [vmem:[%s305 + $0x78] sm:$0xf] %v366
                  %v368 = vld [vmem:[%s304 + $0xf8] sm:$0xf]
                  %369 = vst [vmem:[%s305 + $0x7c] sm:$0xf] %v368
                $region63: #{_lambda_.16} parent=50 // loop_footer
                  %s303 = sadd.s32 1, %s299
                $region64: #{_lambda_.16} parent=50 // loop_footer_branch
                  %298 = sbr.rel target = $region60
                $region65: #{_lambda_.16} parent=50 // loop_exit
                  _
              $region51: #{_lambda_.16} parent=35 // pred_fallthru
                _
            $region36: #{_lambda_.16} parent=31 // pred_fallthru
              _
            // Predicated region
            $region37: #{_lambda_.16} parent=31 // pred_check
              _
            $region38: #{_lambda_.16} parent=31 // pred_check_branch
              %213 = sbr.rel (0) target = $region40
            $region39: #{_lambda_.16} parent=31 // pred_region
              loop: start=0, step=1, limit=1
              $region41: #{_lambda_.16} parent=39 // loop_pre_header
                _
              $region42: #{_lambda_.16} parent=39 // loop_header
                %s216 = sphi 0, %s220
                %p217 = scmp.ge.s32.totalorder %s216, 1
                %s221 = sphi %s207, %s207
                %s222 = sphi %s202, %s202
              $region43: #{_lambda_.16} parent=39 // loop_header_branch
                %219 = sbr.rel (%p217) target = $region47
              $region44: #{_lambda_.16} parent=39 // loop_body
                %v223 = vld [vmem:[%s221] sm:$0xf]
                %224 = vst [vmem:[%s222] sm:$0xf] %v223
                %v225 = vld [vmem:[%s221 + $0x8] sm:$0xf]
                %226 = vst [vmem:[%s222 + $0x4] sm:$0xf] %v225
                %v227 = vld [vmem:[%s221 + $0x10] sm:$0xf]
                %228 = vst [vmem:[%s222 + $0x8] sm:$0xf] %v227
                %v229 = vld [vmem:[%s221 + $0x18] sm:$0xf]
                %230 = vst [vmem:[%s222 + $0xc] sm:$0xf] %v229
                %v231 = vld [vmem:[%s221 + $0x20] sm:$0xf]
                %232 = vst [vmem:[%s222 + $0x10] sm:$0xf] %v231
                %v233 = vld [vmem:[%s221 + $0x28] sm:$0xf]
                %234 = vst [vmem:[%s222 + $0x14] sm:$0xf] %v233
                %v235 = vld [vmem:[%s221 + $0x30] sm:$0xf]
                %236 = vst [vmem:[%s222 + $0x18] sm:$0xf] %v235
                %v237 = vld [vmem:[%s221 + $0x38] sm:$0xf]
                %238 = vst [vmem:[%s222 + $0x1c] sm:$0xf] %v237
                %v239 = vld [vmem:[%s221 + $0x40] sm:$0xf]
                %240 = vst [vmem:[%s222 + $0x20] sm:$0xf] %v239
                %v241 = vld [vmem:[%s221 + $0x48] sm:$0xf]
                %242 = vst [vmem:[%s222 + $0x24] sm:$0xf] %v241
                %v243 = vld [vmem:[%s221 + $0x50] sm:$0xf]
                %244 = vst [vmem:[%s222 + $0x28] sm:$0xf] %v243
                %v245 = vld [vmem:[%s221 + $0x58] sm:$0xf]
                %246 = vst [vmem:[%s222 + $0x2c] sm:$0xf] %v245
                %v247 = vld [vmem:[%s221 + $0x60] sm:$0xf]
                %248 = vst [vmem:[%s222 + $0x30] sm:$0xf] %v247
                %v249 = vld [vmem:[%s221 + $0x68] sm:$0xf]
                %250 = vst [vmem:[%s222 + $0x34] sm:$0xf] %v249
                %v251 = vld [vmem:[%s221 + $0x70] sm:$0xf]
                %252 = vst [vmem:[%s222 + $0x38] sm:$0xf] %v251
                %v253 = vld [vmem:[%s221 + $0x78] sm:$0xf]
                %254 = vst [vmem:[%s222 + $0x3c] sm:$0xf] %v253
                %v255 = vld [vmem:[%s221 + $0x80] sm:$0xf]
                %256 = vst [vmem:[%s222 + $0x40] sm:$0xf] %v255
                %v257 = vld [vmem:[%s221 + $0x88] sm:$0xf]
                %258 = vst [vmem:[%s222 + $0x44] sm:$0xf] %v257
                %v259 = vld [vmem:[%s221 + $0x90] sm:$0xf]
                %260 = vst [vmem:[%s222 + $0x48] sm:$0xf] %v259
                %v261 = vld [vmem:[%s221 + $0x98] sm:$0xf]
                %262 = vst [vmem:[%s222 + $0x4c] sm:$0xf] %v261
                %v263 = vld [vmem:[%s221 + $0xa0] sm:$0xf]
                %264 = vst [vmem:[%s222 + $0x50] sm:$0xf] %v263
                %v265 = vld [vmem:[%s221 + $0xa8] sm:$0xf]
                %266 = vst [vmem:[%s222 + $0x54] sm:$0xf] %v265
                %v267 = vld [vmem:[%s221 + $0xb0] sm:$0xf]
                %268 = vst [vmem:[%s222 + $0x58] sm:$0xf] %v267
                %v269 = vld [vmem:[%s221 + $0xb8] sm:$0xf]
                %270 = vst [vmem:[%s222 + $0x5c] sm:$0xf] %v269
                %v271 = vld [vmem:[%s221 + $0xc0] sm:$0xf]
                %272 = vst [vmem:[%s222 + $0x60] sm:$0xf] %v271
                %v273 = vld [vmem:[%s221 + $0xc8] sm:$0xf]
                %274 = vst [vmem:[%s222 + $0x64] sm:$0xf] %v273
                %v275 = vld [vmem:[%s221 + $0xd0] sm:$0xf]
                %276 = vst [vmem:[%s222 + $0x68] sm:$0xf] %v275
                %v277 = vld [vmem:[%s221 + $0xd8] sm:$0xf]
                %278 = vst [vmem:[%s222 + $0x6c] sm:$0xf] %v277
                %v279 = vld [vmem:[%s221 + $0xe0] sm:$0xf]
                %280 = vst [vmem:[%s222 + $0x70] sm:$0xf] %v279
                %v281 = vld [vmem:[%s221 + $0xe8] sm:$0xf]
                %282 = vst [vmem:[%s222 + $0x74] sm:$0xf] %v281
                %v283 = vld [vmem:[%s221 + $0xf0] sm:$0xf]
                %284 = vst [vmem:[%s222 + $0x78] sm:$0xf] %v283
                %v285 = vld [vmem:[%s221 + $0xf8] sm:$0xf]
                %286 = vst [vmem:[%s222 + $0x7c] sm:$0xf] %v285
              $region45: #{_lambda_.16} parent=39 // loop_footer
                %s220 = sadd.s32 1, %s216
              $region46: #{_lambda_.16} parent=39 // loop_footer_branch
                %215 = sbr.rel target = $region42
              $region47: #{_lambda_.16} parent=39 // loop_exit
                _
            $region40: #{_lambda_.16} parent=31 // pred_fallthru
              _
          $region32: #{_lambda_.16} parent=27 // pred_fallthru
            _
          %370 = vnop
        $region28: #{_lambda_.16} parent=23 // pred_fallthru
          _
        // Predicated region
        $region66: #{_lambda_.16} parent=23 // pred_check
          %p371 = pneg %p79
        $region67: #{_lambda_.16} parent=23 // pred_check_branch
          %373 = sbr.rel (%p371) target = $region69
        $region68: #{_lambda_.16} parent=23 // pred_region
          %s374 = smul.u32 16, %s19
          %p375 = scmp.lt.s32.totalorder %s374, 31
          %s376 = scalar_select %p375, %s374, 31
          %p377 = scmp.lt.s32.totalorder %s18, 0
          %s378 = scalar_select %p377, %s18, 0
          %s379 = sadd.s32 %s378, %s376
          %s380 = smul.addr %s379, 4
          %s381 = scalar_lea.vmem %s1, %s380
          %s382 = smul.u32 16, %s19
        $region69: #{_lambda_.16} parent=23 // pred_fallthru
          _
      $region24: #{_lambda_.16} parent=5 // pred_fallthru
        _
      %p383 = scmp.le.s32.totalorder 1, %s10
      %p384 = scmp.lt.s32.totalorder %s10, 5
      %p385 = pnand %p383, %p384
      %p386 = pneg %p385
      // Predicated region
      $region70: #{_lambda_.16} parent=5 // pred_check
        _
      $region71: #{_lambda_.16} parent=5 // pred_check_branch
        %388 = sbr.rel (%p385) target = $region73
      $region72: #{_lambda_.16} parent=5 // pred_region
        %s389 = ssub.s32 %s10, 1
        %s390 = sand.u32 %s44, 1
        %s391 = sand.u32 %s44, 1
        %s392 = smul.addr %s391, 128
        %s393 = scalar_lea.vmem [#allocation3], %s392
        // Predicated region
        $region74: #{_lambda_.16} parent=72 // pred_check
          %p394 = pneg %p57
        $region75: #{_lambda_.16} parent=72 // pred_check_branch
          %396 = sbr.rel (%p394) target = $region77
        $region76: #{_lambda_.16} parent=72 // pred_region
          _
        $region77: #{_lambda_.16} parent=72 // pred_fallthru
          _
        %s397 = sand.u32 %s44, 1
        %s398 = sand.u32 %s44, 1
        %s399 = smul.addr %s398, 128
        %s400 = scalar_lea.vmem [#allocation3], %s399
        %p401 = pneg %p57
        %p402 = pneg %p54
        %s403 = smul.u32 16, %s22
        %p404 = scmp.lt.s32.totalorder %s403, 31
        %s405 = scalar_select %p404, %s403, 31
        %p406 = scmp.lt.s32.totalorder %s21, 0
        %s407 = scalar_select %p406, %s21, 0
        %s408 = sadd.s32 %s407, %s405
        %s409 = smul.addr %s408, 4
        %s410 = scalar_lea.vmem %s1, %s409
        %p411 = pneg %p85
        %p412 = pneg %p82
        %p413 = scmp.lt.s32.totalorder %s21, 0
        %s414 = scalar_select %p413, %s21, 0
        %s415 = scalar_lea.vmem %s2, %s414
        %p416 = pneg %p111
        %p417 = pneg %p108
        %p418 = scmp.lt.s32.totalorder %s21, 0
        %s419 = scalar_select %p418, %s21, 0
        %s420 = scalar_lea.vmem %s3, %s419
        %p421 = pneg %p137
        %p422 = pneg %p134
        %p423 = pneg %p165
        %p424 = pneg %p162
        %s425 = smul.u32 32, %s20
        %p426 = scmp.lt.s32.totalorder %s425, 63
        %s427 = scalar_select %p426, %s425, 63
        %p428 = scmp.lt.s32.totalorder %s21, 0
        %s429 = scalar_select %p428, %s21, 0
        %s430 = sadd.s32 %s429, %s427
        %s431 = smul.addr %s430, 8
        %s432 = scalar_lea.vmem %s4, %s431
        %s433 = smul.u32 32, %s20
        %s434 = smul.u32 16, %s22
        %p435 = scmp.lt.s32.totalorder %s434, 31
        %s436 = scalar_select %p435, %s434, 31
        %p437 = scmp.lt.s32.totalorder %s21, 0
        %s438 = scalar_select %p437, %s21, 0
        %s439 = sadd.s32 %s438, %s436
        %s440 = smul.addr %s439, 4
        %s441 = scalar_lea.vmem %s1, %s440
        %s442 = smul.u32 16, %s22
        %p443 = scmp.lt.s32.totalorder %s21, 0
        %s444 = scalar_select %p443, %s21, 0
        %s445 = scalar_lea.vmem %s2, %s444
        %p446 = scmp.lt.s32.totalorder %s21, 0
        %s447 = scalar_select %p446, %s21, 0
        %s448 = scalar_lea.vmem %s3, %s447
        %s449 = smul.u32 32, %s20
        %p450 = scmp.lt.s32.totalorder %s449, 63
        %s451 = scalar_select %p450, %s449, 63
        %p452 = scmp.lt.s32.totalorder %s21, 0
        %s453 = scalar_select %p452, %s21, 0
        %s454 = sadd.s32 %s453, %s451
        %s455 = smul.addr %s454, 8
        %s456 = scalar_lea.vmem %s4, %s455
        %s457 = smul.u32 32, %s20
        %p459 = scmp.eq.s32.totalorder %s22, 0
        // Predicated region
        $region78: #{_lambda_.16} parent=72 // pred_check
          %p460 = pneg %p459
        $region79: #{_lambda_.16} parent=72 // pred_check_branch
          %462 = sbr.rel (%p460) target = $region81
        $region80: #{_lambda_.16} parent=72 // pred_region
          %463 = vst [vmem:[#allocation2] sm:$0xff] 0.0
          %464 = vst [vmem:[#allocation2 + $0x8] sm:$0xff] 0.0
          %465 = vst [vmem:[#allocation2 + $0x10] sm:$0xff] 0.0
          %466 = vst [vmem:[#allocation2 + $0x18] sm:$0xff] 0.0
          %467 = vst [vmem:[#allocation2 + $0x20] sm:$0xff] 0.0
          %468 = vst [vmem:[#allocation2 + $0x28] sm:$0xff] 0.0
          %469 = vst [vmem:[#allocation2 + $0x30] sm:$0xff] 0.0
          %470 = vst [vmem:[#allocation2 + $0x38] sm:$0xff] 0.0
          %471 = vst [vmem:[#allocation2 + $0x40] sm:$0xff] 0.0
          %472 = vst [vmem:[#allocation2 + $0x48] sm:$0xff] 0.0
          %473 = vst [vmem:[#allocation2 + $0x50] sm:$0xff] 0.0
          %474 = vst [vmem:[#allocation2 + $0x58] sm:$0xff] 0.0
          %475 = vst [vmem:[#allocation2 + $0x60] sm:$0xff] 0.0
          %476 = vst [vmem:[#allocation2 + $0x68] sm:$0xff] 0.0
          %477 = vst [vmem:[#allocation2 + $0x70] sm:$0xff] 0.0
          %478 = vst [vmem:[#allocation2 + $0x78] sm:$0xff] 0.0
          %479 = vst [vmem:[#allocation2 + $0x80] sm:$0xff] 0.0
          %480 = vst [vmem:[#allocation2 + $0x88] sm:$0xff] 0.0
          %481 = vst [vmem:[#allocation2 + $0x90] sm:$0xff] 0.0
          %482 = vst [vmem:[#allocation2 + $0x98] sm:$0xff] 0.0
          %483 = vst [vmem:[#allocation2 + $0xa0] sm:$0xff] 0.0
          %484 = vst [vmem:[#allocation2 + $0xa8] sm:$0xff] 0.0
          %485 = vst [vmem:[#allocation2 + $0xb0] sm:$0xff] 0.0
          %486 = vst [vmem:[#allocation2 + $0xb8] sm:$0xff] 0.0
          %487 = vst [vmem:[#allocation2 + $0xc0] sm:$0xff] 0.0
          %488 = vst [vmem:[#allocation2 + $0xc8] sm:$0xff] 0.0
          %489 = vst [vmem:[#allocation2 + $0xd0] sm:$0xff] 0.0
          %490 = vst [vmem:[#allocation2 + $0xd8] sm:$0xff] 0.0
          %491 = vst [vmem:[#allocation2 + $0xe0] sm:$0xff] 0.0
          %492 = vst [vmem:[#allocation2 + $0xe8] sm:$0xff] 0.0
          %493 = vst [vmem:[#allocation2 + $0xf0] sm:$0xff] 0.0
          %494 = vst [vmem:[#allocation2 + $0xf8] sm:$0xff] 0.0
        $region81: #{_lambda_.16} parent=72 // pred_fallthru
          _
        %v495 = vld [vmem:[#allocation2] sm:$0xff]
        %v496 = vld [vmem:[#allocation2 + $0x8] sm:$0xff]
        %v497 = vld [vmem:[#allocation2 + $0x10] sm:$0xff]
        %v498 = vld [vmem:[#allocation2 + $0x18] sm:$0xff]
        %v499 = vld [vmem:[#allocation2 + $0x20] sm:$0xff]
        %v500 = vld [vmem:[#allocation2 + $0x28] sm:$0xff]
        %v501 = vld [vmem:[#allocation2 + $0x30] sm:$0xff]
        %v502 = vld [vmem:[#allocation2 + $0x38] sm:$0xff]
        %v503 = vld [vmem:[#allocation2 + $0x40] sm:$0xff]
        %v504 = vld [vmem:[#allocation2 + $0x48] sm:$0xff]
        %v505 = vld [vmem:[#allocation2 + $0x50] sm:$0xff]
        %v506 = vld [vmem:[#allocation2 + $0x58] sm:$0xff]
        %v507 = vld [vmem:[#allocation2 + $0x60] sm:$0xff]
        %v508 = vld [vmem:[#allocation2 + $0x68] sm:$0xff]
        %v509 = vld [vmem:[#allocation2 + $0x70] sm:$0xff]
        %v510 = vld [vmem:[#allocation2 + $0x78] sm:$0xff]
        %v511 = vld [vmem:[#allocation2 + $0x80] sm:$0xff]
        %v512 = vld [vmem:[#allocation2 + $0x88] sm:$0xff]
        %v513 = vld [vmem:[#allocation2 + $0x90] sm:$0xff]
        %v514 = vld [vmem:[#allocation2 + $0x98] sm:$0xff]
        %v515 = vld [vmem:[#allocation2 + $0xa0] sm:$0xff]
        %v516 = vld [vmem:[#allocation2 + $0xa8] sm:$0xff]
        %v517 = vld [vmem:[#allocation2 + $0xb0] sm:$0xff]
        %v518 = vld [vmem:[#allocation2 + $0xb8] sm:$0xff]
        %v519 = vld [vmem:[#allocation2 + $0xc0] sm:$0xff]
        %v520 = vld [vmem:[#allocation2 + $0xc8] sm:$0xff]
        %v521 = vld [vmem:[#allocation2 + $0xd0] sm:$0xff]
        %v522 = vld [vmem:[#allocation2 + $0xd8] sm:$0xff]
        %v523 = vld [vmem:[#allocation2 + $0xe0] sm:$0xff]
        %v524 = vld [vmem:[#allocation2 + $0xe8] sm:$0xff]
        %v525 = vld [vmem:[#allocation2 + $0xf0] sm:$0xff]
        %v526 = vld [vmem:[#allocation2 + $0xf8] sm:$0xff]
        %v527 = vld [vmem:[%s393] sm:$0xf]
        %v528 = vld [vmem:[%s393 + $0x4] sm:$0xf]
        %v529 = vld [vmem:[%s393 + $0x8] sm:$0xf]
        %v530 = vld [vmem:[%s393 + $0xc] sm:$0xf]
        %v531 = vld [vmem:[%s393 + $0x10] sm:$0xf]
        %v532 = vld [vmem:[%s393 + $0x14] sm:$0xf]
        %v533 = vld [vmem:[%s393 + $0x18] sm:$0xf]
        %v534 = vld [vmem:[%s393 + $0x1c] sm:$0xf]
        %v535 = vld [vmem:[%s393 + $0x20] sm:$0xf]
        %v536 = vld [vmem:[%s393 + $0x24] sm:$0xf]
        %v537 = vld [vmem:[%s393 + $0x28] sm:$0xf]
        %v538 = vld [vmem:[%s393 + $0x2c] sm:$0xf]
        %v539 = vld [vmem:[%s393 + $0x30] sm:$0xf]
        %v540 = vld [vmem:[%s393 + $0x34] sm:$0xf]
        %v541 = vld [vmem:[%s393 + $0x38] sm:$0xf]
        %v542 = vld [vmem:[%s393 + $0x3c] sm:$0xf]
        %v543 = vld [vmem:[%s393 + $0x40] sm:$0xf]
        %v544 = vld [vmem:[%s393 + $0x44] sm:$0xf]
        %v545 = vld [vmem:[%s393 + $0x48] sm:$0xf]
        %v546 = vld [vmem:[%s393 + $0x4c] sm:$0xf]
        %v547 = vld [vmem:[%s393 + $0x50] sm:$0xf]
        %v548 = vld [vmem:[%s393 + $0x54] sm:$0xf]
        %v549 = vld [vmem:[%s393 + $0x58] sm:$0xf]
        %v550 = vld [vmem:[%s393 + $0x5c] sm:$0xf]
        %v551 = vld [vmem:[%s393 + $0x60] sm:$0xf]
        %v552 = vld [vmem:[%s393 + $0x64] sm:$0xf]
        %v553 = vld [vmem:[%s393 + $0x68] sm:$0xf]
        %v554 = vld [vmem:[%s393 + $0x6c] sm:$0xf]
        %v555 = vld [vmem:[%s393 + $0x70] sm:$0xf]
        %v556 = vld [vmem:[%s393 + $0x74] sm:$0xf]
        %v557 = vld [vmem:[%s393 + $0x78] sm:$0xf]
        %v558 = vld [vmem:[%s393 + $0x7c] sm:$0xf]
        %v559 = vld [vmem:[%s441] sm:$0xf]
        %v560 = vld [vmem:[%s441 + $0x4] sm:$0xf]
        %v561 = vld [vmem:[%s441 + $0x8] sm:$0xf]
        %v562 = vld [vmem:[%s441 + $0xc] sm:$0xf]
        %v563 = vld [vmem:[%s441 + $0x10] sm:$0xf]
        %v564 = vld [vmem:[%s441 + $0x14] sm:$0xf]
        %v565 = vld [vmem:[%s441 + $0x18] sm:$0xf]
        %v566 = vld [vmem:[%s441 + $0x1c] sm:$0xf]
        %v567 = vld [vmem:[%s441 + $0x20] sm:$0xf]
        %v568 = vld [vmem:[%s441 + $0x24] sm:$0xf]
        %v569 = vld [vmem:[%s441 + $0x28] sm:$0xf]
        %v570 = vld [vmem:[%s441 + $0x2c] sm:$0xf]
        %v571 = vld [vmem:[%s441 + $0x30] sm:$0xf]
        %v572 = vld [vmem:[%s441 + $0x34] sm:$0xf]
        %v573 = vld [vmem:[%s441 + $0x38] sm:$0xf]
        %v574 = vld [vmem:[%s441 + $0x3c] sm:$0xf]
        %v607 = vunpack.c.l.b16 %v527
        %v608 = vunpack.c.l.b16 %v528
        %v609 = vunpack.c.l.b16 %v529
        %v610 = vunpack.c.l.b16 %v530
        %v611 = vunpack.c.l.b16 %v531
        %v612 = vunpack.c.l.b16 %v532
        %v613 = vunpack.c.l.b16 %v533
        %v614 = vunpack.c.l.b16 %v534
        %v615 = vunpack.c.l.b16 %v535
        %v616 = vunpack.c.l.b16 %v536
        %v617 = vunpack.c.l.b16 %v537
        %v618 = vunpack.c.l.b16 %v538
        %v619 = vunpack.c.l.b16 %v539
        %v620 = vunpack.c.l.b16 %v540
        %v621 = vunpack.c.l.b16 %v541
        %v622 = vunpack.c.l.b16 %v542
        %v623 = vunpack.c.l.b16 %v543
        %v624 = vunpack.c.l.b16 %v544
        %v625 = vunpack.c.l.b16 %v545
        %v626 = vunpack.c.l.b16 %v546
        %v627 = vunpack.c.l.b16 %v547
        %v628 = vunpack.c.l.b16 %v548
        %v629 = vunpack.c.l.b16 %v549
        %v630 = vunpack.c.l.b16 %v550
        %v631 = vunpack.c.l.b16 %v551
        %v632 = vunpack.c.l.b16 %v552
        %v633 = vunpack.c.l.b16 %v553
        %v634 = vunpack.c.l.b16 %v554
        %v635 = vunpack.c.l.b16 %v555
        %v636 = vunpack.c.l.b16 %v556
        %v637 = vunpack.c.l.b16 %v557
        %v638 = vunpack.c.l.b16 %v558
        %v639 = vpack.c.b16 %v608, %v607
        %v640 = vpack.c.b16 %v610, %v609
        %v641 = vpack.c.b16 %v612, %v611
        %v642 = vpack.c.b16 %v614, %v613
        %v643 = vpack.c.b16 %v616, %v615
        %v644 = vpack.c.b16 %v618, %v617
        %v645 = vpack.c.b16 %v620, %v619
        %v646 = vpack.c.b16 %v622, %v621
        %v647 = vpack.c.b16 %v624, %v623
        %v648 = vpack.c.b16 %v626, %v625
        %v649 = vpack.c.b16 %v628, %v627
        %v650 = vpack.c.b16 %v630, %v629
        %v651 = vpack.c.b16 %v632, %v631
        %v652 = vpack.c.b16 %v634, %v633
        %v653 = vpack.c.b16 %v636, %v635
        %v654 = vpack.c.b16 %v638, %v637
        %v687 = vunpack.c.l.b16 %v559
        %v688 = vunpack.c.l.b16 %v560
        %v689 = vunpack.c.l.b16 %v561
        %v690 = vunpack.c.l.b16 %v562
        %v691 = vunpack.c.l.b16 %v563
        %v692 = vunpack.c.l.b16 %v564
        %v693 = vunpack.c.l.b16 %v565
        %v694 = vunpack.c.l.b16 %v566
        %v695 = vunpack.c.l.b16 %v567
        %v696 = vunpack.c.l.b16 %v568
        %v697 = vunpack.c.l.b16 %v569
        %v698 = vunpack.c.l.b16 %v570
        %v699 = vunpack.c.l.b16 %v571
        %v700 = vunpack.c.l.b16 %v572
        %v701 = vunpack.c.l.b16 %v573
        %v702 = vunpack.c.l.b16 %v574
        %v703 = vpack.c.b16 %v688, %v687
        %v704 = vpack.c.b16 %v690, %v689
        %v705 = vpack.c.b16 %v692, %v691
        %v706 = vpack.c.b16 %v694, %v693
        %v707 = vpack.c.b16 %v696, %v695
        %v708 = vpack.c.b16 %v698, %v697
        %v709 = vpack.c.b16 %v700, %v699
        %v710 = vpack.c.b16 %v702, %v701
        %719 = vmatprep.subr.bf16.mxu0 0
        %720 = vmatpush1.bf16.msra.mxu0 %v703
        %721 = vmatprep.subr.bf16.mxu0 0
        %722 = vmatpush1.bf16.msra.mxu0 %v704
        %723 = vmatprep.subr.bf16.mxu0 0
        %724 = vmatpush1.bf16.msra.mxu0 %v705
        %725 = vmatprep.subr.bf16.mxu0 0
        %726 = vmatpush1.bf16.msra.mxu0 %v706
        %727 = vmatprep.subr.bf16.mxu0 0
        %728 = vmatpush1.bf16.msra.mxu0 %v707
        %729 = vmatprep.subr.bf16.mxu0 0
        %730 = vmatpush1.bf16.msra.mxu0 %v708
        %731 = vmatprep.subr.bf16.mxu0 0
        %732 = vmatpush1.bf16.msra.mxu0 %v709
        %733 = vmatprep.subr.bf16.mxu0 0
        %734 = vmatpush1.bf16.msra.mxu0 %v710
        %735 = vmatprep.subr.bf16.mxu0 0
        %736 = vmatpush1.bf16.msra.mxu0 0
        %737 = vmatprep.subr.bf16.mxu0 0
        %738 = vmatpush1.bf16.msra.mxu0 0
        %739 = vmatprep.subr.bf16.mxu0 0
        %740 = vmatpush1.bf16.msra.mxu0 0
        %741 = vmatprep.subr.bf16.mxu0 0
        %742 = vmatpush1.bf16.msra.mxu0 0
        %743 = vmatprep.subr.bf16.mxu0 0
        %744 = vmatpush1.bf16.msra.mxu0 0
        %745 = vmatprep.subr.bf16.mxu0 0
        %746 = vmatpush1.bf16.msra.mxu0 0
        %747 = vmatprep.subr.bf16.mxu0 0
        %748 = vmatpush1.bf16.msra.mxu0 0
        %749 = vmatprep.subr.bf16.mxu0 0
        %750 = vmatpush1.bf16.msra.mxu0 0
        %751 = vmatprep.mubr.bf16.mxu0 0
        %752 = vmatmul.mubr.bf16.gmra.mrb[0].mxu0 %v639
        %v753 = vpop.f32.mrb[0].mxu0
        %v754 = vadd.f32 0.0, %v753
        %v755 = vpop.f32.mrb[0].mxu0
        %v756 = vpop.f32.mrb[0].mxu0
        %v757 = vadd.f32 0.0, %v756
        %v758 = vpop.f32.mrb[0].mxu0
        %759 = vmatprep.mubr.bf16.mxu0 0
        %760 = vmatmul.mubr.bf16.gmra.mrb[0].mxu0 %v640
        %v761 = vpop.f32.mrb[0].mxu0
        %v762 = vadd.f32 0.0, %v761
        %v763 = vpop.f32.mrb[0].mxu0
        %v764 = vpop.f32.mrb[0].mxu0
        %v765 = vadd.f32 0.0, %v764
        %v766 = vpop.f32.mrb[0].mxu0
        %767 = vmatprep.mubr.bf16.mxu0 0
        %768 = vmatmul.mubr.bf16.gmra.mrb[0].mxu0 %v641
        %v769 = vpop.f32.mrb[0].mxu0
        %v770 = vadd.f32 0.0, %v769
        %v771 = vpop.f32.mrb[0].mxu0
        %v772 = vpop.f32.mrb[0].mxu0
        %v773 = vadd.f32 0.0, %v772
        %v774 = vpop.f32.mrb[0].mxu0
        %775 = vmatprep.mubr.bf16.mxu0 0
        %776 = vmatmul.mubr.bf16.gmra.mrb[0].mxu0 %v642
        %v777 = vpop.f32.mrb[0].mxu0
        %v778 = vadd.f32 0.0, %v777
        %v779 = vpop.f32.mrb[0].mxu0
        %v780 = vpop.f32.mrb[0].mxu0
        %v781 = vadd.f32 0.0, %v780
        %v782 = vpop.f32.mrb[0].mxu0
        %783 = vmatprep.mubr.bf16.mxu0 0
        %784 = vmatmul.mubr.bf16.gmra.mrb[0].mxu0 %v643
        %v785 = vpop.f32.mrb[0].mxu0
        %v786 = vadd.f32 0.0, %v785
        %v787 = vpop.f32.mrb[0].mxu0
        %v788 = vpop.f32.mrb[0].mxu0
        %v789 = vadd.f32 0.0, %v788
        %v790 = vpop.f32.mrb[0].mxu0
        %791 = vmatprep.mubr.bf16.mxu0 0
        %792 = vmatmul.mubr.bf16.gmra.mrb[0].mxu0 %v644
        %v793 = vpop.f32.mrb[0].mxu0
        %v794 = vadd.f32 0.0, %v793
        %v795 = vpop.f32.mrb[0].mxu0
        %v796 = vpop.f32.mrb[0].mxu0
        %v797 = vadd.f32 0.0, %v796
        %v798 = vpop.f32.mrb[0].mxu0
        %799 = vmatprep.mubr.bf16.mxu0 0
        %800 = vmatmul.mubr.bf16.gmra.mrb[0].mxu0 %v645
        %v801 = vpop.f32.mrb[0].mxu0
        %v802 = vadd.f32 0.0, %v801
        %v803 = vpop.f32.mrb[0].mxu0
        %v804 = vpop.f32.mrb[0].mxu0
        %v805 = vadd.f32 0.0, %v804
        %v806 = vpop.f32.mrb[0].mxu0
        %807 = vmatprep.mubr.bf16.mxu0 0
        %808 = vmatmul.mubr.bf16.gmra.mrb[0].mxu0 %v646
        %v809 = vpop.f32.mrb[0].mxu0
        %v810 = vadd.f32 0.0, %v809
        %v811 = vpop.f32.mrb[0].mxu0
        %v812 = vpop.f32.mrb[0].mxu0
        %v813 = vadd.f32 0.0, %v812
        %v814 = vpop.f32.mrb[0].mxu0
        %815 = vmatprep.mubr.bf16.mxu0 0
        %816 = vmatmul.mubr.bf16.gmra.mrb[0].mxu0 %v647
        %v817 = vpop.f32.mrb[0].mxu0
        %v818 = vadd.f32 0.0, %v817
        %v819 = vpop.f32.mrb[0].mxu0
        %v820 = vpop.f32.mrb[0].mxu0
        %v821 = vadd.f32 0.0, %v820
        %v822 = vpop.f32.mrb[0].mxu0
        %823 = vmatprep.mubr.bf16.mxu0 0
        %824 = vmatmul.mubr.bf16.gmra.mrb[0].mxu0 %v648
        %v825 = vpop.f32.mrb[0].mxu0
        %v826 = vadd.f32 0.0, %v825
        %v827 = vpop.f32.mrb[0].mxu0
        %v828 = vpop.f32.mrb[0].mxu0
        %v829 = vadd.f32 0.0, %v828
        %v830 = vpop.f32.mrb[0].mxu0
        %831 = vmatprep.mubr.bf16.mxu0 0
        %832 = vmatmul.mubr.bf16.gmra.mrb[0].mxu0 %v649
        %v833 = vpop.f32.mrb[0].mxu0
        %v834 = vadd.f32 0.0, %v833
        %v835 = vpop.f32.mrb[0].mxu0
        %v836 = vpop.f32.mrb[0].mxu0
        %v837 = vadd.f32 0.0, %v836
        %v838 = vpop.f32.mrb[0].mxu0
        %839 = vmatprep.mubr.bf16.mxu0 0
        %840 = vmatmul.mubr.bf16.gmra.mrb[0].mxu0 %v650
        %v841 = vpop.f32.mrb[0].mxu0
        %v842 = vadd.f32 0.0, %v841
        %v843 = vpop.f32.mrb[0].mxu0
        %v844 = vpop.f32.mrb[0].mxu0
        %v845 = vadd.f32 0.0, %v844
        %v846 = vpop.f32.mrb[0].mxu0
        %847 = vmatprep.mubr.bf16.mxu0 0
        %848 = vmatmul.mubr.bf16.gmra.mrb[0].mxu0 %v651
        %v849 = vpop.f32.mrb[0].mxu0
        %v850 = vadd.f32 0.0, %v849
        %v851 = vpop.f32.mrb[0].mxu0
        %v852 = vpop.f32.mrb[0].mxu0
        %v853 = vadd.f32 0.0, %v852
        %v854 = vpop.f32.mrb[0].mxu0
        %855 = vmatprep.mubr.bf16.mxu0 0
        %856 = vmatmul.mubr.bf16.gmra.mrb[0].mxu0 %v652
        %v857 = vpop.f32.mrb[0].mxu0
        %v858 = vadd.f32 0.0, %v857
        %v859 = vpop.f32.mrb[0].mxu0
        %v860 = vpop.f32.mrb[0].mxu0
        %v861 = vadd.f32 0.0, %v860
        %v862 = vpop.f32.mrb[0].mxu0
        %863 = vmatprep.mubr.bf16.mxu0 0
        %864 = vmatmul.mubr.bf16.gmra.mrb[0].mxu0 %v653
        %v865 = vpop.f32.mrb[0].mxu0
        %v866 = vadd.f32 0.0, %v865
        %v867 = vpop.f32.mrb[0].mxu0
        %v868 = vpop.f32.mrb[0].mxu0
        %v869 = vadd.f32 0.0, %v868
        %v870 = vpop.f32.mrb[0].mxu0
        %871 = vmatprep.mubr.bf16.mxu0 0
        %872 = vmatmul.mubr.bf16.gmra.mrb[0].mxu0 %v654
        %v873 = vpop.f32.mrb[0].mxu0
        %v874 = vadd.f32 0.0, %v873
        %v875 = vpop.f32.mrb[0].mxu0
        %v876 = vpop.f32.mrb[0].mxu0
        %v877 = vadd.f32 0.0, %v876
        %v878 = vpop.f32.mrb[0].mxu0
        %879 = vdwg.mxu0
        %v880 = vadd.f32 %v495, %v754
        %v881 = vadd.f32 %v496, %v757
        %v882 = vadd.f32 %v497, %v762
        %v883 = vadd.f32 %v498, %v765
        %v884 = vadd.f32 %v499, %v770
        %v885 = vadd.f32 %v500, %v773
        %v886 = vadd.f32 %v501, %v778
        %v887 = vadd.f32 %v502, %v781
        %v888 = vadd.f32 %v503, %v786
        %v889 = vadd.f32 %v504, %v789
        %v890 = vadd.f32 %v505, %v794
        %v891 = vadd.f32 %v506, %v797
        %v892 = vadd.f32 %v507, %v802
        %v893 = vadd.f32 %v508, %v805
        %v894 = vadd.f32 %v509, %v810
        %v895 = vadd.f32 %v510, %v813
        %v896 = vadd.f32 %v511, %v818
        %v897 = vadd.f32 %v512, %v821
        %v898 = vadd.f32 %v513, %v826
        %v899 = vadd.f32 %v514, %v829
        %v900 = vadd.f32 %v515, %v834
        %v901 = vadd.f32 %v516, %v837
        %v902 = vadd.f32 %v517, %v842
        %v903 = vadd.f32 %v518, %v845
        %v904 = vadd.f32 %v519, %v850
        %v905 = vadd.f32 %v520, %v853
        %v906 = vadd.f32 %v521, %v858
        %v907 = vadd.f32 %v522, %v861
        %v908 = vadd.f32 %v523, %v866
        %v909 = vadd.f32 %v524, %v869
        %v910 = vadd.f32 %v525, %v874
        %v911 = vadd.f32 %v526, %v877
        %912 = vst [vmem:[#allocation2] sm:$0xff] %v880
        %913 = vst [vmem:[#allocation2 + $0x8] sm:$0xff] %v881
        %914 = vst [vmem:[#allocation2 + $0x10] sm:$0xff] %v882
        %915 = vst [vmem:[#allocation2 + $0x18] sm:$0xff] %v883
        %916 = vst [vmem:[#allocation2 + $0x20] sm:$0xff] %v884
        %917 = vst [vmem:[#allocation2 + $0x28] sm:$0xff] %v885
        %918 = vst [vmem:[#allocation2 + $0x30] sm:$0xff] %v886
        %919 = vst [vmem:[#allocation2 + $0x38] sm:$0xff] %v887
        %920 = vst [vmem:[#allocation2 + $0x40] sm:$0xff] %v888
        %921 = vst [vmem:[#allocation2 + $0x48] sm:$0xff] %v889
        %922 = vst [vmem:[#allocation2 + $0x50] sm:$0xff] %v890
        %923 = vst [vmem:[#allocation2 + $0x58] sm:$0xff] %v891
        %924 = vst [vmem:[#allocation2 + $0x60] sm:$0xff] %v892
        %925 = vst [vmem:[#allocation2 + $0x68] sm:$0xff] %v893
        %926 = vst [vmem:[#allocation2 + $0x70] sm:$0xff] %v894
        %927 = vst [vmem:[#allocation2 + $0x78] sm:$0xff] %v895
        %928 = vst [vmem:[#allocation2 + $0x80] sm:$0xff] %v896
        %929 = vst [vmem:[#allocation2 + $0x88] sm:$0xff] %v897
        %930 = vst [vmem:[#allocation2 + $0x90] sm:$0xff] %v898
        %931 = vst [vmem:[#allocation2 + $0x98] sm:$0xff] %v899
        %932 = vst [vmem:[#allocation2 + $0xa0] sm:$0xff] %v900
        %933 = vst [vmem:[#allocation2 + $0xa8] sm:$0xff] %v901
        %934 = vst [vmem:[#allocation2 + $0xb0] sm:$0xff] %v902
        %935 = vst [vmem:[#allocation2 + $0xb8] sm:$0xff] %v903
        %936 = vst [vmem:[#allocation2 + $0xc0] sm:$0xff] %v904
        %937 = vst [vmem:[#allocation2 + $0xc8] sm:$0xff] %v905
        %938 = vst [vmem:[#allocation2 + $0xd0] sm:$0xff] %v906
        %939 = vst [vmem:[#allocation2 + $0xd8] sm:$0xff] %v907
        %940 = vst [vmem:[#allocation2 + $0xe0] sm:$0xff] %v908
        %941 = vst [vmem:[#allocation2 + $0xe8] sm:$0xff] %v909
        %942 = vst [vmem:[#allocation2 + $0xf0] sm:$0xff] %v910
        %943 = vst [vmem:[#allocation2 + $0xf8] sm:$0xff] %v911
        %p944 = scmp.eq.s32.totalorder %s22, 1
        // Predicated region
        $region82: #{_lambda_.16} parent=72 // pred_check
          %p945 = pneg %p944
        $region83: #{_lambda_.16} parent=72 // pred_check_branch
          %947 = sbr.rel (%p945) target = $region85
        $region84: #{_lambda_.16} parent=72 // pred_region
          %v948 = vld [vmem:[#allocation2] sm:$0xff]
          %v949 = vld [vmem:[#allocation2 + $0x8] sm:$0xff]
          %v950 = vld [vmem:[#allocation2 + $0x10] sm:$0xff]
          %v951 = vld [vmem:[#allocation2 + $0x18] sm:$0xff]
          %v952 = vld [vmem:[#allocation2 + $0x20] sm:$0xff]
          %v953 = vld [vmem:[#allocation2 + $0x28] sm:$0xff]
          %v954 = vld [vmem:[#allocation2 + $0x30] sm:$0xff]
          %v955 = vld [vmem:[#allocation2 + $0x38] sm:$0xff]
          %v956 = vld [vmem:[#allocation2 + $0x40] sm:$0xff]
          %v957 = vld [vmem:[#allocation2 + $0x48] sm:$0xff]
          %v958 = vld [vmem:[#allocation2 + $0x50] sm:$0xff]
          %v959 = vld [vmem:[#allocation2 + $0x58] sm:$0xff]
          %v960 = vld [vmem:[#allocation2 + $0x60] sm:$0xff]
          %v961 = vld [vmem:[#allocation2 + $0x68] sm:$0xff]
          %v962 = vld [vmem:[#allocation2 + $0x70] sm:$0xff]
          %v963 = vld [vmem:[#allocation2 + $0x78] sm:$0xff]
          %v964 = vld [vmem:[#allocation2 + $0x80] sm:$0xff]
          %v965 = vld [vmem:[#allocation2 + $0x88] sm:$0xff]
          %v966 = vld [vmem:[#allocation2 + $0x90] sm:$0xff]
          %v967 = vld [vmem:[#allocation2 + $0x98] sm:$0xff]
          %v968 = vld [vmem:[#allocation2 + $0xa0] sm:$0xff]
          %v969 = vld [vmem:[#allocation2 + $0xa8] sm:$0xff]
          %v970 = vld [vmem:[#allocation2 + $0xb0] sm:$0xff]
          %v971 = vld [vmem:[#allocation2 + $0xb8] sm:$0xff]
          %v972 = vld [vmem:[#allocation2 + $0xc0] sm:$0xff]
          %v973 = vld [vmem:[#allocation2 + $0xc8] sm:$0xff]
          %v974 = vld [vmem:[#allocation2 + $0xd0] sm:$0xff]
          %v975 = vld [vmem:[#allocation2 + $0xd8] sm:$0xff]
          %v976 = vld [vmem:[#allocation2 + $0xe0] sm:$0xff]
          %v977 = vld [vmem:[#allocation2 + $0xe8] sm:$0xff]
          %v978 = vld [vmem:[#allocation2 + $0xf0] sm:$0xff]
          %v979 = vld [vmem:[#allocation2 + $0xf8] sm:$0xff]
          %v980 = vld [vmem:[%s445] sm:$0x1]
          %v982 = vlaneseq
          %v983 = vshrl.u32 %v982, 7
          %v984 = vsub.s32 0, %v983
          %v985 = vrot.slane %v980, %v984
          %v987 = vmul.f32 %v948, %v985
          %v988 = vmul.f32 %v949, %v985
          %v989 = vmul.f32 %v950, %v985
          %v990 = vmul.f32 %v951, %v985
          %v991 = vmul.f32 %v952, %v985
          %v992 = vmul.f32 %v953, %v985
          %v993 = vmul.f32 %v954, %v985
          %v994 = vmul.f32 %v955, %v985
          %v995 = vmul.f32 %v956, %v985
          %v996 = vmul.f32 %v957, %v985
          %v997 = vmul.f32 %v958, %v985
          %v998 = vmul.f32 %v959, %v985
          %v999 = vmul.f32 %v960, %v985
          %v1000 = vmul.f32 %v961, %v985
          %v1001 = vmul.f32 %v962, %v985
          %v1002 = vmul.f32 %v963, %v985
          %v1003 = vmul.f32 %v964, %v985
          %v1004 = vmul.f32 %v965, %v985
          %v1005 = vmul.f32 %v966, %v985
          %v1006 = vmul.f32 %v967, %v985
          %v1007 = vmul.f32 %v968, %v985
          %v1008 = vmul.f32 %v969, %v985
          %v1009 = vmul.f32 %v970, %v985
          %v1010 = vmul.f32 %v971, %v985
          %v1011 = vmul.f32 %v972, %v985
          %v1012 = vmul.f32 %v973, %v985
          %v1013 = vmul.f32 %v974, %v985
          %v1014 = vmul.f32 %v975, %v985
          %v1015 = vmul.f32 %v976, %v985
          %v1016 = vmul.f32 %v977, %v985
          %v1017 = vmul.f32 %v978, %v985
          %v1018 = vmul.f32 %v979, %v985
          %v1019 = vld [vmem:[%s448] sm:$0x1]
          %v1021 = vlaneseq
          %v1022 = vshrl.u32 %v1021, 7
          %v1023 = vsub.s32 0, %v1022
          %v1024 = vrot.slane %v1019, %v1023
          %v1026 = vadd.f32 %v987, %v1024
          %v1027 = vadd.f32 %v988, %v1024
          %v1028 = vadd.f32 %v989, %v1024
          %v1029 = vadd.f32 %v990, %v1024
          %v1030 = vadd.f32 %v991, %v1024
          %v1031 = vadd.f32 %v992, %v1024
          %v1032 = vadd.f32 %v993, %v1024
          %v1033 = vadd.f32 %v994, %v1024
          %v1034 = vadd.f32 %v995, %v1024
          %v1035 = vadd.f32 %v996, %v1024
          %v1036 = vadd.f32 %v997, %v1024
          %v1037 = vadd.f32 %v998, %v1024
          %v1038 = vadd.f32 %v999, %v1024
          %v1039 = vadd.f32 %v1000, %v1024
          %v1040 = vadd.f32 %v1001, %v1024
          %v1041 = vadd.f32 %v1002, %v1024
          %v1042 = vadd.f32 %v1003, %v1024
          %v1043 = vadd.f32 %v1004, %v1024
          %v1044 = vadd.f32 %v1005, %v1024
          %v1045 = vadd.f32 %v1006, %v1024
          %v1046 = vadd.f32 %v1007, %v1024
          %v1047 = vadd.f32 %v1008, %v1024
          %v1048 = vadd.f32 %v1009, %v1024
          %v1049 = vadd.f32 %v1010, %v1024
          %v1050 = vadd.f32 %v1011, %v1024
          %v1051 = vadd.f32 %v1012, %v1024
          %v1052 = vadd.f32 %v1013, %v1024
          %v1053 = vadd.f32 %v1014, %v1024
          %v1054 = vadd.f32 %v1015, %v1024
          %v1055 = vadd.f32 %v1016, %v1024
          %v1056 = vadd.f32 %v1017, %v1024
          %v1057 = vadd.f32 %v1018, %v1024
          %1058 = vst [vmem:[%s456] sm:$0xff] %v1026
          %1059 = vst [vmem:[%s456 + $0x8] sm:$0xff] %v1027
          %1060 = vst [vmem:[%s456 + $0x10] sm:$0xff] %v1028
          %1061 = vst [vmem:[%s456 + $0x18] sm:$0xff] %v1029
          %1062 = vst [vmem:[%s456 + $0x20] sm:$0xff] %v1030
          %1063 = vst [vmem:[%s456 + $0x28] sm:$0xff] %v1031
          %1064 = vst [vmem:[%s456 + $0x30] sm:$0xff] %v1032
          %1065 = vst [vmem:[%s456 + $0x38] sm:$0xff] %v1033
          %1066 = vst [vmem:[%s456 + $0x40] sm:$0xff] %v1034
          %1067 = vst [vmem:[%s456 + $0x48] sm:$0xff] %v1035
          %1068 = vst [vmem:[%s456 + $0x50] sm:$0xff] %v1036
          %1069 = vst [vmem:[%s456 + $0x58] sm:$0xff] %v1037
          %1070 = vst [vmem:[%s456 + $0x60] sm:$0xff] %v1038
          %1071 = vst [vmem:[%s456 + $0x68] sm:$0xff] %v1039
          %1072 = vst [vmem:[%s456 + $0x70] sm:$0xff] %v1040
          %1073 = vst [vmem:[%s456 + $0x78] sm:$0xff] %v1041
          %1074 = vst [vmem:[%s456 + $0x80] sm:$0xff] %v1042
          %1075 = vst [vmem:[%s456 + $0x88] sm:$0xff] %v1043
          %1076 = vst [vmem:[%s456 + $0x90] sm:$0xff] %v1044
          %1077 = vst [vmem:[%s456 + $0x98] sm:$0xff] %v1045
          %1078 = vst [vmem:[%s456 + $0xa0] sm:$0xff] %v1046
          %1079 = vst [vmem:[%s456 + $0xa8] sm:$0xff] %v1047
          %1080 = vst [vmem:[%s456 + $0xb0] sm:$0xff] %v1048
          %1081 = vst [vmem:[%s456 + $0xb8] sm:$0xff] %v1049
          %1082 = vst [vmem:[%s456 + $0xc0] sm:$0xff] %v1050
          %1083 = vst [vmem:[%s456 + $0xc8] sm:$0xff] %v1051
          %1084 = vst [vmem:[%s456 + $0xd0] sm:$0xff] %v1052
          %1085 = vst [vmem:[%s456 + $0xd8] sm:$0xff] %v1053
          %1086 = vst [vmem:[%s456 + $0xe0] sm:$0xff] %v1054
          %1087 = vst [vmem:[%s456 + $0xe8] sm:$0xff] %v1055
          %1088 = vst [vmem:[%s456 + $0xf0] sm:$0xff] %v1056
          %1089 = vst [vmem:[%s456 + $0xf8] sm:$0xff] %v1057
        $region85: #{_lambda_.16} parent=72 // pred_fallthru
          _
        %s1090 = smul.u32 32, %s20
        %p1091 = scmp.lt.s32.totalorder %s1090, 63
        %s1092 = scalar_select %p1091, %s1090, 63
        %p1093 = scmp.lt.s32.totalorder %s21, 0
        %s1094 = scalar_select %p1093, %s21, 0
        %s1095 = sadd.s32 %s1094, %s1092
        %s1096 = smul.addr %s1095, 8
        %s1097 = scalar_lea.vmem %s4, %s1096
        // Predicated region
        $region86: #{_lambda_.16} parent=72 // pred_check
          %p1098 = pneg %p162
        $region87: #{_lambda_.16} parent=72 // pred_check_branch
          %1100 = sbr.rel (%p1098) target = $region89
        $region88: #{_lambda_.16} parent=72 // pred_region
          %s1101 = smul.u32 32, %s20
        $region89: #{_lambda_.16} parent=72 // pred_fallthru
          _
      $region73: #{_lambda_.16} parent=5 // pred_fallthru
        _
      %p1102 = scmp.le.s32.totalorder 2, %s10
      // Predicated region
      $region90: #{_lambda_.16} parent=5 // pred_check
        %p1103 = pneg %p1102
      $region91: #{_lambda_.16} parent=5 // pred_check_branch
        %1105 = sbr.rel (%p1103) target = $region93
      $region92: #{_lambda_.16} parent=5 // pred_region
        %s1106 = ssub.s32 %s10, 2
        // Predicated region
        $region94: #{_lambda_.16} parent=92 // pred_check
          %p1107 = pneg %p168
        $region95: #{_lambda_.16} parent=92 // pred_check_branch
          %1109 = sbr.rel (%p1107) target = $region97
        $region96: #{_lambda_.16} parent=92 // pred_region
          %s1110 = smul.u32 32, %s23
          %p1111 = scmp.lt.s32.totalorder %s1110, 63
          %s1112 = scalar_select %p1111, %s1110, 63
          %p1113 = scmp.lt.s32.totalorder %s24, 0
          %s1114 = scalar_select %p1113, %s24, 0
          %s1115 = sadd.s32 %s1114, %s1112
          %s1116 = smul.addr %s1115, 8
          %s1117 = scalar_lea.vmem %s4, %s1116
        $region97: #{_lambda_.16} parent=92 // pred_fallthru
          _
      $region93: #{_lambda_.16} parent=5 // pred_fallthru
        _
    $region6: #{_lambda_.16} parent=1 // loop_footer
      %s14 = sadd.s32 1, %s10
    $region7: #{_lambda_.16} parent=1 // loop_footer_branch
      %9 = sbr.rel target = $region3
    $region8: #{_lambda_.16} parent=1 // loop_exit
      _

// kernel: _lambda_.17
$region0: #{_lambda_.17}
  #allocation0 [shape = 'u32[]', space=smem, size = 0x4, offset = 0x4, fixed_abs, tag = 'smem constant byte address 0x4 - core index']
  #allocation1 [shape = 'u32[144,128]{1,0:T(1,128)}', space=vmem, size = 0x12000, scoped, tag = 'internal scratch']
  %s0 = inlined_call_operand.vmem [shape: f32[2,3,16,16,9], index: 0, kind: input, shape index: {}]
  %s1 = inlined_call_operand.vmem [shape: f32[2,3,16,16,9], index: 1, kind: output, shape index: {}]
  %s2 = sld [smem:[#allocation0]]
  $region37: #{_lambda_.17} parent=0
    _
  %s4 = ssub.s32 1, %s2
  %s5 = scalar_select 0, %s4, %s2
  loop: start=0, step=1, limit=8
  $region2: #{_lambda_.17} parent=0 // loop_pre_header
    _
  $region3: #{_lambda_.17} parent=0 // loop_header
    %s7 = sphi 0, %s11
    %p8 = scmp.ge.s32.totalorder %s7, 8
    %s14 = sphi 0, %s26
    %s15 = sphi 0, %s22
    %s16 = sphi 0, %s14
    %s17 = sphi 0, %s15
    %s18 = sphi 0, %s16
    %s19 = sphi 0, %s17
    %s31 = sphi 0, %s33
    %s34 = sphi 0, %s31
    %s35 = sphi 0, %s34
    %s51 = sphi 0, %s35
    %s59 = sphi 0, %s61
    %s62 = sphi 0, %s59
    %s63 = sphi 0, %s62
    %s79 = sphi 0, %s63
  $region4: #{_lambda_.17} parent=0 // loop_header_branch
    %10 = sbr.rel (%p8) target = $region8
  $region5: #{_lambda_.17} parent=0 // loop_body
    %s12 = ssub.s32 %s7, 1
    %s13 = ssub.s32 %s7, 2
    %s20 = sadd.s32 1, %s15
    %p21 = scmp.ge.s32.totalorder %s20, 3
    %s22 = scalar_select %p21, 0, %s20
    %s23 = sadd.s32 1, %s14
    %s24 = scalar_select %p21, %s23, %s14
    %p25 = scmp.ge.s32.totalorder %s24, 2
    %s26 = scalar_select %p25, 0, %s24
    %s27 = ssub.s32 %s14, %s26
    %s28 = ssub.s32 %s15, %s22
    %s29 = sor.u32 %s27, %s28
    %p30 = scmp.eq.s32.totalorder %s29, 0
    %s32 = sadd.s32 %s31, 1
    %s33 = scalar_select %p30, %s31, %s32
    %p36 = pneg %p30
    %p37 = scmp.eq.s32.totalorder %s7, 5
    %p38 = por %p36, %p37
    %p39 = scmp.ne.s32.totalorder %s31, %s34
    %p40 = scmp.eq.s32.totalorder %s7, 0
    %p41 = por %p39, %p40
    %p42 = scmp.ne.s32.totalorder %s31, %s34
    %p43 = scmp.eq.s32.totalorder %s12, 5
    %p44 = por %p42, %p43
    %p45 = scmp.ne.s32.totalorder %s34, %s35
    %p46 = scmp.eq.s32.totalorder %s12, 0
    %p47 = por %p45, %p46
    %p48 = scmp.ne.s32.totalorder %s34, %s35
    %p49 = scmp.eq.s32.totalorder %s13, 5
    %p50 = por %p48, %p49
    %p52 = scmp.ne.s32.totalorder %s35, %s51
    %p53 = scmp.eq.s32.totalorder %s13, 0
    %p54 = por %p52, %p53
    %s55 = ssub.s32 %s14, %s26
    %s56 = ssub.s32 %s15, %s22
    %s57 = sor.u32 %s55, %s56
    %p58 = scmp.eq.s32.totalorder %s57, 0
    %s60 = sadd.s32 %s59, 1
    %s61 = scalar_select %p58, %s59, %s60
    %p64 = pneg %p58
    %p65 = scmp.eq.s32.totalorder %s7, 5
    %p66 = por %p64, %p65
    %p67 = scmp.ne.s32.totalorder %s59, %s62
    %p68 = scmp.eq.s32.totalorder %s7, 0
    %p69 = por %p67, %p68
    %p70 = scmp.ne.s32.totalorder %s59, %s62
    %p71 = scmp.eq.s32.totalorder %s12, 5
    %p72 = por %p70, %p71
    %p73 = scmp.ne.s32.totalorder %s62, %s63
    %p74 = scmp.eq.s32.totalorder %s12, 0
    %p75 = por %p73, %p74
    %p76 = scmp.ne.s32.totalorder %s62, %s63
    %p77 = scmp.eq.s32.totalorder %s13, 5
    %p78 = por %p76, %p77
    %p80 = scmp.ne.s32.totalorder %s63, %s79
    %p81 = scmp.eq.s32.totalorder %s13, 0
    %p82 = por %p80, %p81
    %p83 = scmp.le.s32.totalorder 1, %s7
    %p84 = scmp.lt.s32.totalorder %s7, 7
    %p85 = pnand %p83, %p84
    %p86 = pneg %p85
    // Predicated region
    $region9: #{_lambda_.17} parent=5 // pred_check
      _
    $region10: #{_lambda_.17} parent=5 // pred_check_branch
      %88 = sbr.rel (%p85) target = $region12
    $region11: #{_lambda_.17} parent=5 // pred_region
      %s89 = ssub.s32 %s7, 1
    $region12: #{_lambda_.17} parent=5 // pred_fallthru
      _
    %p90 = scmp.lt.s32.totalorder %s7, 6
    // Predicated region
    $region13: #{_lambda_.17} parent=5 // pred_check
      %p91 = pneg %p90
    $region14: #{_lambda_.17} parent=5 // pred_check_branch
      %93 = sbr.rel (%p91) target = $region16
    $region15: #{_lambda_.17} parent=5 // pred_region
      // Predicated region
      $region17: #{_lambda_.17} parent=15 // pred_check
        %p94 = pneg %p41
      $region18: #{_lambda_.17} parent=15 // pred_check_branch
        %96 = sbr.rel (%p94) target = $region20
      $region19: #{_lambda_.17} parent=15 // pred_region
        %p97 = scmp.lt.s32.totalorder %s14, 1
        %s98 = scalar_select %p97, %s14, 1
        %p99 = scmp.lt.s32.totalorder %s15, 2
        %s100 = scalar_select %p99, %s15, 2
        %s101 = smul.addr %s100, 32
        %s102 = smul.addr %s98, 96
        %s103 = sadd.s32 %s101, %s102
        %s104 = smul.addr %s103, 8
        %s105 = scalar_lea.vmem %s0, %s104
      $region20: #{_lambda_.17} parent=15 // pred_fallthru
        _
    $region16: #{_lambda_.17} parent=5 // pred_fallthru
      _
    %p106 = scmp.le.s32.totalorder 1, %s7
    %p107 = scmp.lt.s32.totalorder %s7, 7
    %p108 = pnand %p106, %p107
    %p109 = pneg %p108
    // Predicated region
    $region21: #{_lambda_.17} parent=5 // pred_check
      _
    $region22: #{_lambda_.17} parent=5 // pred_check_branch
      %111 = sbr.rel (%p108) target = $region24
    $region23: #{_lambda_.17} parent=5 // pred_region
      %s112 = ssub.s32 %s7, 1
      %p113 = scmp.lt.s32.totalorder %s16, 1
      %s114 = scalar_select %p113, %s16, 1
      %p115 = scmp.lt.s32.totalorder %s17, 2
      %s116 = scalar_select %p115, %s17, 2
      %s117 = smul.addr %s116, 32
      %s118 = smul.addr %s114, 96
      %s119 = sadd.s32 %s117, %s118
      %s120 = smul.addr %s119, 8
      %s121 = scalar_lea.vmem %s0, %s120
      %p122 = pneg %p47
      %p123 = pneg %p44
      %p124 = pneg %p75
      %p125 = pneg %p72
      %p126 = scmp.lt.s32.totalorder %s16, 1
      %s127 = scalar_select %p126, %s16, 1
      %p128 = scmp.lt.s32.totalorder %s17, 2
      %s129 = scalar_select %p128, %s17, 2
      %s130 = smul.addr %s129, 32
      %s131 = smul.addr %s127, 96
      %s132 = sadd.s32 %s130, %s131
      %s133 = smul.addr %s132, 8
      %s134 = scalar_lea.vmem %s1, %s133
      %p135 = scmp.lt.s32.totalorder %s16, 1
      %s136 = scalar_select %p135, %s16, 1
      %p137 = scmp.lt.s32.totalorder %s17, 2
      %s138 = scalar_select %p137, %s17, 2
      %s139 = smul.addr %s138, 32
      %s140 = smul.addr %s136, 96
      %s141 = sadd.s32 %s139, %s140
      %s142 = smul.addr %s141, 8
      %s143 = scalar_lea.vmem %s0, %s142
      %p144 = scmp.lt.s32.totalorder %s16, 1
      %s145 = scalar_select %p144, %s16, 1
      %p146 = scmp.lt.s32.totalorder %s17, 2
      %s147 = scalar_select %p146, %s17, 2
      %s148 = smul.addr %s147, 32
      %s149 = smul.addr %s145, 96
      %s150 = sadd.s32 %s148, %s149
      %s151 = smul.addr %s150, 8
      %s152 = scalar_lea.vmem %s1, %s151
      %v153 = vld [vmem:[%s143] sm:$0xff]
      %v154 = vld [vmem:[%s143 + $0x8] sm:$0xff]
      %v155 = vld [vmem:[%s143 + $0x10] sm:$0xff]
      %v156 = vld [vmem:[%s143 + $0x18] sm:$0xff]
      %v157 = vld [vmem:[%s143 + $0x20] sm:$0xff]
      %v158 = vld [vmem:[%s143 + $0x28] sm:$0xff]
      %v159 = vld [vmem:[%s143 + $0x30] sm:$0xff]
      %v160 = vld [vmem:[%s143 + $0x38] sm:$0xff]
      %v161 = vld [vmem:[%s143 + $0x40] sm:$0xff]
      %v162 = vld [vmem:[%s143 + $0x48] sm:$0xff]
      %v163 = vld [vmem:[%s143 + $0x50] sm:$0xff]
      %v164 = vld [vmem:[%s143 + $0x58] sm:$0xff]
      %v165 = vld [vmem:[%s143 + $0x60] sm:$0xff]
      %v166 = vld [vmem:[%s143 + $0x68] sm:$0xff]
      %v167 = vld [vmem:[%s143 + $0x70] sm:$0xff]
      %v168 = vld [vmem:[%s143 + $0x78] sm:$0xff]
      %v169 = vld [vmem:[%s143 + $0x80] sm:$0xff]
      %v170 = vld [vmem:[%s143 + $0x88] sm:$0xff]
      %v171 = vld [vmem:[%s143 + $0x90] sm:$0xff]
      %v172 = vld [vmem:[%s143 + $0x98] sm:$0xff]
      %v173 = vld [vmem:[%s143 + $0xa0] sm:$0xff]
      %v174 = vld [vmem:[%s143 + $0xa8] sm:$0xff]
      %v175 = vld [vmem:[%s143 + $0xb0] sm:$0xff]
      %v176 = vld [vmem:[%s143 + $0xb8] sm:$0xff]
      %v177 = vld [vmem:[%s143 + $0xc0] sm:$0xff]
      %v178 = vld [vmem:[%s143 + $0xc8] sm:$0xff]
      %v179 = vld [vmem:[%s143 + $0xd0] sm:$0xff]
      %v180 = vld [vmem:[%s143 + $0xd8] sm:$0xff]
      %v181 = vld [vmem:[%s143 + $0xe0] sm:$0xff]
      %v182 = vld [vmem:[%s143 + $0xe8] sm:$0xff]
      %v183 = vld [vmem:[%s143 + $0xf0] sm:$0xff]
      %v184 = vld [vmem:[%s143 + $0xf8] sm:$0xff]
      %v185 = vcvt.s32.f32 0
      %v186 = vcvt.s32.f32 1
      %v187 = vcvt.s32.f32 2
      %v188 = vcvt.s32.f32 3
      %v189 = vcvt.s32.f32 4
      %v190 = vcvt.s32.f32 5
      %v191 = vcvt.s32.f32 6
      %v192 = vcvt.s32.f32 7
      %v193 = vcvt.s32.f32 8
      %v194 = vcvt.s32.f32 9
      %v195 = vcvt.s32.f32 10
      %v196 = vcvt.s32.f32 11
      %v197 = vcvt.s32.f32 12
      %v198 = vcvt.s32.f32 13
      %v199 = vcvt.s32.f32 14
      %v200 = vcvt.s32.f32 15
      %v201 = vlaneseq
      %v202 = vshrl.u32 %v201, 7
      %v203 = vadd.s32 %v202, 8
      %v204 = vcvt.s32.f32 %v202
      %v205 = vcvt.s32.f32 %v203
      %v206 = vlaneseq
      %v207 = vand.u32 %v206, 127
      %p208 = scmp.eq.s32.totalorder %s17, 1
      %s209 = scalar_select %p208, 62.0, 30.0
      %s210 = scalar_select %p208, 45.0, 61.0
      %p211 = scmp.eq.s32.totalorder %s17, 2
      %s212 = scalar_select %p211, 59.0, %s209
      %s213 = scalar_select %p211, 119.0, %s210
      %vm214 = vcmp.lt.s32.totalorder %v207, 2
      %vm215 = vcmp.ge.s32.totalorder %v207, 2
      %vm216 = vcmp.lt.s32.totalorder %v207, 4
      %vm217 = vmand %vm215, %vm216
      %v218 = vxor.u32 %v153, 2147483648
      %v219 = vxor.u32 %v154, 2147483648
      %v220 = vxor.u32 %v155, 2147483648
      %v221 = vxor.u32 %v156, 2147483648
      %v222 = vxor.u32 %v157, 2147483648
      %v223 = vxor.u32 %v158, 2147483648
      %v224 = vxor.u32 %v159, 2147483648
      %v225 = vxor.u32 %v160, 2147483648
      %v226 = vxor.u32 %v161, 2147483648
      %v227 = vxor.u32 %v162, 2147483648
      %v228 = vxor.u32 %v163, 2147483648
      %v229 = vxor.u32 %v164, 2147483648
      %v230 = vxor.u32 %v165, 2147483648
      %v231 = vxor.u32 %v166, 2147483648
      %v232 = vxor.u32 %v167, 2147483648
      %v233 = vxor.u32 %v168, 2147483648
      %v234 = vxor.u32 %v169, 2147483648
      %v235 = vxor.u32 %v170, 2147483648
      %v236 = vxor.u32 %v171, 2147483648
      %v237 = vxor.u32 %v172, 2147483648
      %v238 = vxor.u32 %v173, 2147483648
      %v239 = vxor.u32 %v174, 2147483648
      %v240 = vxor.u32 %v175, 2147483648
      %v241 = vxor.u32 %v176, 2147483648
      %v242 = vxor.u32 %v177, 2147483648
      %v243 = vxor.u32 %v178, 2147483648
      %v244 = vxor.u32 %v179, 2147483648
      %v245 = vxor.u32 %v180, 2147483648
      %v246 = vxor.u32 %v181, 2147483648
      %v247 = vxor.u32 %v182, 2147483648
      %v248 = vxor.u32 %v183, 2147483648
      %v249 = vxor.u32 %v184, 2147483648
      %v250 = vmul.f32 %v218, 1.442695
      %v251 = vpow.pop %v250
      %v252 = vmul.f32 %v219, 1.442695
      %v253 = vpow.pop %v252
      %v254 = vmul.f32 %v220, 1.442695
      %v255 = vpow.pop %v254
      %v256 = vmul.f32 %v221, 1.442695
      %v257 = vpow.pop %v256
      %v258 = vmul.f32 %v222, 1.442695
      %v259 = vpow.pop %v258
      %v260 = vmul.f32 %v223, 1.442695
      %v261 = vpow.pop %v260
      %v262 = vmul.f32 %v224, 1.442695
      %v263 = vpow.pop %v262
      %v264 = vmul.f32 %v225, 1.442695
      %v265 = vpow.pop %v264
      %v266 = vmul.f32 %v226, 1.442695
      %v267 = vpow.pop %v266
      %v268 = vmul.f32 %v227, 1.442695
      %v269 = vpow.pop %v268
      %v270 = vmul.f32 %v228, 1.442695
      %v271 = vpow.pop %v270
      %v272 = vmul.f32 %v229, 1.442695
      %v273 = vpow.pop %v272
      %v274 = vmul.f32 %v230, 1.442695
      %v275 = vpow.pop %v274
      %v276 = vmul.f32 %v231, 1.442695
      %v277 = vpow.pop %v276
      %v278 = vmul.f32 %v232, 1.442695
      %v279 = vpow.pop %v278
      %v280 = vmul.f32 %v233, 1.442695
      %v281 = vpow.pop %v280
      %v282 = vmul.f32 %v234, 1.442695
      %v283 = vpow.pop %v282
      %v284 = vmul.f32 %v235, 1.442695
      %v285 = vpow.pop %v284
      %v286 = vmul.f32 %v236, 1.442695
      %v287 = vpow.pop %v286
      %v288 = vmul.f32 %v237, 1.442695
      %v289 = vpow.pop %v288
      %v290 = vmul.f32 %v238, 1.442695
      %v291 = vpow.pop %v290
      %v292 = vmul.f32 %v239, 1.442695
      %v293 = vpow.pop %v292
      %v294 = vmul.f32 %v240, 1.442695
      %v295 = vpow.pop %v294
      %v296 = vmul.f32 %v241, 1.442695
      %v297 = vpow.pop %v296
      %v298 = vmul.f32 %v242, 1.442695
      %v299 = vpow.pop %v298
      %v300 = vmul.f32 %v243, 1.442695
      %v301 = vpow.pop %v300
      %v302 = vmul.f32 %v244, 1.442695
      %v303 = vpow.pop %v302
      %v304 = vmul.f32 %v245, 1.442695
      %v305 = vpow.pop %v304
      %v306 = vmul.f32 %v246, 1.442695
      %v307 = vpow.pop %v306
      %v308 = vmul.f32 %v247, 1.442695
      %v309 = vpow.pop %v308
      %v310 = vmul.f32 %v248, 1.442695
      %v311 = vpow.pop %v310
      %v312 = vmul.f32 %v249, 1.442695
      %v313 = vpow.pop %v312
      %v314 = vadd.f32 %v251, 1.0
      %v315 = vadd.f32 %v253, 1.0
      %v316 = vadd.f32 %v255, 1.0
      %v317 = vadd.f32 %v257, 1.0
      %v318 = vadd.f32 %v259, 1.0
      %v319 = vadd.f32 %v261, 1.0
      %v320 = vadd.f32 %v263, 1.0
      %v321 = vadd.f32 %v265, 1.0
      %v322 = vadd.f32 %v267, 1.0
      %v323 = vadd.f32 %v269, 1.0
      %v324 = vadd.f32 %v271, 1.0
      %v325 = vadd.f32 %v273, 1.0
      %v326 = vadd.f32 %v275, 1.0
      %v327 = vadd.f32 %v277, 1.0
      %v328 = vadd.f32 %v279, 1.0
      %v329 = vadd.f32 %v281, 1.0
      %v330 = vadd.f32 %v283, 1.0
      %v331 = vadd.f32 %v285, 1.0
      %v332 = vadd.f32 %v287, 1.0
      %v333 = vadd.f32 %v289, 1.0
      %v334 = vadd.f32 %v291, 1.0
      %v335 = vadd.f32 %v293, 1.0
      %v336 = vadd.f32 %v295, 1.0
      %v337 = vadd.f32 %v297, 1.0
      %v338 = vadd.f32 %v299, 1.0
      %v339 = vadd.f32 %v301, 1.0
      %v340 = vadd.f32 %v303, 1.0
      %v341 = vadd.f32 %v305, 1.0
      %v342 = vadd.f32 %v307, 1.0
      %v343 = vadd.f32 %v309, 1.0
      %v344 = vadd.f32 %v311, 1.0
      %v345 = vadd.f32 %v313, 1.0
      %v346 = vrcp.pop %v314
      %v347 = vmul.f32 1.0, %v346
      %v348 = vrcp.pop %v315
      %v349 = vmul.f32 1.0, %v348
      %v350 = vrcp.pop %v316
      %v351 = vmul.f32 1.0, %v350
      %v352 = vrcp.pop %v317
      %v353 = vmul.f32 1.0, %v352
      %v354 = vrcp.pop %v318
      %v355 = vmul.f32 1.0, %v354
      %v356 = vrcp.pop %v319
      %v357 = vmul.f32 1.0, %v356
      %v358 = vrcp.pop %v320
      %v359 = vmul.f32 1.0, %v358
      %v360 = vrcp.pop %v321
      %v361 = vmul.f32 1.0, %v360
      %v362 = vrcp.pop %v322
      %v363 = vmul.f32 1.0, %v362
      %v364 = vrcp.pop %v323
      %v365 = vmul.f32 1.0, %v364
      %v366 = vrcp.pop %v324
      %v367 = vmul.f32 1.0, %v366
      %v368 = vrcp.pop %v325
      %v369 = vmul.f32 1.0, %v368
      %v370 = vrcp.pop %v326
      %v371 = vmul.f32 1.0, %v370
      %v372 = vrcp.pop %v327
      %v373 = vmul.f32 1.0, %v372
      %v374 = vrcp.pop %v328
      %v375 = vmul.f32 1.0, %v374
      %v376 = vrcp.pop %v329
      %v377 = vmul.f32 1.0, %v376
      %v378 = vrcp.pop %v330
      %v379 = vmul.f32 1.0, %v378
      %v380 = vrcp.pop %v331
      %v381 = vmul.f32 1.0, %v380
      %v382 = vrcp.pop %v332
      %v383 = vmul.f32 1.0, %v382
      %v384 = vrcp.pop %v333
      %v385 = vmul.f32 1.0, %v384
      %v386 = vrcp.pop %v334
      %v387 = vmul.f32 1.0, %v386
      %v388 = vrcp.pop %v335
      %v389 = vmul.f32 1.0, %v388
      %v390 = vrcp.pop %v336
      %v391 = vmul.f32 1.0, %v390
      %v392 = vrcp.pop %v337
      %v393 = vmul.f32 1.0, %v392
      %v394 = vrcp.pop %v338
      %v395 = vmul.f32 1.0, %v394
      %v396 = vrcp.pop %v339
      %v397 = vmul.f32 1.0, %v396
      %v398 = vrcp.pop %v340
      %v399 = vmul.f32 1.0, %v398
      %v400 = vrcp.pop %v341
      %v401 = vmul.f32 1.0, %v400
      %v402 = vrcp.pop %v342
      %v403 = vmul.f32 1.0, %v402
      %v404 = vrcp.pop %v343
      %v405 = vmul.f32 1.0, %v404
      %v406 = vrcp.pop %v344
      %v407 = vmul.f32 1.0, %v406
      %v408 = vrcp.pop %v345
      %v409 = vmul.f32 1.0, %v408
      %v410 = vsel %vm217, %v153, 0.0
      %v411 = vsel %vm217, %v154, 0.0
      %v412 = vsel %vm217, %v155, 0.0
      %v413 = vsel %vm217, %v156, 0.0
      %v414 = vsel %vm217, %v157, 0.0
      %v415 = vsel %vm217, %v158, 0.0
      %v416 = vsel %vm217, %v159, 0.0
      %v417 = vsel %vm217, %v160, 0.0
      %v418 = vsel %vm217, %v161, 0.0
      %v419 = vsel %vm217, %v162, 0.0
      %v420 = vsel %vm217, %v163, 0.0
      %v421 = vsel %vm217, %v164, 0.0
      %v422 = vsel %vm217, %v165, 0.0
      %v423 = vsel %vm217, %v166, 0.0
      %v424 = vsel %vm217, %v167, 0.0
      %v425 = vsel %vm217, %v168, 0.0
      %v426 = vsel %vm217, %v169, 0.0
      %v427 = vsel %vm217, %v170, 0.0
      %v428 = vsel %vm217, %v171, 0.0
      %v429 = vsel %vm217, %v172, 0.0
      %v430 = vsel %vm217, %v173, 0.0
      %v431 = vsel %vm217, %v174, 0.0
      %v432 = vsel %vm217, %v175, 0.0
      %v433 = vsel %vm217, %v176, 0.0
      %v434 = vsel %vm217, %v177, 0.0
      %v435 = vsel %vm217, %v178, 0.0
      %v436 = vsel %vm217, %v179, 0.0
      %v437 = vsel %vm217, %v180, 0.0
      %v438 = vsel %vm217, %v181, 0.0
      %v439 = vsel %vm217, %v182, 0.0
      %v440 = vsel %vm217, %v183, 0.0
      %v441 = vsel %vm217, %v184, 0.0
      %v442 = vmul.f32 %v410, 1.442695
      %v443 = vpow.pop %v442
      %v444 = vmul.f32 %v411, 1.442695
      %v445 = vpow.pop %v444
      %v446 = vmul.f32 %v412, 1.442695
      %v447 = vpow.pop %v446
      %v448 = vmul.f32 %v413, 1.442695
      %v449 = vpow.pop %v448
      %v450 = vmul.f32 %v414, 1.442695
      %v451 = vpow.pop %v450
      %v452 = vmul.f32 %v415, 1.442695
      %v453 = vpow.pop %v452
      %v454 = vmul.f32 %v416, 1.442695
      %v455 = vpow.pop %v454
      %v456 = vmul.f32 %v417, 1.442695
      %v457 = vpow.pop %v456
      %v458 = vmul.f32 %v418, 1.442695
      %v459 = vpow.pop %v458
      %v460 = vmul.f32 %v419, 1.442695
      %v461 = vpow.pop %v460
      %v462 = vmul.f32 %v420, 1.442695
      %v463 = vpow.pop %v462
      %v464 = vmul.f32 %v421, 1.442695
      %v465 = vpow.pop %v464
      %v466 = vmul.f32 %v422, 1.442695
      %v467 = vpow.pop %v466
      %v468 = vmul.f32 %v423, 1.442695
      %v469 = vpow.pop %v468
      %v470 = vmul.f32 %v424, 1.442695
      %v471 = vpow.pop %v470
      %v472 = vmul.f32 %v425, 1.442695
      %v473 = vpow.pop %v472
      %v474 = vmul.f32 %v426, 1.442695
      %v475 = vpow.pop %v474
      %v476 = vmul.f32 %v427, 1.442695
      %v477 = vpow.pop %v476
      %v478 = vmul.f32 %v428, 1.442695
      %v479 = vpow.pop %v478
      %v480 = vmul.f32 %v429, 1.442695
      %v481 = vpow.pop %v480
      %v482 = vmul.f32 %v430, 1.442695
      %v483 = vpow.pop %v482
      %v484 = vmul.f32 %v431, 1.442695
      %v485 = vpow.pop %v484
      %v486 = vmul.f32 %v432, 1.442695
      %v487 = vpow.pop %v486
      %v488 = vmul.f32 %v433, 1.442695
      %v489 = vpow.pop %v488
      %v490 = vmul.f32 %v434, 1.442695
      %v491 = vpow.pop %v490
      %v492 = vmul.f32 %v435, 1.442695
      %v493 = vpow.pop %v492
      %v494 = vmul.f32 %v436, 1.442695
      %v495 = vpow.pop %v494
      %v496 = vmul.f32 %v437, 1.442695
      %v497 = vpow.pop %v496
      %v498 = vmul.f32 %v438, 1.442695
      %v499 = vpow.pop %v498
      %v500 = vmul.f32 %v439, 1.442695
      %v501 = vpow.pop %v500
      %v502 = vmul.f32 %v440, 1.442695
      %v503 = vpow.pop %v502
      %v504 = vmul.f32 %v441, 1.442695
      %v505 = vpow.pop %v504
      %vm506 = vcmp.eq.s32.totalorder %v207, 0
      %v507 = vsel %vm506, %v204, %v185
      %v508 = vsel %vm506, %v205, %v185
      %v509 = vsel %vm506, %v204, %v186
      %v510 = vsel %vm506, %v205, %v186
      %v511 = vsel %vm506, %v204, %v187
      %v512 = vsel %vm506, %v205, %v187
      %v513 = vsel %vm506, %v204, %v188
      %v514 = vsel %vm506, %v205, %v188
      %v515 = vsel %vm506, %v204, %v189
      %v516 = vsel %vm506, %v205, %v189
      %v517 = vsel %vm506, %v204, %v190
      %v518 = vsel %vm506, %v205, %v190
      %v519 = vsel %vm506, %v204, %v191
      %v520 = vsel %vm506, %v205, %v191
      %v521 = vsel %vm506, %v204, %v192
      %v522 = vsel %vm506, %v205, %v192
      %v523 = vsel %vm506, %v204, %v193
      %v524 = vsel %vm506, %v205, %v193
      %v525 = vsel %vm506, %v204, %v194
      %v526 = vsel %vm506, %v205, %v194
      %v527 = vsel %vm506, %v204, %v195
      %v528 = vsel %vm506, %v205, %v195
      %v529 = vsel %vm506, %v204, %v196
      %v530 = vsel %vm506, %v205, %v196
      %v531 = vsel %vm506, %v204, %v197
      %v532 = vsel %vm506, %v205, %v197
      %v533 = vsel %vm506, %v204, %v198
      %v534 = vsel %vm506, %v205, %v198
      %v535 = vsel %vm506, %v204, %v199
      %v536 = vsel %vm506, %v205, %v199
      %v537 = vsel %vm506, %v204, %v200
      %v538 = vsel %vm506, %v205, %v200
      %vm539 = vcmp.eq.s32.totalorder %v207, 2
      %v540 = vstv %s212
      %v541 = vstv %s213
      %v542 = vsel %vm539, %v540, %v541
      %v543 = vadd.f32 %v347, %v507
      %v544 = vadd.f32 %v349, %v508
      %v545 = vadd.f32 %v351, %v509
      %v546 = vadd.f32 %v353, %v510
      %v547 = vadd.f32 %v355, %v511
      %v548 = vadd.f32 %v357, %v512
      %v549 = vadd.f32 %v359, %v513
      %v550 = vadd.f32 %v361, %v514
      %v551 = vadd.f32 %v363, %v515
      %v552 = vadd.f32 %v365, %v516
      %v553 = vadd.f32 %v367, %v517
      %v554 = vadd.f32 %v369, %v518
      %v555 = vadd.f32 %v371, %v519
      %v556 = vadd.f32 %v373, %v520
      %v557 = vadd.f32 %v375, %v521
      %v558 = vadd.f32 %v377, %v522
      %v559 = vadd.f32 %v379, %v523
      %v560 = vadd.f32 %v381, %v524
      %v561 = vadd.f32 %v383, %v525
      %v562 = vadd.f32 %v385, %v526
      %v563 = vadd.f32 %v387, %v527
      %v564 = vadd.f32 %v389, %v528
      %v565 = vadd.f32 %v391, %v529
      %v566 = vadd.f32 %v393, %v530
      %v567 = vadd.f32 %v395, %v531
      %v568 = vadd.f32 %v397, %v532
      %v569 = vadd.f32 %v399, %v533
      %v570 = vadd.f32 %v401, %v534
      %v571 = vadd.f32 %v403, %v535
      %v572 = vadd.f32 %v405, %v536
      %v573 = vadd.f32 %v407, %v537
      %v574 = vadd.f32 %v409, %v538
      %v575 = vmul.f32 %v443, %v542
      %v576 = vmul.f32 %v445, %v542
      %v577 = vmul.f32 %v447, %v542
      %v578 = vmul.f32 %v449, %v542
      %v579 = vmul.f32 %v451, %v542
      %v580 = vmul.f32 %v453, %v542
      %v581 = vmul.f32 %v455, %v542
      %v582 = vmul.f32 %v457, %v542
      %v583 = vmul.f32 %v459, %v542
      %v584 = vmul.f32 %v461, %v542
      %v585 = vmul.f32 %v463, %v542
      %v586 = vmul.f32 %v465, %v542
      %v587 = vmul.f32 %v467, %v542
      %v588 = vmul.f32 %v469, %v542
      %v589 = vmul.f32 %v471, %v542
      %v590 = vmul.f32 %v473, %v542
      %v591 = vmul.f32 %v475, %v542
      %v592 = vmul.f32 %v477, %v542
      %v593 = vmul.f32 %v479, %v542
      %v594 = vmul.f32 %v481, %v542
      %v595 = vmul.f32 %v483, %v542
      %v596 = vmul.f32 %v485, %v542
      %v597 = vmul.f32 %v487, %v542
      %v598 = vmul.f32 %v489, %v542
      %v599 = vmul.f32 %v491, %v542
      %v600 = vmul.f32 %v493, %v542
      %v601 = vmul.f32 %v495, %v542
      %v602 = vmul.f32 %v497, %v542
      %v603 = vmul.f32 %v499, %v542
      %v604 = vmul.f32 %v501, %v542
      %v605 = vmul.f32 %v503, %v542
      %v606 = vmul.f32 %v505, %v542
      %v607 = vsel %vm217, %v575, %v347
      %v608 = vsel %vm217, %v576, %v349
      %v609 = vsel %vm217, %v577, %v351
      %v610 = vsel %vm217, %v578, %v353
      %v611 = vsel %vm217, %v579, %v355
      %v612 = vsel %vm217, %v580, %v357
      %v613 = vsel %vm217, %v581, %v359
      %v614 = vsel %vm217, %v582, %v361
      %v615 = vsel %vm217, %v583, %v363
      %v616 = vsel %vm217, %v584, %v365
      %v617 = vsel %vm217, %v585, %v367
      %v618 = vsel %vm217, %v586, %v369
      %v619 = vsel %vm217, %v587, %v371
      %v620 = vsel %vm217, %v588, %v373
      %v621 = vsel %vm217, %v589, %v375
      %v622 = vsel %vm217, %v590, %v377
      %v623 = vsel %vm217, %v591, %v379
      %v624 = vsel %vm217, %v592, %v381
      %v625 = vsel %vm217, %v593, %v383
      %v626 = vsel %vm217, %v594, %v385
      %v627 = vsel %vm217, %v595, %v387
      %v628 = vsel %vm217, %v596, %v389
      %v629 = vsel %vm217, %v597, %v391
      %v630 = vsel %vm217, %v598, %v393
      %v631 = vsel %vm217, %v599, %v395
      %v632 = vsel %vm217, %v600, %v397
      %v633 = vsel %vm217, %v601, %v399
      %v634 = vsel %vm217, %v602, %v401
      %v635 = vsel %vm217, %v603, %v403
      %v636 = vsel %vm217, %v604, %v405
      %v637 = vsel %vm217, %v605, %v407
      %v638 = vsel %vm217, %v606, %v409
      %v639 = vsel %vm214, %v543, %v607
      %v640 = vsel %vm214, %v544, %v608
      %v641 = vsel %vm214, %v545, %v609
      %v642 = vsel %vm214, %v546, %v610
      %v643 = vsel %vm214, %v547, %v611
      %v644 = vsel %vm214, %v548, %v612
      %v645 = vsel %vm214, %v549, %v613
      %v646 = vsel %vm214, %v550, %v614
      %v647 = vsel %vm214, %v551, %v615
      %v648 = vsel %vm214, %v552, %v616
      %v649 = vsel %vm214, %v553, %v617
      %v650 = vsel %vm214, %v554, %v618
      %v651 = vsel %vm214, %v555, %v619
      %v652 = vsel %vm214, %v556, %v620
      %v653 = vsel %vm214, %v557, %v621
      %v654 = vsel %vm214, %v558, %v622
      %v655 = vsel %vm214, %v559, %v623
      %v656 = vsel %vm214, %v560, %v624
      %v657 = vsel %vm214, %v561, %v625
      %v658 = vsel %vm214, %v562, %v626
      %v659 = vsel %vm214, %v563, %v627
      %v660 = vsel %vm214, %v564, %v628
      %v661 = vsel %vm214, %v565, %v629
      %v662 = vsel %vm214, %v566, %v630
      %v663 = vsel %vm214, %v567, %v631
      %v664 = vsel %vm214, %v568, %v632
      %v665 = vsel %vm214, %v569, %v633
      %v666 = vsel %vm214, %v570, %v634
      %v667 = vsel %vm214, %v571, %v635
      %v668 = vsel %vm214, %v572, %v636
      %v669 = vsel %vm214, %v573, %v637
      %v670 = vsel %vm214, %v574, %v638
      %vm671 = vcmask 72704
      %672 = vst.msk [vmem:[%s152] sm:$0xff] %vm671, %v639
      %673 = vst.msk [vmem:[%s152 + $0x8] sm:$0xff] %vm671, %v640
      %674 = vst.msk [vmem:[%s152 + $0x10] sm:$0xff] %vm671, %v641
      %675 = vst.msk [vmem:[%s152 + $0x18] sm:$0xff] %vm671, %v642
      %676 = vst.msk [vmem:[%s152 + $0x20] sm:$0xff] %vm671, %v643
      %677 = vst.msk [vmem:[%s152 + $0x28] sm:$0xff] %vm671, %v644
      %678 = vst.msk [vmem:[%s152 + $0x30] sm:$0xff] %vm671, %v645
      %679 = vst.msk [vmem:[%s152 + $0x38] sm:$0xff] %vm671, %v646
      %680 = vst.msk [vmem:[%s152 + $0x40] sm:$0xff] %vm671, %v647
      %681 = vst.msk [vmem:[%s152 + $0x48] sm:$0xff] %vm671, %v648
      %682 = vst.msk [vmem:[%s152 + $0x50] sm:$0xff] %vm671, %v649
      %683 = vst.msk [vmem:[%s152 + $0x58] sm:$0xff] %vm671, %v650
      %684 = vst.msk [vmem:[%s152 + $0x60] sm:$0xff] %vm671, %v651
      %685 = vst.msk [vmem:[%s152 + $0x68] sm:$0xff] %vm671, %v652
      %686 = vst.msk [vmem:[%s152 + $0x70] sm:$0xff] %vm671, %v653
      %687 = vst.msk [vmem:[%s152 + $0x78] sm:$0xff] %vm671, %v654
      %688 = vst.msk [vmem:[%s152 + $0x80] sm:$0xff] %vm671, %v655
      %689 = vst.msk [vmem:[%s152 + $0x88] sm:$0xff] %vm671, %v656
      %690 = vst.msk [vmem:[%s152 + $0x90] sm:$0xff] %vm671, %v657
      %691 = vst.msk [vmem:[%s152 + $0x98] sm:$0xff] %vm671, %v658
      %692 = vst.msk [vmem:[%s152 + $0xa0] sm:$0xff] %vm671, %v659
      %693 = vst.msk [vmem:[%s152 + $0xa8] sm:$0xff] %vm671, %v660
      %694 = vst.msk [vmem:[%s152 + $0xb0] sm:$0xff] %vm671, %v661
      %695 = vst.msk [vmem:[%s152 + $0xb8] sm:$0xff] %vm671, %v662
      %696 = vst.msk [vmem:[%s152 + $0xc0] sm:$0xff] %vm671, %v663
      %697 = vst.msk [vmem:[%s152 + $0xc8] sm:$0xff] %vm671, %v664
      %698 = vst.msk [vmem:[%s152 + $0xd0] sm:$0xff] %vm671, %v665
      %699 = vst.msk [vmem:[%s152 + $0xd8] sm:$0xff] %vm671, %v666
      %700 = vst.msk [vmem:[%s152 + $0xe0] sm:$0xff] %vm671, %v667
      %701 = vst.msk [vmem:[%s152 + $0xe8] sm:$0xff] %vm671, %v668
      %702 = vst.msk [vmem:[%s152 + $0xf0] sm:$0xff] %vm671, %v669
      %703 = vst.msk [vmem:[%s152 + $0xf8] sm:$0xff] %vm671, %v670
      %p704 = scmp.lt.s32.totalorder %s16, 1
      %s705 = scalar_select %p704, %s16, 1
      %p706 = scmp.lt.s32.totalorder %s17, 2
      %s707 = scalar_select %p706, %s17, 2
      %s708 = smul.addr %s707, 32
      %s709 = smul.addr %s705, 96
      %s710 = sadd.s32 %s708, %s709
      %s711 = smul.addr %s710, 8
      %s712 = scalar_lea.vmem %s1, %s711
      // Predicated region
      $region25: #{_lambda_.17} parent=23 // pred_check
        %p713 = pneg %p72
      $region26: #{_lambda_.17} parent=23 // pred_check_branch
        %715 = sbr.rel (%p713) target = $region28
      $region27: #{_lambda_.17} parent=23 // pred_region
        _
      $region28: #{_lambda_.17} parent=23 // pred_fallthru
        _
    $region24: #{_lambda_.17} parent=5 // pred_fallthru
      _
    %p716 = scmp.le.s32.totalorder 2, %s7
    // Predicated region
    $region29: #{_lambda_.17} parent=5 // pred_check
      %p717 = pneg %p716
    $region30: #{_lambda_.17} parent=5 // pred_check_branch
      %719 = sbr.rel (%p717) target = $region32
    $region31: #{_lambda_.17} parent=5 // pred_region
      %s720 = ssub.s32 %s7, 2
      // Predicated region
      $region33: #{_lambda_.17} parent=31 // pred_check
        %p721 = pneg %p78
      $region34: #{_lambda_.17} parent=31 // pred_check_branch
        %723 = sbr.rel (%p721) target = $region36
      $region35: #{_lambda_.17} parent=31 // pred_region
        %p724 = scmp.lt.s32.totalorder %s18, 1
        %s725 = scalar_select %p724, %s18, 1
        %p726 = scmp.lt.s32.totalorder %s19, 2
        %s727 = scalar_select %p726, %s19, 2
        %s728 = smul.addr %s727, 32
        %s729 = smul.addr %s725, 96
        %s730 = sadd.s32 %s728, %s729
        %s731 = smul.addr %s730, 8
        %s732 = scalar_lea.vmem %s1, %s731
      $region36: #{_lambda_.17} parent=31 // pred_fallthru
        _
    $region32: #{_lambda_.17} parent=5 // pred_fallthru
      _
  $region6: #{_lambda_.17} parent=0 // loop_footer
    %s11 = sadd.s32 1, %s7
  $region7: #{_lambda_.17} parent=0 // loop_footer_branch
    %6 = sbr.rel target = $region3
  $region8: #{_lambda_.17} parent=0 // loop_exit
    _

</llo_original>
